<compile_context>
chip_gen: v7x
topology: tpu7x:2x2x1
jax: 0.10.0
libtpu: 0.0.40
codegen_flags: <defaults>
</compile_context>

<pallas_src>
import jax
import jax.numpy as jnp
import numpy as np
from jax import lax
from jax.experimental import pallas as pl
from jax.experimental.pallas import tpu as pltpu

LANE = 128


def _pad_to(n, m=LANE):
    return ((n + m - 1) // m) * m


# ------------------------------ fused kernel -------------------------------

def _make_fused_tcn_kernel(K, dilations, has_ds, cins_p, couts_p, c0_p,
                           c_last_p, h_p, Bt, L, s_max, matmul_dtype):
    """All TemporalBlocks + pooled Linear + ReLU for one batch tile."""
    S = s_max * Bt            # halo rows (time < 0, per local batch)
    R = L * Bt                # interior rows (time-major: row = t*Bt + b)
    n_layers = len(dilations)
    pool_unroll = True if L <= 8 else 8

    def kernel(*refs):
        # ---- unpack: x, per-layer params, pool params, output, 2 scratches
        idx = 0
        x_ref = refs[idx]; idx += 1
        layer_refs = []
        for i in range(n_layers):
            n = 8 if has_ds[i] else 6
            layer_refs.append(refs[idx:idx + n]); idx += n
        pw_ref = refs[idx]        # (L, C_last_p, H_p)
        pb_ref = refs[idx + 1]    # (1, H_p)
        o_ref = refs[idx + 2]     # (Bt, H_p)
        a_scr = refs[idx + 3]     # zero-halo scratch: block input / output
        b_scr = refs[idx + 4]     # zero-halo scratch: intra-block (conv1 out)

        # Zero the causal halo rows (cheap: s_max*Bt rows).  Re-done each grid
        # step so every core is self-contained under megacore sharding.
        if S > 0:
            halo0 = jnp.zeros((S, a_scr.shape[1]), jnp.float32)
            a_scr[0:S, :] = halo0
            b_scr[0:S, :] = halo0

        # Write this batch-tile's input (already time-major (L*Bt, C0_p)).
        a_scr[S:S + R, :c0_p] = x_ref[...]

        def causal_conv(src_ref, cin_p, w_ref, bias_ref, d, cout_p):
            # Conv1d(padding=(K-1)*d) followed by Chomp1d == causal dilated
            # conv: y[t] = b + sum_k x[t - (K-1-k)*d] @ W[k].
            # A time shift of s is a row shift of s*Bt into the zero halo, so
            # no cross-batch masking is needed.
            # TODO(synk): when K*Cin_real <= 128 (e.g. layer 0), fold the K
            # taps into one im2col matmul to cut MXU pushes / lane waste.
            acc = jnp.zeros((R, cout_p), jnp.float32) + bias_ref[...]
            for k in range(K):
                s = (K - 1 - k) * d
                tap = src_ref[S - s * Bt:S - s * Bt + R, :cin_p]
                acc = acc + jnp.dot(tap.astype(matmul_dtype), w_ref[k],
                                    preferred_element_type=jnp.float32)
            return acc

        for i in range(n_layers):
            lr = layer_refs[i]
            if has_ds[i]:
                w1, b1, w2, b2, wd, bd, bns, bnb = lr
            else:
                w1, b1, w2, b2, bns, bnb = lr
            d = dilations[i]
            cin_p, cout_p = cins_p[i], couts_p[i]
            # conv1 -> chomp1 -> relu1      (dropout1 = identity, eval mode)
            h1 = jnp.maximum(causal_conv(a_scr, cin_p, w1, b1, d, cout_p), 0.0)
            b_scr[S:S + R, :cout_p] = h1
            # conv2 -> chomp2 -> relu2 -> BatchNorm1d (eval, folded scale/shift)
            h2 = jnp.maximum(causal_conv(b_scr, cout_p, w2, b2, d, cout_p), 0.0)
            h2 = h2 * bns[...] + bnb[...]
            # residual (1x1-conv downsample when channel counts differ) + ReLU
            hin = a_scr[S:S + R, :cin_p]
            if has_ds[i]:
                res = jnp.dot(hin.astype(matmul_dtype), wd[...],
                              preferred_element_type=jnp.float32) + bd[...]
            else:
                res = hin
            a_scr[S:S + R, :cout_p] = jnp.maximum(res + h2, 0.0)

        # ---- pooled Linear over the flattened (L, C) axis + ReLU
        #      (final Dropout = identity).  out[b] = relu(pb + sum_l h[l,b] @ Wp[l])
        # time-l rows are a contiguous slice thanks to the time-major layout.
        # TODO(synk): for very large L (pool weight (L,128,128) exceeding v7x
        # VMEM) stream pw over a second grid axis with a pl.when-guarded
        # accumulator instead of keeping it fully VMEM-resident.
        def pool_body(l, acc):
            start = S + l * Bt
            if Bt % 8 == 0:
                start = pl.multiple_of(start, 8)
            h_l = a_scr[pl.ds(start, Bt), :c_last_p]
            return acc + jnp.dot(h_l.astype(matmul_dtype), pw_ref[l],
                                 preferred_element_type=jnp.float32)

        acc0 = jnp.zeros((Bt, h_p), jnp.float32) + pb_ref[...]
        acc = lax.fori_loop(0, L, pool_body, acc0, unroll=pool_unroll)
        o_ref[...] = jnp.maximum(acc, 0.0)

    return kernel


# ------------------------- padding / operand packing ------------------------

def pad_params(layer_params, pool_w, pool_b, L, matmul_dtype):
    """Zero-pad channel axes to 128 lanes, cast matmul weights to matmul_dtype,
    and flatten the per-layer dicts into the operand order the kernel expects."""
    ops, has_ds, dilations, cins_p, couts_p = [], [], [], [], []
    for p in layer_params:
        _, cin, cout = p['w1'].shape
        cin_p, cout_p = _pad_to(cin), _pad_to(cout)
        dilations.append(p['dilation'])
        cins_p.append(cin_p); couts_p.append(cout_p)
        ops.append(jnp.pad(p['w1'], ((0, 0), (0, cin_p - cin),
                                     (0, cout_p - cout))).astype(matmul_dtype))
        ops.append(jnp.pad(p['b1'], ((0, 0), (0, cout_p - cout))))
        ops.append(jnp.pad(p['w2'], ((0, 0), (0, cout_p - cout),
                                     (0, cout_p - cout))).astype(matmul_dtype))
        ops.append(jnp.pad(p['b2'], ((0, 0), (0, cout_p - cout))))
        if 'wd' in p:
            ops.append(jnp.pad(p['wd'], ((0, cin_p - cin),
                                         (0, cout_p - cout))).astype(matmul_dtype))
            ops.append(jnp.pad(p['bd'], ((0, 0), (0, cout_p - cout))))
            has_ds.append(True)
        else:
            has_ds.append(False)
        ops.append(jnp.pad(p['bn_scale'], ((0, 0), (0, cout_p - cout))))
        ops.append(jnp.pad(p['bn_shift'], ((0, 0), (0, cout_p - cout))))

    c_last = layer_params[-1]['w2'].shape[2]
    n_hidden = pool_b.shape[1]
    c_last_p, h_p = _pad_to(c_last), _pad_to(n_hidden)
    # PyTorch flattens the (B, L, C) activation as index l*C + c, so the
    # (L*C, H) pool weight reshapes row-for-row to (L, C, H).
    pw3 = pool_w.reshape(L, c_last, n_hidden)
    pw3 = jnp.pad(pw3, ((0, 0), (0, c_last_p - c_last),
                        (0, h_p - n_hidden))).astype(matmul_dtype)
    pbp = jnp.pad(pool_b, ((0, 0), (0, h_p - n_hidden)))
    ops += [pw3, pbp]
    return ops, has_ds, dilations, cins_p, couts_p, c_last_p, h_p


def tcn_forward(x, layer_params, pool_w, pool_b, K, *,
                matmul_dtype=jnp.float32, batch_tile=None):
    # x: (B, L, num_inputs).  PyTorch transposes to NCL and back; in our
    # (time, batch, channel) packing those transposes are layout choices only.
    B, L, C0 = x.shape
    n_hidden = pool_b.shape[1]
    (ops, has_ds, dilations, cins_p, couts_p,
     c_last_p, h_p) = pad_params(layer_params, pool_w, pool_b, L, matmul_dtype)
    c0_p = cins_p[0]
    c_max_p = max(max(cins_p), max(couts_p))
    s_max = max((K - 1) * d for d in dilations)

    # Batch tile: a multiple of 8 (sublane) when possible; must divide B.
    if batch_tile is None:
        batch_tile = 8 if (B % 8 == 0) else B
    assert B % batch_tile == 0
    Bt = batch_tile
    G = B // Bt
    S = s_max * Bt
    R = L * Bt

    # Pack input time-major per batch tile: (G, L*Bt, C0_p), row = t*Bt + b.
    xp = jnp.pad(x, ((0, 0), (0, 0), (0, c0_p - C0)))
    xp = xp.reshape(G, Bt, L, c0_p).transpose(0, 2, 1, 3).reshape(G, R, c0_p)

    kernel = _make_fused_tcn_kernel(K, dilations, has_ds, cins_p, couts_p,
                                    c0_p, c_last_p, h_p, Bt, L, s_max,
                                    matmul_dtype)

    in_specs = [pl.BlockSpec((None, R, c0_p), lambda i: (i, 0, 0))]
    for op in ops:  # weights: full block, constant index -> loaded once, resident
        in_specs.append(pl.BlockSpec(op.shape, lambda i, nd=op.ndim: (0,) * nd))
    out_spec = pl.BlockSpec((Bt, h_p), lambda i: (i, 0))

    # rough VMEM budget (scratches + resident weights + in/out double buffers)
    wbytes = sum(int(np.prod(o.shape)) * o.dtype.itemsize for o in ops)
    vmem_need = (2 * (S + R) * c_max_p * 4 + 2 * wbytes
                 + 2 * (R * c0_p * xp.dtype.itemsize + Bt * h_p * 4))
    vmem_limit = int(min(100 * 2 ** 20, max(32 * 2 ** 20, 2 * vmem_need)))

    # cost estimate (real, unpadded channel counts)
    flops = 0
    cin = C0
    for p in layer_params:
        cout = p['w1'].shape[2]
        flops += 2 * B * L * K * cin * cout            # conv1
        flops += 2 * B * L * K * cout * cout           # conv2
        if 'wd' in p:
            flops += 2 * B * L * cin * cout            # 1x1 downsample
        cin = cout
    flops += 2 * B * L * cin * n_hidden                # pooled Linear
    bytes_accessed = int(x.size * x.dtype.itemsize + wbytes + B * h_p * 4)

    out = pl.pallas_call(
        kernel,
        grid=(G,),
        in_specs=in_specs,
        out_specs=out_spec,
        out_shape=jax.ShapeDtypeStruct((B, h_p), jnp.float32),
        scratch_shapes=[pltpu.VMEM((S + R, c_max_p), jnp.float32),
                        pltpu.VMEM((S + R, c_max_p), jnp.float32)],
        compiler_params=pltpu.CompilerParams(
            dimension_semantics=("parallel",),
            vmem_limit_bytes=vmem_limit),
        cost_estimate=pl.CostEstimate(flops=int(flops), transcendentals=0,
                                      bytes_accessed=bytes_accessed),
    )(xp, *ops)
    return out[:, :n_hidden]


# -------------------------- parameter construction -------------------------

def init_params(key, num_inputs, num_channels, seq_len, K):
    """Deterministic synthetic parameters matching the module's shapes.

    Conv weights emulate weight_norm: W_eff = g * v / ||v|| (per out-channel).
    BatchNorm uses freshly-initialized eval-mode stats folded to scale/shift.
    """
    layers = []
    cin = num_inputs
    for i, cout in enumerate(num_channels):
        key, *ks = jax.random.split(key, 8)
        d = 2 ** i

        def wn_conv(kv, kg, co, ci, kk):
            v = 0.01 * jax.random.normal(kv, (co, ci, kk), jnp.float32)
            g = 0.1 + jax.random.uniform(kg, (co, 1, 1), jnp.float32)
            nrm = jnp.sqrt(jnp.sum(v * v, axis=(1, 2), keepdims=True)) + 1e-12
            w = g * v / nrm                       # torch layout (Cout, Cin, K)
            return jnp.transpose(w, (2, 1, 0))    # -> (K, Cin, Cout)

        p = {
            'dilation': d,
            'w1': wn_conv(ks[0], ks[1], cout, cin, K),
            'b1': 0.01 * jax.random.normal(ks[2], (1, cout), jnp.float32),
            'w2': wn_conv(ks[3], ks[4], cout, cout, K),
            'b2': 0.01 * jax.random.normal(ks[5], (1, cout), jnp.float32),
        }
        if cin != cout:
            wd = 0.01 * jax.random.normal(ks[6], (cout, cin, 1), jnp.float32)
            p['wd'] = jnp.transpose(wd[:, :, 0], (1, 0))       # (Cin, Cout)
            key, kb = jax.random.split(key)
            p['bd'] = 0.01 * jax.random.normal(kb, (1, cout), jnp.float32)
        # BatchNorm1d eval-mode fold: defaults gamma=1, beta=0, mean=0, var=1
        eps = 1e-5
        gamma = jnp.ones((1, cout), jnp.float32)
        beta = jnp.zeros((1, cout), jnp.float32)
        rmean = jnp.zeros((1, cout), jnp.float32)
        rvar = jnp.ones((1, cout), jnp.float32)
        scale = gamma / jnp.sqrt(rvar + eps)
        p['bn_scale'] = scale
        p['bn_shift'] = beta - rmean * scale
        layers.append(p)
        cin = cout

    H = num_channels[-1]
    key, kw, kb = jax.random.split(key, 3)
    pw = 0.01 * jax.random.normal(kw, (H, H * seq_len), jnp.float32)  # torch (out,in)
    pb = 0.01 * jax.random.normal(kb, (1, H), jnp.float32)
    return layers, jnp.transpose(pw), pb                    # pool_w: (L*C, H)


# ------------------------------ pure-JAX reference --------------------------

def _ref_causal_conv(x, w, b, d, K):
    B, L, _ = x.shape
    out = jnp.zeros((B, L, w.shape[2]), jnp.float32) + b
    for k in range(K):
        s = (K - 1 - k) * d
        xs = jnp.pad(x, ((0, 0), (s, 0), (0, 0)))[:, :L, :]
        out = out + jnp.einsum('blc,co->blo', xs, w[k])
    return out


def ref_tcn(x, layer_params, pool_w, pool_b, K):
    h = x
    for p in layer_params:
        d = p['dilation']
        c = jnp.maximum(_ref_causal_conv(h, p['w1'], p['b1'], d, K), 0.0)
        c = jnp.maximum(_ref_causal_conv(c, p['w2'], p['b2'], d, K), 0.0)
        c = c * p['bn_scale'] + p['bn_shift']
        res = h if 'wd' not in p else jnp.einsum('blc,co->blo', h, p['wd']) + p['bd']
        h = jnp.maximum(res + c, 0.0)
    flat = h.reshape(h.shape[0], -1)
    return jnp.maximum(flat @ pool_w + pool_b, 0.0)


# ----------------------------------- main -----------------------------------

if __name__ == "__main__":
    B, num_inputs, seq_len = 16, 4, 8
    num_channels = [16, 16, 32]     # exercises both residual branches
    K = 2                           # kernel_size (module default)

    key = jax.random.PRNGKey(0)
    key, kx = jax.random.split(key)
    x = jax.random.normal(kx, (B, seq_len, num_inputs), jnp.float32)

    layer_params, pool_w, pool_b = init_params(key, num_inputs, num_channels,
                                               seq_len, K)
    ref = ref_tcn(x, layer_params, pool_w, pool_b, K)

    # exact-semantics path: f32 matmul operands
    out_f32 = jax.block_until_ready(
        tcn_forward(x, layer_params, pool_w, pool_b, K,
                    matmul_dtype=jnp.float32))
    assert out_f32.shape == (B, num_channels[-1])
    np.testing.assert_allclose(np.asarray(out_f32), np.asarray(ref),
                               rtol=2e-3, atol=2e-3)

    # MXU-friendly path: bf16 matmul operands, f32 accumulation & epilogue
    out_bf16 = jax.block_until_ready(
        tcn_forward(x, layer_params, pool_w, pool_b, K,
                    matmul_dtype=jnp.bfloat16))
    np.testing.assert_allclose(np.asarray(out_bf16), np.asarray(ref),
                               rtol=2e-2, atol=2e-2)

    print("KERNEL_OK")
</pallas_src>

<mosaic_0001>
module attributes {stable_mosaic.version = 11 : i64} {
  func.func @kernel(%arg0: i32, %arg1: memref<1x64x128xf32, #tpu.memory_space<vmem>>, %arg2: memref<2x128x128xf32, #tpu.memory_space<vmem>>, %arg3: memref<1x128xf32, #tpu.memory_space<vmem>>, %arg4: memref<2x128x128xf32, #tpu.memory_space<vmem>>, %arg5: memref<1x128xf32, #tpu.memory_space<vmem>>, %arg6: memref<128x128xf32, #tpu.memory_space<vmem>>, %arg7: memref<1x128xf32, #tpu.memory_space<vmem>>, %arg8: memref<1x128xf32, #tpu.memory_space<vmem>>, %arg9: memref<1x128xf32, #tpu.memory_space<vmem>>, %arg10: memref<2x128x128xf32, #tpu.memory_space<vmem>>, %arg11: memref<1x128xf32, #tpu.memory_space<vmem>>, %arg12: memref<2x128x128xf32, #tpu.memory_space<vmem>>, %arg13: memref<1x128xf32, #tpu.memory_space<vmem>>, %arg14: memref<1x128xf32, #tpu.memory_space<vmem>>, %arg15: memref<1x128xf32, #tpu.memory_space<vmem>>, %arg16: memref<2x128x128xf32, #tpu.memory_space<vmem>>, %arg17: memref<1x128xf32, #tpu.memory_space<vmem>>, %arg18: memref<2x128x128xf32, #tpu.memory_space<vmem>>, %arg19: memref<1x128xf32, #tpu.memory_space<vmem>>, %arg20: memref<128x128xf32, #tpu.memory_space<vmem>>, %arg21: memref<1x128xf32, #tpu.memory_space<vmem>>, %arg22: memref<1x128xf32, #tpu.memory_space<vmem>>, %arg23: memref<1x128xf32, #tpu.memory_space<vmem>>, %arg24: memref<8x128x128xf32, #tpu.memory_space<vmem>>, %arg25: memref<1x128xf32, #tpu.memory_space<vmem>>, %arg26: memref<8x128xf32, #tpu.memory_space<vmem>>, %arg27: memref<96x128xf32, #tpu.memory_space<vmem>>, %arg28: memref<96x128xf32, #tpu.memory_space<vmem>>) attributes {dimension_semantics = [#tpu.dimension_semantics<parallel>], iteration_bounds = array<i64: 2>, scalar_prefetch = 0 : i64, scratch_operands = 2 : i64, tpu.core_type = #tpu.core_type<tc>, window_params = [{transform_indices = @transform_0, window_bounds = array<i64: 1, 64, 128>}, {pipeline_mode = #tpu.pipeline_mode<synchronous>, transform_indices = @transform_1, window_bounds = array<i64: 2, 128, 128>}, {pipeline_mode = #tpu.pipeline_mode<synchronous>, transform_indices = @transform_2, window_bounds = array<i64: 1, 128>}, {pipeline_mode = #tpu.pipeline_mode<synchronous>, transform_indices = @transform_3, window_bounds = array<i64: 2, 128, 128>}, {pipeline_mode = #tpu.pipeline_mode<synchronous>, transform_indices = @transform_4, window_bounds = array<i64: 1, 128>}, {pipeline_mode = #tpu.pipeline_mode<synchronous>, transform_indices = @transform_5, window_bounds = array<i64: 128, 128>}, {pipeline_mode = #tpu.pipeline_mode<synchronous>, transform_indices = @transform_6, window_bounds = array<i64: 1, 128>}, {pipeline_mode = #tpu.pipeline_mode<synchronous>, transform_indices = @transform_7, window_bounds = array<i64: 1, 128>}, {pipeline_mode = #tpu.pipeline_mode<synchronous>, transform_indices = @transform_8, window_bounds = array<i64: 1, 128>}, {pipeline_mode = #tpu.pipeline_mode<synchronous>, transform_indices = @transform_9, window_bounds = array<i64: 2, 128, 128>}, {pipeline_mode = #tpu.pipeline_mode<synchronous>, transform_indices = @transform_10, window_bounds = array<i64: 1, 128>}, {pipeline_mode = #tpu.pipeline_mode<synchronous>, transform_indices = @transform_11, window_bounds = array<i64: 2, 128, 128>}, {pipeline_mode = #tpu.pipeline_mode<synchronous>, transform_indices = @transform_12, window_bounds = array<i64: 1, 128>}, {pipeline_mode = #tpu.pipeline_mode<synchronous>, transform_indices = @transform_13, window_bounds = array<i64: 1, 128>}, {pipeline_mode = #tpu.pipeline_mode<synchronous>, transform_indices = @transform_14, window_bounds = array<i64: 1, 128>}, {pipeline_mode = #tpu.pipeline_mode<synchronous>, transform_indices = @transform_15, window_bounds = array<i64: 2, 128, 128>}, {pipeline_mode = #tpu.pipeline_mode<synchronous>, transform_indices = @transform_16, window_bounds = array<i64: 1, 128>}, {pipeline_mode = #tpu.pipeline_mode<synchronous>, transform_indices = @transform_17, window_bounds = array<i64: 2, 128, 128>}, {pipeline_mode = #tpu.pipeline_mode<synchronous>, transform_indices = @transform_18, window_bounds = array<i64: 1, 128>}, {pipeline_mode = #tpu.pipeline_mode<synchronous>, transform_indices = @transform_19, window_bounds = array<i64: 128, 128>}, {pipeline_mode = #tpu.pipeline_mode<synchronous>, transform_indices = @transform_20, window_bounds = array<i64: 1, 128>}, {pipeline_mode = #tpu.pipeline_mode<synchronous>, transform_indices = @transform_21, window_bounds = array<i64: 1, 128>}, {pipeline_mode = #tpu.pipeline_mode<synchronous>, transform_indices = @transform_22, window_bounds = array<i64: 1, 128>}, {pipeline_mode = #tpu.pipeline_mode<synchronous>, transform_indices = @transform_23, window_bounds = array<i64: 8, 128, 128>}, {pipeline_mode = #tpu.pipeline_mode<synchronous>, transform_indices = @transform_24, window_bounds = array<i64: 1, 128>}, {transform_indices = @transform_25, window_bounds = array<i64: 8, 128>}]} {
    %cst = arith.constant 0.000000e+00 : f32
    %0 = vector.broadcast %cst : f32 to vector<32x128xf32>
    %c0 = arith.constant 0 : index
    %c0_0 = arith.constant 0 : index
    %1 = vector.load %arg27[%c0, %c0_0] : memref<96x128xf32, #tpu.memory_space<vmem>>, vector<32x128xf32>
    tpu.vector_store %arg27[%c0, %c0_0], %0 {strides = array<i32>} : memref<96x128xf32, #tpu.memory_space<vmem>>, vector<32x128xf32>,
    %c0_1 = arith.constant 0 : index
    %c0_2 = arith.constant 0 : index
    %2 = vector.load %arg28[%c0_1, %c0_2] : memref<96x128xf32, #tpu.memory_space<vmem>>, vector<32x128xf32>
    tpu.vector_store %arg28[%c0_1, %c0_2], %0 {strides = array<i32>} : memref<96x128xf32, #tpu.memory_space<vmem>>, vector<32x128xf32>,
    %c0_3 = arith.constant 0 : index
    %c0_4 = arith.constant 0 : index
    %c0_5 = arith.constant 0 : index
    %3 = vector.load %arg1[%c0_3, %c0_4, %c0_5] : memref<1x64x128xf32, #tpu.memory_space<vmem>>, vector<1x64x128xf32>
    %4 = vector.shape_cast %3 : vector<1x64x128xf32> to vector<64x128xf32>
    %c32 = arith.constant 32 : index
    %c0_6 = arith.constant 0 : index
    %5 = vector.load %arg27[%c32, %c0_6] : memref<96x128xf32, #tpu.memory_space<vmem>>, vector<64x128xf32>
    tpu.vector_store %arg27[%c32, %c0_6], %4 {strides = array<i32>} : memref<96x128xf32, #tpu.memory_space<vmem>>, vector<64x128xf32>,
    %cst_7 = arith.constant 0.000000e+00 : f32
    %6 = vector.broadcast %cst_7 : f32 to vector<64x128xf32>
    %c0_8 = arith.constant 0 : index
    %c0_9 = arith.constant 0 : index
    %7 = vector.load %arg3[%c0_8, %c0_9] : memref<1x128xf32, #tpu.memory_space<vmem>>, vector<1x128xf32>
    %8 = vector.broadcast %7 : vector<1x128xf32> to vector<64x128xf32>
    %9 = arith.addf %6, %8 : vector<64x128xf32>
    %c24 = arith.constant 24 : index
    %c0_10 = arith.constant 0 : index
    %10 = vector.load %arg27[%c24, %c0_10] : memref<96x128xf32, #tpu.memory_space<vmem>>, vector<64x128xf32>
    %c0_11 = arith.constant 0 : index
    %c0_12 = arith.constant 0 : index
    %c0_13 = arith.constant 0 : index
    %11 = vector.load %arg2[%c0_11, %c0_12, %c0_13] : memref<2x128x128xf32, #tpu.memory_space<vmem>>, vector<1x128x128xf32>
    %12 = vector.shape_cast %11 : vector<1x128x128xf32> to vector<128x128xf32>
    %cst_14 = arith.constant dense<0.000000e+00> : vector<64x128xf32>
    %13 = tpu.matmul %10, %12, %cst_14 {dimension_numbers = #tpu.dot_dimension_numbers<[1], [0], [0], [1], [0, 0, 1, 1], [], []>} : vector<64x128xf32>, vector<128x128xf32>, vector<64x128xf32> -> vector<64x128xf32>
    %14 = arith.addf %9, %13 : vector<64x128xf32>
    %c32_15 = arith.constant 32 : index
    %c0_16 = arith.constant 0 : index
    %15 = vector.load %arg27[%c32_15, %c0_16] : memref<96x128xf32, #tpu.memory_space<vmem>>, vector<64x128xf32>
    %c1 = arith.constant 1 : index
    %c0_17 = arith.constant 0 : index
    %c0_18 = arith.constant 0 : index
    %16 = vector.load %arg2[%c1, %c0_17, %c0_18] : memref<2x128x128xf32, #tpu.memory_space<vmem>>, vector<1x128x128xf32>
    %17 = vector.shape_cast %16 : vector<1x128x128xf32> to vector<128x128xf32>
    %cst_19 = arith.constant dense<0.000000e+00> : vector<64x128xf32>
    %18 = tpu.matmul %15, %17, %cst_19 {dimension_numbers = #tpu.dot_dimension_numbers<[1], [0], [0], [1], [0, 0, 1, 1], [], []>} : vector<64x128xf32>, vector<128x128xf32>, vector<64x128xf32> -> vector<64x128xf32>
    %19 = arith.addf %14, %18 : vector<64x128xf32>
    %cst_20 = arith.constant 0.000000e+00 : f32
    %20 = vector.broadcast %cst_20 : f32 to vector<64x128xf32>
    %21 = arith.maximumf %19, %20 : vector<64x128xf32>
    %c32_21 = arith.constant 32 : index
    %c0_22 = arith.constant 0 : index
    %22 = vector.load %arg28[%c32_21, %c0_22] : memref<96x128xf32, #tpu.memory_space<vmem>>, vector<64x128xf32>
    tpu.vector_store %arg28[%c32_21, %c0_22], %21 {strides = array<i32>} : memref<96x128xf32, #tpu.memory_space<vmem>>, vector<64x128xf32>,
    %cst_23 = arith.constant 0.000000e+00 : f32
    %23 = vector.broadcast %cst_23 : f32 to vector<64x128xf32>
    %c0_24 = arith.constant 0 : index
    %c0_25 = arith.constant 0 : index
    %24 = vector.load %arg5[%c0_24, %c0_25] : memref<1x128xf32, #tpu.memory_space<vmem>>, vector<1x128xf32>
    %25 = vector.broadcast %24 : vector<1x128xf32> to vector<64x128xf32>
    %26 = arith.addf %23, %25 : vector<64x128xf32>
    %c24_26 = arith.constant 24 : index
    %c0_27 = arith.constant 0 : index
    %27 = vector.load %arg28[%c24_26, %c0_27] : memref<96x128xf32, #tpu.memory_space<vmem>>, vector<64x128xf32>
    %c0_28 = arith.constant 0 : index
    %c0_29 = arith.constant 0 : index
    %c0_30 = arith.constant 0 : index
    %28 = vector.load %arg4[%c0_28, %c0_29, %c0_30] : memref<2x128x128xf32, #tpu.memory_space<vmem>>, vector<1x128x128xf32>
    %29 = vector.shape_cast %28 : vector<1x128x128xf32> to vector<128x128xf32>
    %cst_31 = arith.constant dense<0.000000e+00> : vector<64x128xf32>
    %30 = tpu.matmul %27, %29, %cst_31 {dimension_numbers = #tpu.dot_dimension_numbers<[1], [0], [0], [1], [0, 0, 1, 1], [], []>} : vector<64x128xf32>, vector<128x128xf32>, vector<64x128xf32> -> vector<64x128xf32>
    %31 = arith.addf %26, %30 : vector<64x128xf32>
    %c32_32 = arith.constant 32 : index
    %c0_33 = arith.constant 0 : index
    %32 = vector.load %arg28[%c32_32, %c0_33] : memref<96x128xf32, #tpu.memory_space<vmem>>, vector<64x128xf32>
    %c1_34 = arith.constant 1 : index
    %c0_35 = arith.constant 0 : index
    %c0_36 = arith.constant 0 : index
    %33 = vector.load %arg4[%c1_34, %c0_35, %c0_36] : memref<2x128x128xf32, #tpu.memory_space<vmem>>, vector<1x128x128xf32>
    %34 = vector.shape_cast %33 : vector<1x128x128xf32> to vector<128x128xf32>
    %cst_37 = arith.constant dense<0.000000e+00> : vector<64x128xf32>
    %35 = tpu.matmul %32, %34, %cst_37 {dimension_numbers = #tpu.dot_dimension_numbers<[1], [0], [0], [1], [0, 0, 1, 1], [], []>} : vector<64x128xf32>, vector<128x128xf32>, vector<64x128xf32> -> vector<64x128xf32>
    %36 = arith.addf %31, %35 : vector<64x128xf32>
    %cst_38 = arith.constant 0.000000e+00 : f32
    %37 = vector.broadcast %cst_38 : f32 to vector<64x128xf32>
    %38 = arith.maximumf %36, %37 : vector<64x128xf32>
    %c0_39 = arith.constant 0 : index
    %c0_40 = arith.constant 0 : index
    %39 = vector.load %arg8[%c0_39, %c0_40] : memref<1x128xf32, #tpu.memory_space<vmem>>, vector<1x128xf32>
    %40 = vector.broadcast %39 : vector<1x128xf32> to vector<64x128xf32>
    %41 = arith.mulf %38, %40 : vector<64x128xf32>
    %c0_41 = arith.constant 0 : index
    %c0_42 = arith.constant 0 : index
    %42 = vector.load %arg9[%c0_41, %c0_42] : memref<1x128xf32, #tpu.memory_space<vmem>>, vector<1x128xf32>
    %43 = vector.broadcast %42 : vector<1x128xf32> to vector<64x128xf32>
    %44 = arith.addf %41, %43 : vector<64x128xf32>
    %c32_43 = arith.constant 32 : index
    %c0_44 = arith.constant 0 : index
    %45 = vector.load %arg27[%c32_43, %c0_44] : memref<96x128xf32, #tpu.memory_space<vmem>>, vector<64x128xf32>
    %c0_45 = arith.constant 0 : index
    %c0_46 = arith.constant 0 : index
    %46 = vector.load %arg6[%c0_45, %c0_46] : memref<128x128xf32, #tpu.memory_space<vmem>>, vector<128x128xf32>
    %cst_47 = arith.constant dense<0.000000e+00> : vector<64x128xf32>
    %47 = tpu.matmul %45, %46, %cst_47 {dimension_numbers = #tpu.dot_dimension_numbers<[1], [0], [0], [1], [0, 0, 1, 1], [], []>} : vector<64x128xf32>, vector<128x128xf32>, vector<64x128xf32> -> vector<64x128xf32>
    %c0_48 = arith.constant 0 : index
    %c0_49 = arith.constant 0 : index
    %48 = vector.load %arg7[%c0_48, %c0_49] : memref<1x128xf32, #tpu.memory_space<vmem>>, vector<1x128xf32>
    %49 = vector.broadcast %48 : vector<1x128xf32> to vector<64x128xf32>
    %50 = arith.addf %47, %49 : vector<64x128xf32>
    %51 = arith.addf %50, %44 : vector<64x128xf32>
    %cst_50 = arith.constant 0.000000e+00 : f32
    %52 = vector.broadcast %cst_50 : f32 to vector<64x128xf32>
    %53 = arith.maximumf %51, %52 : vector<64x128xf32>
    %c32_51 = arith.constant 32 : index
    %c0_52 = arith.constant 0 : index
    %54 = vector.load %arg27[%c32_51, %c0_52] : memref<96x128xf32, #tpu.memory_space<vmem>>, vector<64x128xf32>
    tpu.vector_store %arg27[%c32_51, %c0_52], %53 {strides = array<i32>} : memref<96x128xf32, #tpu.memory_space<vmem>>, vector<64x128xf32>,
    %cst_53 = arith.constant 0.000000e+00 : f32
    %55 = vector.broadcast %cst_53 : f32 to vector<64x128xf32>
    %c0_54 = arith.constant 0 : index
    %c0_55 = arith.constant 0 : index
    %56 = vector.load %arg11[%c0_54, %c0_55] : memref<1x128xf32, #tpu.memory_space<vmem>>, vector<1x128xf32>
    %57 = vector.broadcast %56 : vector<1x128xf32> to vector<64x128xf32>
    %58 = arith.addf %55, %57 : vector<64x128xf32>
    %c16 = arith.constant 16 : index
    %c0_56 = arith.constant 0 : index
    %59 = vector.load %arg27[%c16, %c0_56] : memref<96x128xf32, #tpu.memory_space<vmem>>, vector<64x128xf32>
    %c0_57 = arith.constant 0 : index
    %c0_58 = arith.constant 0 : index
    %c0_59 = arith.constant 0 : index
    %60 = vector.load %arg10[%c0_57, %c0_58, %c0_59] : memref<2x128x128xf32, #tpu.memory_space<vmem>>, vector<1x128x128xf32>
    %61 = vector.shape_cast %60 : vector<1x128x128xf32> to vector<128x128xf32>
    %cst_60 = arith.constant dense<0.000000e+00> : vector<64x128xf32>
    %62 = tpu.matmul %59, %61, %cst_60 {dimension_numbers = #tpu.dot_dimension_numbers<[1], [0], [0], [1], [0, 0, 1, 1], [], []>} : vector<64x128xf32>, vector<128x128xf32>, vector<64x128xf32> -> vector<64x128xf32>
    %63 = arith.addf %58, %62 : vector<64x128xf32>
    %c32_61 = arith.constant 32 : index
    %c0_62 = arith.constant 0 : index
    %64 = vector.load %arg27[%c32_61, %c0_62] : memref<96x128xf32, #tpu.memory_space<vmem>>, vector<64x128xf32>
    %c1_63 = arith.constant 1 : index
    %c0_64 = arith.constant 0 : index
    %c0_65 = arith.constant 0 : index
    %65 = vector.load %arg10[%c1_63, %c0_64, %c0_65] : memref<2x128x128xf32, #tpu.memory_space<vmem>>, vector<1x128x128xf32>
    %66 = vector.shape_cast %65 : vector<1x128x128xf32> to vector<128x128xf32>
    %cst_66 = arith.constant dense<0.000000e+00> : vector<64x128xf32>
    %67 = tpu.matmul %64, %66, %cst_66 {dimension_numbers = #tpu.dot_dimension_numbers<[1], [0], [0], [1], [0, 0, 1, 1], [], []>} : vector<64x128xf32>, vector<128x128xf32>, vector<64x128xf32> -> vector<64x128xf32>
    %68 = arith.addf %63, %67 : vector<64x128xf32>
    %cst_67 = arith.constant 0.000000e+00 : f32
    %69 = vector.broadcast %cst_67 : f32 to vector<64x128xf32>
    %70 = arith.maximumf %68, %69 : vector<64x128xf32>
    %c32_68 = arith.constant 32 : index
    %c0_69 = arith.constant 0 : index
    %71 = vector.load %arg28[%c32_68, %c0_69] : memref<96x128xf32, #tpu.memory_space<vmem>>, vector<64x128xf32>
    tpu.vector_store %arg28[%c32_68, %c0_69], %70 {strides = array<i32>} : memref<96x128xf32, #tpu.memory_space<vmem>>, vector<64x128xf32>,
    %cst_70 = arith.constant 0.000000e+00 : f32
    %72 = vector.broadcast %cst_70 : f32 to vector<64x128xf32>
    %c0_71 = arith.constant 0 : index
    %c0_72 = arith.constant 0 : index
    %73 = vector.load %arg13[%c0_71, %c0_72] : memref<1x128xf32, #tpu.memory_space<vmem>>, vector<1x128xf32>
    %74 = vector.broadcast %73 : vector<1x128xf32> to vector<64x128xf32>
    %75 = arith.addf %72, %74 : vector<64x128xf32>
    %c16_73 = arith.constant 16 : index
    %c0_74 = arith.constant 0 : index
    %76 = vector.load %arg28[%c16_73, %c0_74] : memref<96x128xf32, #tpu.memory_space<vmem>>, vector<64x128xf32>
    %c0_75 = arith.constant 0 : index
    %c0_76 = arith.constant 0 : index
    %c0_77 = arith.constant 0 : index
    %77 = vector.load %arg12[%c0_75, %c0_76, %c0_77] : memref<2x128x128xf32, #tpu.memory_space<vmem>>, vector<1x128x128xf32>
    %78 = vector.shape_cast %77 : vector<1x128x128xf32> to vector<128x128xf32>
    %cst_78 = arith.constant dense<0.000000e+00> : vector<64x128xf32>
    %79 = tpu.matmul %76, %78, %cst_78 {dimension_numbers = #tpu.dot_dimension_numbers<[1], [0], [0], [1], [0, 0, 1, 1], [], []>} : vector<64x128xf32>, vector<128x128xf32>, vector<64x128xf32> -> vector<64x128xf32>
    %80 = arith.addf %75, %79 : vector<64x128xf32>
    %c32_79 = arith.constant 32 : index
    %c0_80 = arith.constant 0 : index
    %81 = vector.load %arg28[%c32_79, %c0_80] : memref<96x128xf32, #tpu.memory_space<vmem>>, vector<64x128xf32>
    %c1_81 = arith.constant 1 : index
    %c0_82 = arith.constant 0 : index
    %c0_83 = arith.constant 0 : index
    %82 = vector.load %arg12[%c1_81, %c0_82, %c0_83] : memref<2x128x128xf32, #tpu.memory_space<vmem>>, vector<1x128x128xf32>
    %83 = vector.shape_cast %82 : vector<1x128x128xf32> to vector<128x128xf32>
    %cst_84 = arith.constant dense<0.000000e+00> : vector<64x128xf32>
    %84 = tpu.matmul %81, %83, %cst_84 {dimension_numbers = #tpu.dot_dimension_numbers<[1], [0], [0], [1], [0, 0, 1, 1], [], []>} : vector<64x128xf32>, vector<128x128xf32>, vector<64x128xf32> -> vector<64x128xf32>
    %85 = arith.addf %80, %84 : vector<64x128xf32>
    %cst_85 = arith.constant 0.000000e+00 : f32
    %86 = vector.broadcast %cst_85 : f32 to vector<64x128xf32>
    %87 = arith.maximumf %85, %86 : vector<64x128xf32>
    %c0_86 = arith.constant 0 : index
    %c0_87 = arith.constant 0 : index
    %88 = vector.load %arg14[%c0_86, %c0_87] : memref<1x128xf32, #tpu.memory_space<vmem>>, vector<1x128xf32>
    %89 = vector.broadcast %88 : vector<1x128xf32> to vector<64x128xf32>
    %90 = arith.mulf %87, %89 : vector<64x128xf32>
    %c0_88 = arith.constant 0 : index
    %c0_89 = arith.constant 0 : index
    %91 = vector.load %arg15[%c0_88, %c0_89] : memref<1x128xf32, #tpu.memory_space<vmem>>, vector<1x128xf32>
    %92 = vector.broadcast %91 : vector<1x128xf32> to vector<64x128xf32>
    %93 = arith.addf %90, %92 : vector<64x128xf32>
    %c32_90 = arith.constant 32 : index
    %c0_91 = arith.constant 0 : index
    %94 = vector.load %arg27[%c32_90, %c0_91] : memref<96x128xf32, #tpu.memory_space<vmem>>, vector<64x128xf32>
    %95 = arith.addf %94, %93 : vector<64x128xf32>
    %cst_92 = arith.constant 0.000000e+00 : f32
    %96 = vector.broadcast %cst_92 : f32 to vector<64x128xf32>
    %97 = arith.maximumf %95, %96 : vector<64x128xf32>
    %c32_93 = arith.constant 32 : index
    %c0_94 = arith.constant 0 : index
    %98 = vector.load %arg27[%c32_93, %c0_94] : memref<96x128xf32, #tpu.memory_space<vmem>>, vector<64x128xf32>
    tpu.vector_store %arg27[%c32_93, %c0_94], %97 {strides = array<i32>} : memref<96x128xf32, #tpu.memory_space<vmem>>, vector<64x128xf32>,
    %cst_95 = arith.constant 0.000000e+00 : f32
    %99 = vector.broadcast %cst_95 : f32 to vector<64x128xf32>
    %c0_96 = arith.constant 0 : index
    %c0_97 = arith.constant 0 : index
    %100 = vector.load %arg17[%c0_96, %c0_97] : memref<1x128xf32, #tpu.memory_space<vmem>>, vector<1x128xf32>
    %101 = vector.broadcast %100 : vector<1x128xf32> to vector<64x128xf32>
    %102 = arith.addf %99, %101 : vector<64x128xf32>
    %c0_98 = arith.constant 0 : index
    %c0_99 = arith.constant 0 : index
    %103 = vector.load %arg27[%c0_98, %c0_99] : memref<96x128xf32, #tpu.memory_space<vmem>>, vector<64x128xf32>
    %c0_100 = arith.constant 0 : index
    %c0_101 = arith.constant 0 : index
    %c0_102 = arith.constant 0 : index
    %104 = vector.load %arg16[%c0_100, %c0_101, %c0_102] : memref<2x128x128xf32, #tpu.memory_space<vmem>>, vector<1x128x128xf32>
    %105 = vector.shape_cast %104 : vector<1x128x128xf32> to vector<128x128xf32>
    %cst_103 = arith.constant dense<0.000000e+00> : vector<64x128xf32>
    %106 = tpu.matmul %103, %105, %cst_103 {dimension_numbers = #tpu.dot_dimension_numbers<[1], [0], [0], [1], [0, 0, 1, 1], [], []>} : vector<64x128xf32>, vector<128x128xf32>, vector<64x128xf32> -> vector<64x128xf32>
    %107 = arith.addf %102, %106 : vector<64x128xf32>
    %c32_104 = arith.constant 32 : index
    %c0_105 = arith.constant 0 : index
    %108 = vector.load %arg27[%c32_104, %c0_105] : memref<96x128xf32, #tpu.memory_space<vmem>>, vector<64x128xf32>
    %c1_106 = arith.constant 1 : index
    %c0_107 = arith.constant 0 : index
    %c0_108 = arith.constant 0 : index
    %109 = vector.load %arg16[%c1_106, %c0_107, %c0_108] : memref<2x128x128xf32, #tpu.memory_space<vmem>>, vector<1x128x128xf32>
    %110 = vector.shape_cast %109 : vector<1x128x128xf32> to vector<128x128xf32>
    %cst_109 = arith.constant dense<0.000000e+00> : vector<64x128xf32>
    %111 = tpu.matmul %108, %110, %cst_109 {dimension_numbers = #tpu.dot_dimension_numbers<[1], [0], [0], [1], [0, 0, 1, 1], [], []>} : vector<64x128xf32>, vector<128x128xf32>, vector<64x128xf32> -> vector<64x128xf32>
    %112 = arith.addf %107, %111 : vector<64x128xf32>
    %cst_110 = arith.constant 0.000000e+00 : f32
    %113 = vector.broadcast %cst_110 : f32 to vector<64x128xf32>
    %114 = arith.maximumf %112, %113 : vector<64x128xf32>
    %c32_111 = arith.constant 32 : index
    %c0_112 = arith.constant 0 : index
    %115 = vector.load %arg28[%c32_111, %c0_112] : memref<96x128xf32, #tpu.memory_space<vmem>>, vector<64x128xf32>
    tpu.vector_store %arg28[%c32_111, %c0_112], %114 {strides = array<i32>} : memref<96x128xf32, #tpu.memory_space<vmem>>, vector<64x128xf32>,
    %cst_113 = arith.constant 0.000000e+00 : f32
    %116 = vector.broadcast %cst_113 : f32 to vector<64x128xf32>
    %c0_114 = arith.constant 0 : index
    %c0_115 = arith.constant 0 : index
    %117 = vector.load %arg19[%c0_114, %c0_115] : memref<1x128xf32, #tpu.memory_space<vmem>>, vector<1x128xf32>
    %118 = vector.broadcast %117 : vector<1x128xf32> to vector<64x128xf32>
    %119 = arith.addf %116, %118 : vector<64x128xf32>
    %c0_116 = arith.constant 0 : index
    %c0_117 = arith.constant 0 : index
    %120 = vector.load %arg28[%c0_116, %c0_117] : memref<96x128xf32, #tpu.memory_space<vmem>>, vector<64x128xf32>
    %c0_118 = arith.constant 0 : index
    %c0_119 = arith.constant 0 : index
    %c0_120 = arith.constant 0 : index
    %121 = vector.load %arg18[%c0_118, %c0_119, %c0_120] : memref<2x128x128xf32, #tpu.memory_space<vmem>>, vector<1x128x128xf32>
    %122 = vector.shape_cast %121 : vector<1x128x128xf32> to vector<128x128xf32>
    %cst_121 = arith.constant dense<0.000000e+00> : vector<64x128xf32>
    %123 = tpu.matmul %120, %122, %cst_121 {dimension_numbers = #tpu.dot_dimension_numbers<[1], [0], [0], [1], [0, 0, 1, 1], [], []>} : vector<64x128xf32>, vector<128x128xf32>, vector<64x128xf32> -> vector<64x128xf32>
    %124 = arith.addf %119, %123 : vector<64x128xf32>
    %c32_122 = arith.constant 32 : index
    %c0_123 = arith.constant 0 : index
    %125 = vector.load %arg28[%c32_122, %c0_123] : memref<96x128xf32, #tpu.memory_space<vmem>>, vector<64x128xf32>
    %c1_124 = arith.constant 1 : index
    %c0_125 = arith.constant 0 : index
    %c0_126 = arith.constant 0 : index
    %126 = vector.load %arg18[%c1_124, %c0_125, %c0_126] : memref<2x128x128xf32, #tpu.memory_space<vmem>>, vector<1x128x128xf32>
    %127 = vector.shape_cast %126 : vector<1x128x128xf32> to vector<128x128xf32>
    %cst_127 = arith.constant dense<0.000000e+00> : vector<64x128xf32>
    %128 = tpu.matmul %125, %127, %cst_127 {dimension_numbers = #tpu.dot_dimension_numbers<[1], [0], [0], [1], [0, 0, 1, 1], [], []>} : vector<64x128xf32>, vector<128x128xf32>, vector<64x128xf32> -> vector<64x128xf32>
    %129 = arith.addf %124, %128 : vector<64x128xf32>
    %cst_128 = arith.constant 0.000000e+00 : f32
    %130 = vector.broadcast %cst_128 : f32 to vector<64x128xf32>
    %131 = arith.maximumf %129, %130 : vector<64x128xf32>
    %c0_129 = arith.constant 0 : index
    %c0_130 = arith.constant 0 : index
    %132 = vector.load %arg22[%c0_129, %c0_130] : memref<1x128xf32, #tpu.memory_space<vmem>>, vector<1x128xf32>
    %133 = vector.broadcast %132 : vector<1x128xf32> to vector<64x128xf32>
    %134 = arith.mulf %131, %133 : vector<64x128xf32>
    %c0_131 = arith.constant 0 : index
    %c0_132 = arith.constant 0 : index
    %135 = vector.load %arg23[%c0_131, %c0_132] : memref<1x128xf32, #tpu.memory_space<vmem>>, vector<1x128xf32>
    %136 = vector.broadcast %135 : vector<1x128xf32> to vector<64x128xf32>
    %137 = arith.addf %134, %136 : vector<64x128xf32>
    %c32_133 = arith.constant 32 : index
    %c0_134 = arith.constant 0 : index
    %138 = vector.load %arg27[%c32_133, %c0_134] : memref<96x128xf32, #tpu.memory_space<vmem>>, vector<64x128xf32>
    %c0_135 = arith.constant 0 : index
    %c0_136 = arith.constant 0 : index
    %139 = vector.load %arg20[%c0_135, %c0_136] : memref<128x128xf32, #tpu.memory_space<vmem>>, vector<128x128xf32>
    %cst_137 = arith.constant dense<0.000000e+00> : vector<64x128xf32>
    %140 = tpu.matmul %138, %139, %cst_137 {dimension_numbers = #tpu.dot_dimension_numbers<[1], [0], [0], [1], [0, 0, 1, 1], [], []>} : vector<64x128xf32>, vector<128x128xf32>, vector<64x128xf32> -> vector<64x128xf32>
    %c0_138 = arith.constant 0 : index
    %c0_139 = arith.constant 0 : index
    %141 = vector.load %arg21[%c0_138, %c0_139] : memref<1x128xf32, #tpu.memory_space<vmem>>, vector<1x128xf32>
    %142 = vector.broadcast %141 : vector<1x128xf32> to vector<64x128xf32>
    %143 = arith.addf %140, %142 : vector<64x128xf32>
    %144 = arith.addf %143, %137 : vector<64x128xf32>
    %cst_140 = arith.constant 0.000000e+00 : f32
    %145 = vector.broadcast %cst_140 : f32 to vector<64x128xf32>
    %146 = arith.maximumf %144, %145 : vector<64x128xf32>
    %c32_141 = arith.constant 32 : index
    %c0_142 = arith.constant 0 : index
    %147 = vector.load %arg27[%c32_141, %c0_142] : memref<96x128xf32, #tpu.memory_space<vmem>>, vector<64x128xf32>
    tpu.vector_store %arg27[%c32_141, %c0_142], %146 {strides = array<i32>} : memref<96x128xf32, #tpu.memory_space<vmem>>, vector<64x128xf32>,
    %cst_143 = arith.constant 0.000000e+00 : f32
    %148 = vector.broadcast %cst_143 : f32 to vector<8x128xf32>
    %c0_144 = arith.constant 0 : index
    %c0_145 = arith.constant 0 : index
    %149 = vector.load %arg25[%c0_144, %c0_145] : memref<1x128xf32, #tpu.memory_space<vmem>>, vector<1x128xf32>
    %150 = vector.broadcast %149 : vector<1x128xf32> to vector<8x128xf32>
    %151 = arith.addf %148, %150 : vector<8x128xf32>
    %c0_i32 = arith.constant 0 : i32
    %c8_i32 = arith.constant 8 : i32
    %152 = arith.muli %c0_i32, %c8_i32 : i32
    %c32_i32 = arith.constant 32 : i32
    %153 = arith.addi %c32_i32, %152 : i32
    %154 = tpu.assume_multiple %153, 8 : i32
    %155 = arith.index_cast %154 : i32 to index
    %c0_146 = arith.constant 0 : index
    %156 = vector.load %arg27[%155, %c0_146] : memref<96x128xf32, #tpu.memory_space<vmem>>, vector<8x128xf32>
    %157 = arith.index_cast %c0_i32 : i32 to index
    %c0_147 = arith.constant 0 : index
    %c0_148 = arith.constant 0 : index
    %158 = vector.load %arg24[%157, %c0_147, %c0_148] : memref<8x128x128xf32, #tpu.memory_space<vmem>>, vector<1x128x128xf32>
    %159 = vector.shape_cast %158 : vector<1x128x128xf32> to vector<128x128xf32>
    %cst_149 = arith.constant dense<0.000000e+00> : vector<8x128xf32>
    %160 = tpu.matmul %156, %159, %cst_149 {dimension_numbers = #tpu.dot_dimension_numbers<[1], [0], [0], [1], [0, 0, 1, 1], [], []>} : vector<8x128xf32>, vector<128x128xf32>, vector<8x128xf32> -> vector<8x128xf32>
    %161 = arith.addf %151, %160 : vector<8x128xf32>
    %c1_i32 = arith.constant 1 : i32
    %c8_i32_150 = arith.constant 8 : i32
    %162 = arith.muli %c1_i32, %c8_i32_150 : i32
    %c32_i32_151 = arith.constant 32 : i32
    %163 = arith.addi %c32_i32_151, %162 : i32
    %164 = tpu.assume_multiple %163, 8 : i32
    %165 = arith.index_cast %164 : i32 to index
    %c0_152 = arith.constant 0 : index
    %166 = vector.load %arg27[%165, %c0_152] : memref<96x128xf32, #tpu.memory_space<vmem>>, vector<8x128xf32>
    %167 = arith.index_cast %c1_i32 : i32 to index
    %c0_153 = arith.constant 0 : index
    %c0_154 = arith.constant 0 : index
    %168 = vector.load %arg24[%167, %c0_153, %c0_154] : memref<8x128x128xf32, #tpu.memory_space<vmem>>, vector<1x128x128xf32>
    %169 = vector.shape_cast %168 : vector<1x128x128xf32> to vector<128x128xf32>
    %cst_155 = arith.constant dense<0.000000e+00> : vector<8x128xf32>
    %170 = tpu.matmul %166, %169, %cst_155 {dimension_numbers = #tpu.dot_dimension_numbers<[1], [0], [0], [1], [0, 0, 1, 1], [], []>} : vector<8x128xf32>, vector<128x128xf32>, vector<8x128xf32> -> vector<8x128xf32>
    %171 = arith.addf %161, %170 : vector<8x128xf32>
    %c2_i32 = arith.constant 2 : i32
    %c8_i32_156 = arith.constant 8 : i32
    %172 = arith.muli %c2_i32, %c8_i32_156 : i32
    %c32_i32_157 = arith.constant 32 : i32
    %173 = arith.addi %c32_i32_157, %172 : i32
    %174 = tpu.assume_multiple %173, 8 : i32
    %175 = arith.index_cast %174 : i32 to index
    %c0_158 = arith.constant 0 : index
    %176 = vector.load %arg27[%175, %c0_158] : memref<96x128xf32, #tpu.memory_space<vmem>>, vector<8x128xf32>
    %177 = arith.index_cast %c2_i32 : i32 to index
    %c0_159 = arith.constant 0 : index
    %c0_160 = arith.constant 0 : index
    %178 = vector.load %arg24[%177, %c0_159, %c0_160] : memref<8x128x128xf32, #tpu.memory_space<vmem>>, vector<1x128x128xf32>
    %179 = vector.shape_cast %178 : vector<1x128x128xf32> to vector<128x128xf32>
    %cst_161 = arith.constant dense<0.000000e+00> : vector<8x128xf32>
    %180 = tpu.matmul %176, %179, %cst_161 {dimension_numbers = #tpu.dot_dimension_numbers<[1], [0], [0], [1], [0, 0, 1, 1], [], []>} : vector<8x128xf32>, vector<128x128xf32>, vector<8x128xf32> -> vector<8x128xf32>
    %181 = arith.addf %171, %180 : vector<8x128xf32>
    %c3_i32 = arith.constant 3 : i32
    %c8_i32_162 = arith.constant 8 : i32
    %182 = arith.muli %c3_i32, %c8_i32_162 : i32
    %c32_i32_163 = arith.constant 32 : i32
    %183 = arith.addi %c32_i32_163, %182 : i32
    %184 = tpu.assume_multiple %183, 8 : i32
    %185 = arith.index_cast %184 : i32 to index
    %c0_164 = arith.constant 0 : index
    %186 = vector.load %arg27[%185, %c0_164] : memref<96x128xf32, #tpu.memory_space<vmem>>, vector<8x128xf32>
    %187 = arith.index_cast %c3_i32 : i32 to index
    %c0_165 = arith.constant 0 : index
    %c0_166 = arith.constant 0 : index
    %188 = vector.load %arg24[%187, %c0_165, %c0_166] : memref<8x128x128xf32, #tpu.memory_space<vmem>>, vector<1x128x128xf32>
    %189 = vector.shape_cast %188 : vector<1x128x128xf32> to vector<128x128xf32>
    %cst_167 = arith.constant dense<0.000000e+00> : vector<8x128xf32>
    %190 = tpu.matmul %186, %189, %cst_167 {dimension_numbers = #tpu.dot_dimension_numbers<[1], [0], [0], [1], [0, 0, 1, 1], [], []>} : vector<8x128xf32>, vector<128x128xf32>, vector<8x128xf32> -> vector<8x128xf32>
    %191 = arith.addf %181, %190 : vector<8x128xf32>
    %c4_i32 = arith.constant 4 : i32
    %c8_i32_168 = arith.constant 8 : i32
    %192 = arith.muli %c4_i32, %c8_i32_168 : i32
    %c32_i32_169 = arith.constant 32 : i32
    %193 = arith.addi %c32_i32_169, %192 : i32
    %194 = tpu.assume_multiple %193, 8 : i32
    %195 = arith.index_cast %194 : i32 to index
    %c0_170 = arith.constant 0 : index
    %196 = vector.load %arg27[%195, %c0_170] : memref<96x128xf32, #tpu.memory_space<vmem>>, vector<8x128xf32>
    %197 = arith.index_cast %c4_i32 : i32 to index
    %c0_171 = arith.constant 0 : index
    %c0_172 = arith.constant 0 : index
    %198 = vector.load %arg24[%197, %c0_171, %c0_172] : memref<8x128x128xf32, #tpu.memory_space<vmem>>, vector<1x128x128xf32>
    %199 = vector.shape_cast %198 : vector<1x128x128xf32> to vector<128x128xf32>
    %cst_173 = arith.constant dense<0.000000e+00> : vector<8x128xf32>
    %200 = tpu.matmul %196, %199, %cst_173 {dimension_numbers = #tpu.dot_dimension_numbers<[1], [0], [0], [1], [0, 0, 1, 1], [], []>} : vector<8x128xf32>, vector<128x128xf32>, vector<8x128xf32> -> vector<8x128xf32>
    %201 = arith.addf %191, %200 : vector<8x128xf32>
    %c5_i32 = arith.constant 5 : i32
    %c8_i32_174 = arith.constant 8 : i32
    %202 = arith.muli %c5_i32, %c8_i32_174 : i32
    %c32_i32_175 = arith.constant 32 : i32
    %203 = arith.addi %c32_i32_175, %202 : i32
    %204 = tpu.assume_multiple %203, 8 : i32
    %205 = arith.index_cast %204 : i32 to index
    %c0_176 = arith.constant 0 : index
    %206 = vector.load %arg27[%205, %c0_176] : memref<96x128xf32, #tpu.memory_space<vmem>>, vector<8x128xf32>
    %207 = arith.index_cast %c5_i32 : i32 to index
    %c0_177 = arith.constant 0 : index
    %c0_178 = arith.constant 0 : index
    %208 = vector.load %arg24[%207, %c0_177, %c0_178] : memref<8x128x128xf32, #tpu.memory_space<vmem>>, vector<1x128x128xf32>
    %209 = vector.shape_cast %208 : vector<1x128x128xf32> to vector<128x128xf32>
    %cst_179 = arith.constant dense<0.000000e+00> : vector<8x128xf32>
    %210 = tpu.matmul %206, %209, %cst_179 {dimension_numbers = #tpu.dot_dimension_numbers<[1], [0], [0], [1], [0, 0, 1, 1], [], []>} : vector<8x128xf32>, vector<128x128xf32>, vector<8x128xf32> -> vector<8x128xf32>
    %211 = arith.addf %201, %210 : vector<8x128xf32>
    %c6_i32 = arith.constant 6 : i32
    %c8_i32_180 = arith.constant 8 : i32
    %212 = arith.muli %c6_i32, %c8_i32_180 : i32
    %c32_i32_181 = arith.constant 32 : i32
    %213 = arith.addi %c32_i32_181, %212 : i32
    %214 = tpu.assume_multiple %213, 8 : i32
    %215 = arith.index_cast %214 : i32 to index
    %c0_182 = arith.constant 0 : index
    %216 = vector.load %arg27[%215, %c0_182] : memref<96x128xf32, #tpu.memory_space<vmem>>, vector<8x128xf32>
    %217 = arith.index_cast %c6_i32 : i32 to index
    %c0_183 = arith.constant 0 : index
    %c0_184 = arith.constant 0 : index
    %218 = vector.load %arg24[%217, %c0_183, %c0_184] : memref<8x128x128xf32, #tpu.memory_space<vmem>>, vector<1x128x128xf32>
    %219 = vector.shape_cast %218 : vector<1x128x128xf32> to vector<128x128xf32>
    %cst_185 = arith.constant dense<0.000000e+00> : vector<8x128xf32>
    %220 = tpu.matmul %216, %219, %cst_185 {dimension_numbers = #tpu.dot_dimension_numbers<[1], [0], [0], [1], [0, 0, 1, 1], [], []>} : vector<8x128xf32>, vector<128x128xf32>, vector<8x128xf32> -> vector<8x128xf32>
    %221 = arith.addf %211, %220 : vector<8x128xf32>
    %c7_i32 = arith.constant 7 : i32
    %c8_i32_186 = arith.constant 8 : i32
    %222 = arith.muli %c7_i32, %c8_i32_186 : i32
    %c32_i32_187 = arith.constant 32 : i32
    %223 = arith.addi %c32_i32_187, %222 : i32
    %224 = tpu.assume_multiple %223, 8 : i32
    %225 = arith.index_cast %224 : i32 to index
    %c0_188 = arith.constant 0 : index
    %226 = vector.load %arg27[%225, %c0_188] : memref<96x128xf32, #tpu.memory_space<vmem>>, vector<8x128xf32>
    %227 = arith.index_cast %c7_i32 : i32 to index
    %c0_189 = arith.constant 0 : index
    %c0_190 = arith.constant 0 : index
    %228 = vector.load %arg24[%227, %c0_189, %c0_190] : memref<8x128x128xf32, #tpu.memory_space<vmem>>, vector<1x128x128xf32>
    %229 = vector.shape_cast %228 : vector<1x128x128xf32> to vector<128x128xf32>
    %cst_191 = arith.constant dense<0.000000e+00> : vector<8x128xf32>
    %230 = tpu.matmul %226, %229, %cst_191 {dimension_numbers = #tpu.dot_dimension_numbers<[1], [0], [0], [1], [0, 0, 1, 1], [], []>} : vector<8x128xf32>, vector<128x128xf32>, vector<8x128xf32> -> vector<8x128xf32>
    %231 = arith.addf %221, %230 : vector<8x128xf32>
    %c8_i32_192 = arith.constant 8 : i32
    %cst_193 = arith.constant 0.000000e+00 : f32
    %232 = vector.broadcast %cst_193 : f32 to vector<8x128xf32>
    %233 = arith.maximumf %231, %232 : vector<8x128xf32>
    %c0_194 = arith.constant 0 : index
    %c0_195 = arith.constant 0 : index
    %234 = vector.load %arg26[%c0_194, %c0_195] : memref<8x128xf32, #tpu.memory_space<vmem>>, vector<8x128xf32>
    tpu.vector_store %arg26[%c0_194, %c0_195], %233 {strides = array<i32>} : memref<8x128xf32, #tpu.memory_space<vmem>>, vector<8x128xf32>,
    return
  }
  func.func @transform_0(%arg0: i32) -> (i32, i32, i32) {
    %c0_i32 = arith.constant 0 : i32
    %c0_i32_0 = arith.constant 0 : i32
    %c0_i32_1 = arith.constant 0 : i32
    return %arg0, %c0_i32, %c0_i32_0 : i32, i32, i32
  }
  func.func @transform_1(%arg0: i32) -> (i32, i32, i32) {
    %c0_i32 = arith.constant 0 : i32
    %c0_i32_0 = arith.constant 0 : i32
    %c0_i32_1 = arith.constant 0 : i32
    %c0_i32_2 = arith.constant 0 : i32
    return %c0_i32, %c0_i32_0, %c0_i32_1 : i32, i32, i32
  }
  func.func @transform_2(%arg0: i32) -> (i32, i32) {
    %c0_i32 = arith.constant 0 : i32
    %c0_i32_0 = arith.constant 0 : i32
    %c0_i32_1 = arith.constant 0 : i32
    return %c0_i32, %c0_i32_0 : i32, i32
  }
  func.func @transform_3(%arg0: i32) -> (i32, i32, i32) {
    %c0_i32 = arith.constant 0 : i32
    %c0_i32_0 = arith.constant 0 : i32
    %c0_i32_1 = arith.constant 0 : i32
    %c0_i32_2 = arith.constant 0 : i32
    return %c0_i32, %c0_i32_0, %c0_i32_1 : i32, i32, i32
  }
  func.func @transform_4(%arg0: i32) -> (i32, i32) {
    %c0_i32 = arith.constant 0 : i32
    %c0_i32_0 = arith.constant 0 : i32
    %c0_i32_1 = arith.constant 0 : i32
    return %c0_i32, %c0_i32_0 : i32, i32
  }
  func.func @transform_5(%arg0: i32) -> (i32, i32) {
    %c0_i32 = arith.constant 0 : i32
    %c0_i32_0 = arith.constant 0 : i32
    %c0_i32_1 = arith.constant 0 : i32
    return %c0_i32, %c0_i32_0 : i32, i32
  }
  func.func @transform_6(%arg0: i32) -> (i32, i32) {
    %c0_i32 = arith.constant 0 : i32
    %c0_i32_0 = arith.constant 0 : i32
    %c0_i32_1 = arith.constant 0 : i32
    return %c0_i32, %c0_i32_0 : i32, i32
  }
  func.func @transform_7(%arg0: i32) -> (i32, i32) {
    %c0_i32 = arith.constant 0 : i32
    %c0_i32_0 = arith.constant 0 : i32
    %c0_i32_1 = arith.constant 0 : i32
    return %c0_i32, %c0_i32_0 : i32, i32
  }
  func.func @transform_8(%arg0: i32) -> (i32, i32) {
    %c0_i32 = arith.constant 0 : i32
    %c0_i32_0 = arith.constant 0 : i32
    %c0_i32_1 = arith.constant 0 : i32
    return %c0_i32, %c0_i32_0 : i32, i32
  }
  func.func @transform_9(%arg0: i32) -> (i32, i32, i32) {
    %c0_i32 = arith.constant 0 : i32
    %c0_i32_0 = arith.constant 0 : i32
    %c0_i32_1 = arith.constant 0 : i32
    %c0_i32_2 = arith.constant 0 : i32
    return %c0_i32, %c0_i32_0, %c0_i32_1 : i32, i32, i32
  }
  func.func @transform_10(%arg0: i32) -> (i32, i32) {
    %c0_i32 = arith.constant 0 : i32
    %c0_i32_0 = arith.constant 0 : i32
    %c0_i32_1 = arith.constant 0 : i32
    return %c0_i32, %c0_i32_0 : i32, i32
  }
  func.func @transform_11(%arg0: i32) -> (i32, i32, i32) {
    %c0_i32 = arith.constant 0 : i32
    %c0_i32_0 = arith.constant 0 : i32
    %c0_i32_1 = arith.constant 0 : i32
    %c0_i32_2 = arith.constant 0 : i32
    return %c0_i32, %c0_i32_0, %c0_i32_1 : i32, i32, i32
  }
  func.func @transform_12(%arg0: i32) -> (i32, i32) {
    %c0_i32 = arith.constant 0 : i32
    %c0_i32_0 = arith.constant 0 : i32
    %c0_i32_1 = arith.constant 0 : i32
    return %c0_i32, %c0_i32_0 : i32, i32
  }
  func.func @transform_13(%arg0: i32) -> (i32, i32) {
    %c0_i32 = arith.constant 0 : i32
    %c0_i32_0 = arith.constant 0 : i32
    %c0_i32_1 = arith.constant 0 : i32
    return %c0_i32, %c0_i32_0 : i32, i32
  }
  func.func @transform_14(%arg0: i32) -> (i32, i32) {
    %c0_i32 = arith.constant 0 : i32
    %c0_i32_0 = arith.constant 0 : i32
    %c0_i32_1 = arith.constant 0 : i32
    return %c0_i32, %c0_i32_0 : i32, i32
  }
  func.func @transform_15(%arg0: i32) -> (i32, i32, i32) {
    %c0_i32 = arith.constant 0 : i32
    %c0_i32_0 = arith.constant 0 : i32
    %c0_i32_1 = arith.constant 0 : i32
    %c0_i32_2 = arith.constant 0 : i32
    return %c0_i32, %c0_i32_0, %c0_i32_1 : i32, i32, i32
  }
  func.func @transform_16(%arg0: i32) -> (i32, i32) {
    %c0_i32 = arith.constant 0 : i32
    %c0_i32_0 = arith.constant 0 : i32
    %c0_i32_1 = arith.constant 0 : i32
    return %c0_i32, %c0_i32_0 : i32, i32
  }
  func.func @transform_17(%arg0: i32) -> (i32, i32, i32) {
    %c0_i32 = arith.constant 0 : i32
    %c0_i32_0 = arith.constant 0 : i32
    %c0_i32_1 = arith.constant 0 : i32
    %c0_i32_2 = arith.constant 0 : i32
    return %c0_i32, %c0_i32_0, %c0_i32_1 : i32, i32, i32
  }
  func.func @transform_18(%arg0: i32) -> (i32, i32) {
    %c0_i32 = arith.constant 0 : i32
    %c0_i32_0 = arith.constant 0 : i32
    %c0_i32_1 = arith.constant 0 : i32
    return %c0_i32, %c0_i32_0 : i32, i32
  }
  func.func @transform_19(%arg0: i32) -> (i32, i32) {
    %c0_i32 = arith.constant 0 : i32
    %c0_i32_0 = arith.constant 0 : i32
    %c0_i32_1 = arith.constant 0 : i32
    return %c0_i32, %c0_i32_0 : i32, i32
  }
  func.func @transform_20(%arg0: i32) -> (i32, i32) {
    %c0_i32 = arith.constant 0 : i32
    %c0_i32_0 = arith.constant 0 : i32
    %c0_i32_1 = arith.constant 0 : i32
    return %c0_i32, %c0_i32_0 : i32, i32
  }
  func.func @transform_21(%arg0: i32) -> (i32, i32) {
    %c0_i32 = arith.constant 0 : i32
    %c0_i32_0 = arith.constant 0 : i32
    %c0_i32_1 = arith.constant 0 : i32
    return %c0_i32, %c0_i32_0 : i32, i32
  }
  func.func @transform_22(%arg0: i32) -> (i32, i32) {
    %c0_i32 = arith.constant 0 : i32
    %c0_i32_0 = arith.constant 0 : i32
    %c0_i32_1 = arith.constant 0 : i32
    return %c0_i32, %c0_i32_0 : i32, i32
  }
  func.func @transform_23(%arg0: i32) -> (i32, i32, i32) {
    %c0_i32 = arith.constant 0 : i32
    %c0_i32_0 = arith.constant 0 : i32
    %c0_i32_1 = arith.constant 0 : i32
    %c0_i32_2 = arith.constant 0 : i32
    return %c0_i32, %c0_i32_0, %c0_i32_1 : i32, i32, i32
  }
  func.func @transform_24(%arg0: i32) -> (i32, i32) {
    %c0_i32 = arith.constant 0 : i32
    %c0_i32_0 = arith.constant 0 : i32
    %c0_i32_1 = arith.constant 0 : i32
    return %c0_i32, %c0_i32_0 : i32, i32
  }
  func.func @transform_25(%arg0: i32) -> (i32, i32) {
    %c0_i32 = arith.constant 0 : i32
    %c0_i32_0 = arith.constant 0 : i32
    return %arg0, %c0_i32 : i32, i32
  }
}

</mosaic_0001>

<llo_original>
// kernel: tpu_custom_call.1
$region0: #{tpu_custom_call.1}
  #allocation0 [shape = 'u32[]', space=smem, size = 0x4, offset = 0x4, fixed_abs, tag = 'smem constant byte address 0x4 - core index']
  #allocation1 [shape = 'u32[144,128]{1,0:T(1,128)}', space=vmem, size = 0x12000, scoped, tag = 'internal scratch']
  #allocation2 [shape = 'f32[96,128]{1,0:T(8,128)}', space=vmem, size = 0xc000, scoped, tag = 'scratch operand']
  #allocation3 [shape = 'f32[96,128]{1,0:T(8,128)}', space=vmem, size = 0xc000, scoped, tag = 'scratch operand']
  %s0 = inlined_call_operand.hbm [shape: f32[2,64,128], index: 0, kind: input, shape index: {}]
  %s1 = inlined_call_operand.hbm [shape: f32[2,128,128], index: 1, kind: input, shape index: {}]
  %s2 = inlined_call_operand.vmem [shape: f32[1,128], index: 2, kind: input, shape index: {}]
  %s3 = inlined_call_operand.hbm [shape: f32[2,128,128], index: 3, kind: input, shape index: {}]
  %s4 = inlined_call_operand.vmem [shape: f32[1,128], index: 4, kind: input, shape index: {}]
  %s5 = inlined_call_operand.hbm [shape: f32[128,128], index: 5, kind: input, shape index: {}]
  %s6 = inlined_call_operand.vmem [shape: f32[1,128], index: 6, kind: input, shape index: {}]
  %s7 = inlined_call_operand.vmem [shape: f32[1,128], index: 7, kind: input, shape index: {}]
  %s8 = inlined_call_operand.vmem [shape: f32[1,128], index: 8, kind: input, shape index: {}]
  %s9 = inlined_call_operand.hbm [shape: f32[2,128,128], index: 9, kind: input, shape index: {}]
  %s10 = inlined_call_operand.vmem [shape: f32[1,128], index: 10, kind: input, shape index: {}]
  %s11 = inlined_call_operand.hbm [shape: f32[2,128,128], index: 11, kind: input, shape index: {}]
  %s12 = inlined_call_operand.vmem [shape: f32[1,128], index: 12, kind: input, shape index: {}]
  %s13 = inlined_call_operand.vmem [shape: f32[1,128], index: 13, kind: input, shape index: {}]
  %s14 = inlined_call_operand.vmem [shape: f32[1,128], index: 14, kind: input, shape index: {}]
  %s15 = inlined_call_operand.hbm [shape: f32[2,128,128], index: 15, kind: input, shape index: {}]
  %s16 = inlined_call_operand.vmem [shape: f32[1,128], index: 16, kind: input, shape index: {}]
  %s17 = inlined_call_operand.hbm [shape: f32[2,128,128], index: 17, kind: input, shape index: {}]
  %s18 = inlined_call_operand.vmem [shape: f32[1,128], index: 18, kind: input, shape index: {}]
  %s19 = inlined_call_operand.hbm [shape: f32[128,128], index: 19, kind: input, shape index: {}]
  %s20 = inlined_call_operand.vmem [shape: f32[1,128], index: 20, kind: input, shape index: {}]
  %s21 = inlined_call_operand.vmem [shape: f32[1,128], index: 21, kind: input, shape index: {}]
  %s22 = inlined_call_operand.vmem [shape: f32[1,128], index: 22, kind: input, shape index: {}]
  %s23 = inlined_call_operand.hbm [shape: f32[8,128,128], index: 23, kind: input, shape index: {}]
  %s24 = inlined_call_operand.vmem [shape: f32[1,128], index: 24, kind: input, shape index: {}]
  %s25 = inlined_call_operand.hbm [shape: f32[16,128], index: 25, kind: output, shape index: {}]
  %s26 = sld [smem:[#allocation0]]
  $region173: #{tpu_custom_call.1} parent=0
    _
  %s28 = ssub.s32 1, %s26
  %s29 = scalar_select 0, %s28, %s26
  $region1: #{tpu_custom_call.1} parent=0
    #allocation4 [shape = 'u8[65536]{0}', space=vmem, size = 0x10000, scoped, tag = 'input window, operand 0']
    #allocation5 [shape = 's32[2]{0}', space=sflag, size = 0x8, scoped, tag = 'scoped memory for tpu_custom_call.1']
    #allocation6 [shape = 's32[2]{0}', space=sflag, size = 0x8, scoped, tag = 'scoped memory for tpu_custom_call.1']
    #allocation7 [shape = 'u8[131072]{0}', space=vmem, size = 0x20000, scoped, tag = 'input window, operand 1, single buffered']
    #allocation8 [shape = 's32[1]{0}', space=sflag, size = 0x4, scoped, tag = 'scoped memory for tpu_custom_call.1']
    #allocation9 [shape = 'u8[131072]{0}', space=vmem, size = 0x20000, scoped, tag = 'input window, operand 3, single buffered']
    #allocation10 [shape = 'u8[65536]{0}', space=vmem, size = 0x10000, scoped, tag = 'input window, operand 5, single buffered']
    #allocation11 [shape = 's32[1]{0}', space=sflag, size = 0x4, scoped, tag = 'scoped memory for tpu_custom_call.1']
    #allocation12 [shape = 'u8[131072]{0}', space=vmem, size = 0x20000, scoped, tag = 'input window, operand 9, single buffered']
    #allocation13 [shape = 'u8[131072]{0}', space=vmem, size = 0x20000, scoped, tag = 'input window, operand 11, single buffered']
    #allocation14 [shape = 's32[1]{0}', space=sflag, size = 0x4, scoped, tag = 'scoped memory for tpu_custom_call.1']
    #allocation15 [shape = 'u8[131072]{0}', space=vmem, size = 0x20000, scoped, tag = 'input window, operand 15, single buffered']
    #allocation16 [shape = 'u8[131072]{0}', space=vmem, size = 0x20000, scoped, tag = 'input window, operand 17, single buffered']
    #allocation17 [shape = 's32[1]{0}', space=sflag, size = 0x4, scoped, tag = 'scoped memory for tpu_custom_call.1']
    #allocation18 [shape = 'u8[65536]{0}', space=vmem, size = 0x10000, scoped, tag = 'input window, operand 19, single buffered']
    #allocation19 [shape = 'u8[524288]{0}', space=vmem, size = 0x80000, scoped, tag = 'input window, operand 23, single buffered']
    #allocation20 [shape = 's32[1]{0}', space=sflag, size = 0x4, scoped, tag = 'scoped memory for tpu_custom_call.1']
    #allocation21 [shape = 'u8[8192]{0}', space=vmem, size = 0x2000, scoped, tag = 'output window, operand 0']
    %30 = vsyncpa [#allocation5], 0
    %s31 = scalar_lea.sflag [#allocation5], 1
    %32 = vsyncpa %s31, 0
    %33 = vsyncpa [#allocation8], 0
    %34 = vsyncpa [#allocation11], 0
    %35 = vsyncpa [#allocation14], 0
    %36 = vsyncpa [#allocation17], 0
    %37 = vsyncpa [#allocation20], 0
    %38 = vsyncpa [#allocation6], 0
    %s39 = scalar_lea.sflag [#allocation6], 1
    %40 = vsyncpa %s39, 0
    loop: start=0, step=1, limit=4
    $region2: #{tpu_custom_call.1} parent=1 // loop_pre_header
      _
    $region3: #{tpu_custom_call.1} parent=1 // loop_header
      %s42 = sphi 0, %s46
      %p43 = scmp.ge.s32.totalorder %s42, 4
      %s52 = sphi 0, %s54
      %s55 = sphi 0, %s52
      %s56 = sphi 0, %s55
      %s72 = sphi 0, %s56
      %s76 = sphi 0, %s76
      %s78 = sphi 0, %s76
      %s79 = sphi 0, %s78
      %s93 = sphi 0, %s79
      %s97 = sphi 0, %s97
      %s99 = sphi 0, %s97
      %s100 = sphi 0, %s99
      %s114 = sphi 0, %s100
      %s118 = sphi 0, %s118
      %s120 = sphi 0, %s118
      %s121 = sphi 0, %s120
      %s135 = sphi 0, %s121
      %s139 = sphi 0, %s139
      %s141 = sphi 0, %s139
      %s142 = sphi 0, %s141
      %s156 = sphi 0, %s142
      %s160 = sphi 0, %s160
      %s162 = sphi 0, %s160
      %s163 = sphi 0, %s162
      %s177 = sphi 0, %s163
      %s181 = sphi 0, %s181
      %s183 = sphi 0, %s181
      %s184 = sphi 0, %s183
      %s198 = sphi 0, %s184
      %s202 = sphi 0, %s202
      %s204 = sphi 0, %s202
      %s205 = sphi 0, %s204
      %s219 = sphi 0, %s205
      %s223 = sphi 0, %s223
      %s225 = sphi 0, %s223
      %s226 = sphi 0, %s225
      %s240 = sphi 0, %s226
      %s244 = sphi 0, %s244
      %s246 = sphi 0, %s244
      %s247 = sphi 0, %s246
      %s261 = sphi 0, %s247
      %s265 = sphi 0, %s265
      %s267 = sphi 0, %s265
      %s268 = sphi 0, %s267
      %s282 = sphi 0, %s268
      %s286 = sphi 0, %s286
      %s288 = sphi 0, %s286
      %s289 = sphi 0, %s288
      %s303 = sphi 0, %s289
      %s307 = sphi 0, %s307
      %s309 = sphi 0, %s307
      %s310 = sphi 0, %s309
      %s324 = sphi 0, %s310
      %s328 = sphi 0, %s328
      %s330 = sphi 0, %s328
      %s331 = sphi 0, %s330
      %s345 = sphi 0, %s331
      %s349 = sphi 0, %s349
      %s351 = sphi 0, %s349
      %s352 = sphi 0, %s351
      %s366 = sphi 0, %s352
      %s370 = sphi 0, %s370
      %s372 = sphi 0, %s370
      %s373 = sphi 0, %s372
      %s387 = sphi 0, %s373
      %s391 = sphi 0, %s391
      %s393 = sphi 0, %s391
      %s394 = sphi 0, %s393
      %s408 = sphi 0, %s394
      %s412 = sphi 0, %s412
      %s414 = sphi 0, %s412
      %s415 = sphi 0, %s414
      %s429 = sphi 0, %s415
      %s433 = sphi 0, %s433
      %s435 = sphi 0, %s433
      %s436 = sphi 0, %s435
      %s450 = sphi 0, %s436
      %s454 = sphi 0, %s454
      %s456 = sphi 0, %s454
      %s457 = sphi 0, %s456
      %s471 = sphi 0, %s457
      %s475 = sphi 0, %s475
      %s477 = sphi 0, %s475
      %s478 = sphi 0, %s477
      %s492 = sphi 0, %s478
      %s496 = sphi 0, %s496
      %s498 = sphi 0, %s496
      %s499 = sphi 0, %s498
      %s513 = sphi 0, %s499
      %s517 = sphi 0, %s517
      %s519 = sphi 0, %s517
      %s520 = sphi 0, %s519
      %s534 = sphi 0, %s520
      %s538 = sphi 0, %s538
      %s540 = sphi 0, %s538
      %s541 = sphi 0, %s540
      %s555 = sphi 0, %s541
      %s559 = sphi 0, %s559
      %s561 = sphi 0, %s559
      %s562 = sphi 0, %s561
      %s576 = sphi 0, %s562
      %s582 = sphi 0, %s584
      %s585 = sphi 0, %s582
      %s586 = sphi 0, %s585
      %s602 = sphi 0, %s586
    $region4: #{tpu_custom_call.1} parent=1 // loop_header_branch
      %45 = sbr.rel (%p43) target = $region8
    $region5: #{tpu_custom_call.1} parent=1 // loop_body
      %s47 = ssub.s32 %s42, 1
      %s48 = ssub.s32 %s42, 2
      %s49 = sadd.s32 %s42, 1
      %s50 = ssub.s32 %s42, %s49
      %p51 = scmp.eq.s32.totalorder %s50, 0
      %s53 = sadd.s32 %s52, 1
      %s54 = scalar_select %p51, %s52, %s53
      %p57 = pneg %p51
      %p58 = scmp.eq.s32.totalorder %s42, 1
      %p59 = por %p57, %p58
      %p60 = scmp.ne.s32.totalorder %s52, %s55
      %p61 = scmp.eq.s32.totalorder %s42, 0
      %p62 = por %p60, %p61
      %p63 = scmp.ne.s32.totalorder %s52, %s55
      %p64 = scmp.eq.s32.totalorder %s47, 1
      %p65 = por %p63, %p64
      %p66 = scmp.ne.s32.totalorder %s55, %s56
      %p67 = scmp.eq.s32.totalorder %s47, 0
      %p68 = por %p66, %p67
      %p69 = scmp.ne.s32.totalorder %s55, %s56
      %p70 = scmp.eq.s32.totalorder %s48, 1
      %p71 = por %p69, %p70
      %p73 = scmp.ne.s32.totalorder %s56, %s72
      %p74 = scmp.eq.s32.totalorder %s48, 0
      %p75 = por %p73, %p74
      %s77 = sadd.s32 %s76, 1
      %p80 = scmp.eq.s32.totalorder %s42, 1
      %p81 = scmp.ne.s32.totalorder %s76, %s78
      %p82 = scmp.eq.s32.totalorder %s42, 0
      %p83 = por %p81, %p82
      %p84 = scmp.ne.s32.totalorder %s76, %s78
      %p85 = scmp.eq.s32.totalorder %s47, 1
      %p86 = por %p84, %p85
      %p87 = scmp.ne.s32.totalorder %s78, %s79
      %p88 = scmp.eq.s32.totalorder %s47, 0
      %p89 = por %p87, %p88
      %p90 = scmp.ne.s32.totalorder %s78, %s79
      %p91 = scmp.eq.s32.totalorder %s48, 1
      %p92 = por %p90, %p91
      %p94 = scmp.ne.s32.totalorder %s79, %s93
      %p95 = scmp.eq.s32.totalorder %s48, 0
      %p96 = por %p94, %p95
      %s98 = sadd.s32 %s97, 1
      %p101 = scmp.eq.s32.totalorder %s42, 1
      %p102 = scmp.ne.s32.totalorder %s97, %s99
      %p103 = scmp.eq.s32.totalorder %s42, 0
      %p104 = por %p102, %p103
      %p105 = scmp.ne.s32.totalorder %s97, %s99
      %p106 = scmp.eq.s32.totalorder %s47, 1
      %p107 = por %p105, %p106
      %p108 = scmp.ne.s32.totalorder %s99, %s100
      %p109 = scmp.eq.s32.totalorder %s47, 0
      %p110 = por %p108, %p109
      %p111 = scmp.ne.s32.totalorder %s99, %s100
      %p112 = scmp.eq.s32.totalorder %s48, 1
      %p113 = por %p111, %p112
      %p115 = scmp.ne.s32.totalorder %s100, %s114
      %p116 = scmp.eq.s32.totalorder %s48, 0
      %p117 = por %p115, %p116
      %s119 = sadd.s32 %s118, 1
      %p122 = scmp.eq.s32.totalorder %s42, 1
      %p123 = scmp.ne.s32.totalorder %s118, %s120
      %p124 = scmp.eq.s32.totalorder %s42, 0
      %p125 = por %p123, %p124
      %p126 = scmp.ne.s32.totalorder %s118, %s120
      %p127 = scmp.eq.s32.totalorder %s47, 1
      %p128 = por %p126, %p127
      %p129 = scmp.ne.s32.totalorder %s120, %s121
      %p130 = scmp.eq.s32.totalorder %s47, 0
      %p131 = por %p129, %p130
      %p132 = scmp.ne.s32.totalorder %s120, %s121
      %p133 = scmp.eq.s32.totalorder %s48, 1
      %p134 = por %p132, %p133
      %p136 = scmp.ne.s32.totalorder %s121, %s135
      %p137 = scmp.eq.s32.totalorder %s48, 0
      %p138 = por %p136, %p137
      %s140 = sadd.s32 %s139, 1
      %p143 = scmp.eq.s32.totalorder %s42, 1
      %p144 = scmp.ne.s32.totalorder %s139, %s141
      %p145 = scmp.eq.s32.totalorder %s42, 0
      %p146 = por %p144, %p145
      %p147 = scmp.ne.s32.totalorder %s139, %s141
      %p148 = scmp.eq.s32.totalorder %s47, 1
      %p149 = por %p147, %p148
      %p150 = scmp.ne.s32.totalorder %s141, %s142
      %p151 = scmp.eq.s32.totalorder %s47, 0
      %p152 = por %p150, %p151
      %p153 = scmp.ne.s32.totalorder %s141, %s142
      %p154 = scmp.eq.s32.totalorder %s48, 1
      %p155 = por %p153, %p154
      %p157 = scmp.ne.s32.totalorder %s142, %s156
      %p158 = scmp.eq.s32.totalorder %s48, 0
      %p159 = por %p157, %p158
      %s161 = sadd.s32 %s160, 1
      %p164 = scmp.eq.s32.totalorder %s42, 1
      %p165 = scmp.ne.s32.totalorder %s160, %s162
      %p166 = scmp.eq.s32.totalorder %s42, 0
      %p167 = por %p165, %p166
      %p168 = scmp.ne.s32.totalorder %s160, %s162
      %p169 = scmp.eq.s32.totalorder %s47, 1
      %p170 = por %p168, %p169
      %p171 = scmp.ne.s32.totalorder %s162, %s163
      %p172 = scmp.eq.s32.totalorder %s47, 0
      %p173 = por %p171, %p172
      %p174 = scmp.ne.s32.totalorder %s162, %s163
      %p175 = scmp.eq.s32.totalorder %s48, 1
      %p176 = por %p174, %p175
      %p178 = scmp.ne.s32.totalorder %s163, %s177
      %p179 = scmp.eq.s32.totalorder %s48, 0
      %p180 = por %p178, %p179
      %s182 = sadd.s32 %s181, 1
      %p185 = scmp.eq.s32.totalorder %s42, 1
      %p186 = scmp.ne.s32.totalorder %s181, %s183
      %p187 = scmp.eq.s32.totalorder %s42, 0
      %p188 = por %p186, %p187
      %p189 = scmp.ne.s32.totalorder %s181, %s183
      %p190 = scmp.eq.s32.totalorder %s47, 1
      %p191 = por %p189, %p190
      %p192 = scmp.ne.s32.totalorder %s183, %s184
      %p193 = scmp.eq.s32.totalorder %s47, 0
      %p194 = por %p192, %p193
      %p195 = scmp.ne.s32.totalorder %s183, %s184
      %p196 = scmp.eq.s32.totalorder %s48, 1
      %p197 = por %p195, %p196
      %p199 = scmp.ne.s32.totalorder %s184, %s198
      %p200 = scmp.eq.s32.totalorder %s48, 0
      %p201 = por %p199, %p200
      %s203 = sadd.s32 %s202, 1
      %p206 = scmp.eq.s32.totalorder %s42, 1
      %p207 = scmp.ne.s32.totalorder %s202, %s204
      %p208 = scmp.eq.s32.totalorder %s42, 0
      %p209 = por %p207, %p208
      %p210 = scmp.ne.s32.totalorder %s202, %s204
      %p211 = scmp.eq.s32.totalorder %s47, 1
      %p212 = por %p210, %p211
      %p213 = scmp.ne.s32.totalorder %s204, %s205
      %p214 = scmp.eq.s32.totalorder %s47, 0
      %p215 = por %p213, %p214
      %p216 = scmp.ne.s32.totalorder %s204, %s205
      %p217 = scmp.eq.s32.totalorder %s48, 1
      %p218 = por %p216, %p217
      %p220 = scmp.ne.s32.totalorder %s205, %s219
      %p221 = scmp.eq.s32.totalorder %s48, 0
      %p222 = por %p220, %p221
      %s224 = sadd.s32 %s223, 1
      %p227 = scmp.eq.s32.totalorder %s42, 1
      %p228 = scmp.ne.s32.totalorder %s223, %s225
      %p229 = scmp.eq.s32.totalorder %s42, 0
      %p230 = por %p228, %p229
      %p231 = scmp.ne.s32.totalorder %s223, %s225
      %p232 = scmp.eq.s32.totalorder %s47, 1
      %p233 = por %p231, %p232
      %p234 = scmp.ne.s32.totalorder %s225, %s226
      %p235 = scmp.eq.s32.totalorder %s47, 0
      %p236 = por %p234, %p235
      %p237 = scmp.ne.s32.totalorder %s225, %s226
      %p238 = scmp.eq.s32.totalorder %s48, 1
      %p239 = por %p237, %p238
      %p241 = scmp.ne.s32.totalorder %s226, %s240
      %p242 = scmp.eq.s32.totalorder %s48, 0
      %p243 = por %p241, %p242
      %s245 = sadd.s32 %s244, 1
      %p248 = scmp.eq.s32.totalorder %s42, 1
      %p249 = scmp.ne.s32.totalorder %s244, %s246
      %p250 = scmp.eq.s32.totalorder %s42, 0
      %p251 = por %p249, %p250
      %p252 = scmp.ne.s32.totalorder %s244, %s246
      %p253 = scmp.eq.s32.totalorder %s47, 1
      %p254 = por %p252, %p253
      %p255 = scmp.ne.s32.totalorder %s246, %s247
      %p256 = scmp.eq.s32.totalorder %s47, 0
      %p257 = por %p255, %p256
      %p258 = scmp.ne.s32.totalorder %s246, %s247
      %p259 = scmp.eq.s32.totalorder %s48, 1
      %p260 = por %p258, %p259
      %p262 = scmp.ne.s32.totalorder %s247, %s261
      %p263 = scmp.eq.s32.totalorder %s48, 0
      %p264 = por %p262, %p263
      %s266 = sadd.s32 %s265, 1
      %p269 = scmp.eq.s32.totalorder %s42, 1
      %p270 = scmp.ne.s32.totalorder %s265, %s267
      %p271 = scmp.eq.s32.totalorder %s42, 0
      %p272 = por %p270, %p271
      %p273 = scmp.ne.s32.totalorder %s265, %s267
      %p274 = scmp.eq.s32.totalorder %s47, 1
      %p275 = por %p273, %p274
      %p276 = scmp.ne.s32.totalorder %s267, %s268
      %p277 = scmp.eq.s32.totalorder %s47, 0
      %p278 = por %p276, %p277
      %p279 = scmp.ne.s32.totalorder %s267, %s268
      %p280 = scmp.eq.s32.totalorder %s48, 1
      %p281 = por %p279, %p280
      %p283 = scmp.ne.s32.totalorder %s268, %s282
      %p284 = scmp.eq.s32.totalorder %s48, 0
      %p285 = por %p283, %p284
      %s287 = sadd.s32 %s286, 1
      %p290 = scmp.eq.s32.totalorder %s42, 1
      %p291 = scmp.ne.s32.totalorder %s286, %s288
      %p292 = scmp.eq.s32.totalorder %s42, 0
      %p293 = por %p291, %p292
      %p294 = scmp.ne.s32.totalorder %s286, %s288
      %p295 = scmp.eq.s32.totalorder %s47, 1
      %p296 = por %p294, %p295
      %p297 = scmp.ne.s32.totalorder %s288, %s289
      %p298 = scmp.eq.s32.totalorder %s47, 0
      %p299 = por %p297, %p298
      %p300 = scmp.ne.s32.totalorder %s288, %s289
      %p301 = scmp.eq.s32.totalorder %s48, 1
      %p302 = por %p300, %p301
      %p304 = scmp.ne.s32.totalorder %s289, %s303
      %p305 = scmp.eq.s32.totalorder %s48, 0
      %p306 = por %p304, %p305
      %s308 = sadd.s32 %s307, 1
      %p311 = scmp.eq.s32.totalorder %s42, 1
      %p312 = scmp.ne.s32.totalorder %s307, %s309
      %p313 = scmp.eq.s32.totalorder %s42, 0
      %p314 = por %p312, %p313
      %p315 = scmp.ne.s32.totalorder %s307, %s309
      %p316 = scmp.eq.s32.totalorder %s47, 1
      %p317 = por %p315, %p316
      %p318 = scmp.ne.s32.totalorder %s309, %s310
      %p319 = scmp.eq.s32.totalorder %s47, 0
      %p320 = por %p318, %p319
      %p321 = scmp.ne.s32.totalorder %s309, %s310
      %p322 = scmp.eq.s32.totalorder %s48, 1
      %p323 = por %p321, %p322
      %p325 = scmp.ne.s32.totalorder %s310, %s324
      %p326 = scmp.eq.s32.totalorder %s48, 0
      %p327 = por %p325, %p326
      %s329 = sadd.s32 %s328, 1
      %p332 = scmp.eq.s32.totalorder %s42, 1
      %p333 = scmp.ne.s32.totalorder %s328, %s330
      %p334 = scmp.eq.s32.totalorder %s42, 0
      %p335 = por %p333, %p334
      %p336 = scmp.ne.s32.totalorder %s328, %s330
      %p337 = scmp.eq.s32.totalorder %s47, 1
      %p338 = por %p336, %p337
      %p339 = scmp.ne.s32.totalorder %s330, %s331
      %p340 = scmp.eq.s32.totalorder %s47, 0
      %p341 = por %p339, %p340
      %p342 = scmp.ne.s32.totalorder %s330, %s331
      %p343 = scmp.eq.s32.totalorder %s48, 1
      %p344 = por %p342, %p343
      %p346 = scmp.ne.s32.totalorder %s331, %s345
      %p347 = scmp.eq.s32.totalorder %s48, 0
      %p348 = por %p346, %p347
      %s350 = sadd.s32 %s349, 1
      %p353 = scmp.eq.s32.totalorder %s42, 1
      %p354 = scmp.ne.s32.totalorder %s349, %s351
      %p355 = scmp.eq.s32.totalorder %s42, 0
      %p356 = por %p354, %p355
      %p357 = scmp.ne.s32.totalorder %s349, %s351
      %p358 = scmp.eq.s32.totalorder %s47, 1
      %p359 = por %p357, %p358
      %p360 = scmp.ne.s32.totalorder %s351, %s352
      %p361 = scmp.eq.s32.totalorder %s47, 0
      %p362 = por %p360, %p361
      %p363 = scmp.ne.s32.totalorder %s351, %s352
      %p364 = scmp.eq.s32.totalorder %s48, 1
      %p365 = por %p363, %p364
      %p367 = scmp.ne.s32.totalorder %s352, %s366
      %p368 = scmp.eq.s32.totalorder %s48, 0
      %p369 = por %p367, %p368
      %s371 = sadd.s32 %s370, 1
      %p374 = scmp.eq.s32.totalorder %s42, 1
      %p375 = scmp.ne.s32.totalorder %s370, %s372
      %p376 = scmp.eq.s32.totalorder %s42, 0
      %p377 = por %p375, %p376
      %p378 = scmp.ne.s32.totalorder %s370, %s372
      %p379 = scmp.eq.s32.totalorder %s47, 1
      %p380 = por %p378, %p379
      %p381 = scmp.ne.s32.totalorder %s372, %s373
      %p382 = scmp.eq.s32.totalorder %s47, 0
      %p383 = por %p381, %p382
      %p384 = scmp.ne.s32.totalorder %s372, %s373
      %p385 = scmp.eq.s32.totalorder %s48, 1
      %p386 = por %p384, %p385
      %p388 = scmp.ne.s32.totalorder %s373, %s387
      %p389 = scmp.eq.s32.totalorder %s48, 0
      %p390 = por %p388, %p389
      %s392 = sadd.s32 %s391, 1
      %p395 = scmp.eq.s32.totalorder %s42, 1
      %p396 = scmp.ne.s32.totalorder %s391, %s393
      %p397 = scmp.eq.s32.totalorder %s42, 0
      %p398 = por %p396, %p397
      %p399 = scmp.ne.s32.totalorder %s391, %s393
      %p400 = scmp.eq.s32.totalorder %s47, 1
      %p401 = por %p399, %p400
      %p402 = scmp.ne.s32.totalorder %s393, %s394
      %p403 = scmp.eq.s32.totalorder %s47, 0
      %p404 = por %p402, %p403
      %p405 = scmp.ne.s32.totalorder %s393, %s394
      %p406 = scmp.eq.s32.totalorder %s48, 1
      %p407 = por %p405, %p406
      %p409 = scmp.ne.s32.totalorder %s394, %s408
      %p410 = scmp.eq.s32.totalorder %s48, 0
      %p411 = por %p409, %p410
      %s413 = sadd.s32 %s412, 1
      %p416 = scmp.eq.s32.totalorder %s42, 1
      %p417 = scmp.ne.s32.totalorder %s412, %s414
      %p418 = scmp.eq.s32.totalorder %s42, 0
      %p419 = por %p417, %p418
      %p420 = scmp.ne.s32.totalorder %s412, %s414
      %p421 = scmp.eq.s32.totalorder %s47, 1
      %p422 = por %p420, %p421
      %p423 = scmp.ne.s32.totalorder %s414, %s415
      %p424 = scmp.eq.s32.totalorder %s47, 0
      %p425 = por %p423, %p424
      %p426 = scmp.ne.s32.totalorder %s414, %s415
      %p427 = scmp.eq.s32.totalorder %s48, 1
      %p428 = por %p426, %p427
      %p430 = scmp.ne.s32.totalorder %s415, %s429
      %p431 = scmp.eq.s32.totalorder %s48, 0
      %p432 = por %p430, %p431
      %s434 = sadd.s32 %s433, 1
      %p437 = scmp.eq.s32.totalorder %s42, 1
      %p438 = scmp.ne.s32.totalorder %s433, %s435
      %p439 = scmp.eq.s32.totalorder %s42, 0
      %p440 = por %p438, %p439
      %p441 = scmp.ne.s32.totalorder %s433, %s435
      %p442 = scmp.eq.s32.totalorder %s47, 1
      %p443 = por %p441, %p442
      %p444 = scmp.ne.s32.totalorder %s435, %s436
      %p445 = scmp.eq.s32.totalorder %s47, 0
      %p446 = por %p444, %p445
      %p447 = scmp.ne.s32.totalorder %s435, %s436
      %p448 = scmp.eq.s32.totalorder %s48, 1
      %p449 = por %p447, %p448
      %p451 = scmp.ne.s32.totalorder %s436, %s450
      %p452 = scmp.eq.s32.totalorder %s48, 0
      %p453 = por %p451, %p452
      %s455 = sadd.s32 %s454, 1
      %p458 = scmp.eq.s32.totalorder %s42, 1
      %p459 = scmp.ne.s32.totalorder %s454, %s456
      %p460 = scmp.eq.s32.totalorder %s42, 0
      %p461 = por %p459, %p460
      %p462 = scmp.ne.s32.totalorder %s454, %s456
      %p463 = scmp.eq.s32.totalorder %s47, 1
      %p464 = por %p462, %p463
      %p465 = scmp.ne.s32.totalorder %s456, %s457
      %p466 = scmp.eq.s32.totalorder %s47, 0
      %p467 = por %p465, %p466
      %p468 = scmp.ne.s32.totalorder %s456, %s457
      %p469 = scmp.eq.s32.totalorder %s48, 1
      %p470 = por %p468, %p469
      %p472 = scmp.ne.s32.totalorder %s457, %s471
      %p473 = scmp.eq.s32.totalorder %s48, 0
      %p474 = por %p472, %p473
      %s476 = sadd.s32 %s475, 1
      %p479 = scmp.eq.s32.totalorder %s42, 1
      %p480 = scmp.ne.s32.totalorder %s475, %s477
      %p481 = scmp.eq.s32.totalorder %s42, 0
      %p482 = por %p480, %p481
      %p483 = scmp.ne.s32.totalorder %s475, %s477
      %p484 = scmp.eq.s32.totalorder %s47, 1
      %p485 = por %p483, %p484
      %p486 = scmp.ne.s32.totalorder %s477, %s478
      %p487 = scmp.eq.s32.totalorder %s47, 0
      %p488 = por %p486, %p487
      %p489 = scmp.ne.s32.totalorder %s477, %s478
      %p490 = scmp.eq.s32.totalorder %s48, 1
      %p491 = por %p489, %p490
      %p493 = scmp.ne.s32.totalorder %s478, %s492
      %p494 = scmp.eq.s32.totalorder %s48, 0
      %p495 = por %p493, %p494
      %s497 = sadd.s32 %s496, 1
      %p500 = scmp.eq.s32.totalorder %s42, 1
      %p501 = scmp.ne.s32.totalorder %s496, %s498
      %p502 = scmp.eq.s32.totalorder %s42, 0
      %p503 = por %p501, %p502
      %p504 = scmp.ne.s32.totalorder %s496, %s498
      %p505 = scmp.eq.s32.totalorder %s47, 1
      %p506 = por %p504, %p505
      %p507 = scmp.ne.s32.totalorder %s498, %s499
      %p508 = scmp.eq.s32.totalorder %s47, 0
      %p509 = por %p507, %p508
      %p510 = scmp.ne.s32.totalorder %s498, %s499
      %p511 = scmp.eq.s32.totalorder %s48, 1
      %p512 = por %p510, %p511
      %p514 = scmp.ne.s32.totalorder %s499, %s513
      %p515 = scmp.eq.s32.totalorder %s48, 0
      %p516 = por %p514, %p515
      %s518 = sadd.s32 %s517, 1
      %p521 = scmp.eq.s32.totalorder %s42, 1
      %p522 = scmp.ne.s32.totalorder %s517, %s519
      %p523 = scmp.eq.s32.totalorder %s42, 0
      %p524 = por %p522, %p523
      %p525 = scmp.ne.s32.totalorder %s517, %s519
      %p526 = scmp.eq.s32.totalorder %s47, 1
      %p527 = por %p525, %p526
      %p528 = scmp.ne.s32.totalorder %s519, %s520
      %p529 = scmp.eq.s32.totalorder %s47, 0
      %p530 = por %p528, %p529
      %p531 = scmp.ne.s32.totalorder %s519, %s520
      %p532 = scmp.eq.s32.totalorder %s48, 1
      %p533 = por %p531, %p532
      %p535 = scmp.ne.s32.totalorder %s520, %s534
      %p536 = scmp.eq.s32.totalorder %s48, 0
      %p537 = por %p535, %p536
      %s539 = sadd.s32 %s538, 1
      %p542 = scmp.eq.s32.totalorder %s42, 1
      %p543 = scmp.ne.s32.totalorder %s538, %s540
      %p544 = scmp.eq.s32.totalorder %s42, 0
      %p545 = por %p543, %p544
      %p546 = scmp.ne.s32.totalorder %s538, %s540
      %p547 = scmp.eq.s32.totalorder %s47, 1
      %p548 = por %p546, %p547
      %p549 = scmp.ne.s32.totalorder %s540, %s541
      %p550 = scmp.eq.s32.totalorder %s47, 0
      %p551 = por %p549, %p550
      %p552 = scmp.ne.s32.totalorder %s540, %s541
      %p553 = scmp.eq.s32.totalorder %s48, 1
      %p554 = por %p552, %p553
      %p556 = scmp.ne.s32.totalorder %s541, %s555
      %p557 = scmp.eq.s32.totalorder %s48, 0
      %p558 = por %p556, %p557
      %s560 = sadd.s32 %s559, 1
      %p563 = scmp.eq.s32.totalorder %s42, 1
      %p564 = scmp.ne.s32.totalorder %s559, %s561
      %p565 = scmp.eq.s32.totalorder %s42, 0
      %p566 = por %p564, %p565
      %p567 = scmp.ne.s32.totalorder %s559, %s561
      %p568 = scmp.eq.s32.totalorder %s47, 1
      %p569 = por %p567, %p568
      %p570 = scmp.ne.s32.totalorder %s561, %s562
      %p571 = scmp.eq.s32.totalorder %s47, 0
      %p572 = por %p570, %p571
      %p573 = scmp.ne.s32.totalorder %s561, %s562
      %p574 = scmp.eq.s32.totalorder %s48, 1
      %p575 = por %p573, %p574
      %p577 = scmp.ne.s32.totalorder %s562, %s576
      %p578 = scmp.eq.s32.totalorder %s48, 0
      %p579 = por %p577, %p578
      %s580 = ssub.s32 %s42, %s49
      %p581 = scmp.eq.s32.totalorder %s580, 0
      %s583 = sadd.s32 %s582, 1
      %s584 = scalar_select %p581, %s582, %s583
      %p587 = pneg %p581
      %p588 = scmp.eq.s32.totalorder %s42, 1
      %p589 = por %p587, %p588
      %p590 = scmp.ne.s32.totalorder %s582, %s585
      %p591 = scmp.eq.s32.totalorder %s42, 0
      %p592 = por %p590, %p591
      %p593 = scmp.ne.s32.totalorder %s582, %s585
      %p594 = scmp.eq.s32.totalorder %s47, 1
      %p595 = por %p593, %p594
      %p596 = scmp.ne.s32.totalorder %s585, %s586
      %p597 = scmp.eq.s32.totalorder %s47, 0
      %p598 = por %p596, %p597
      %p599 = scmp.ne.s32.totalorder %s585, %s586
      %p600 = scmp.eq.s32.totalorder %s48, 1
      %p601 = por %p599, %p600
      %p603 = scmp.ne.s32.totalorder %s586, %s602
      %p604 = scmp.eq.s32.totalorder %s48, 0
      %p605 = por %p603, %p604
      %p606 = scmp.le.s32.totalorder 1, %s42
      %p607 = scmp.lt.s32.totalorder %s42, 3
      %p608 = pnand %p606, %p607
      %p609 = pneg %p608
      // Predicated region
      $region9: #{tpu_custom_call.1} parent=5 // pred_check
        _
      $region10: #{tpu_custom_call.1} parent=5 // pred_check_branch
        %611 = sbr.rel (%p608) target = $region12
      $region11: #{tpu_custom_call.1} parent=5 // pred_region
        %s612 = ssub.s32 %s42, 1
        // Predicated region
        $region13: #{tpu_custom_call.1} parent=11 // pred_check
          %p613 = pneg %p89
        $region14: #{tpu_custom_call.1} parent=11 // pred_check_branch
          %615 = sbr.rel (%p613) target = $region16
        $region15: #{tpu_custom_call.1} parent=11 // pred_region
          %s617 = ssub.s32 4096, 4096
          %618 = vsyncadd [#allocation8], %s617
          %s619 = sshll.u32 [#allocation7], 4
          %s620 = int_to_ptr.vmem [resolvable:$true] %s619
          %625 = dma.hbm_to_vmem [thread:$0]  %s1, 4096, %s620, [#allocation8], 128, 128, 8
        $region16: #{tpu_custom_call.1} parent=11 // pred_fallthru
          _
        // Predicated region
        $region17: #{tpu_custom_call.1} parent=11 // pred_check
          %p626 = pneg %p110
        $region18: #{tpu_custom_call.1} parent=11 // pred_check_branch
          %628 = sbr.rel (%p626) target = $region20
        $region19: #{tpu_custom_call.1} parent=11 // pred_region
          _
        $region20: #{tpu_custom_call.1} parent=11 // pred_fallthru
          _
        // Predicated region
        $region21: #{tpu_custom_call.1} parent=11 // pred_check
          %p629 = pneg %p131
        $region22: #{tpu_custom_call.1} parent=11 // pred_check_branch
          %631 = sbr.rel (%p629) target = $region24
        $region23: #{tpu_custom_call.1} parent=11 // pred_region
          %s633 = ssub.s32 4096, 4096
          %634 = vsyncadd [#allocation8], %s633
          %s635 = sshll.u32 [#allocation9], 4
          %s636 = int_to_ptr.vmem [resolvable:$true] %s635
          %641 = dma.hbm_to_vmem [thread:$0]  %s3, 4096, %s636, [#allocation8], 128, 128, 8
        $region24: #{tpu_custom_call.1} parent=11 // pred_fallthru
          _
        // Predicated region
        $region25: #{tpu_custom_call.1} parent=11 // pred_check
          %p642 = pneg %p152
        $region26: #{tpu_custom_call.1} parent=11 // pred_check_branch
          %644 = sbr.rel (%p642) target = $region28
        $region27: #{tpu_custom_call.1} parent=11 // pred_region
          _
        $region28: #{tpu_custom_call.1} parent=11 // pred_fallthru
          _
        // Predicated region
        $region29: #{tpu_custom_call.1} parent=11 // pred_check
          %p645 = pneg %p173
        $region30: #{tpu_custom_call.1} parent=11 // pred_check_branch
          %647 = sbr.rel (%p645) target = $region32
        $region31: #{tpu_custom_call.1} parent=11 // pred_region
          %s649 = ssub.s32 2048, 2048
          %650 = vsyncadd [#allocation11], %s649
          %s651 = sshll.u32 [#allocation10], 4
          %s652 = int_to_ptr.vmem [resolvable:$true] %s651
          %657 = dma.hbm_to_vmem [thread:$0]  %s5, 2048, %s652, [#allocation11], 128, 128, 8
        $region32: #{tpu_custom_call.1} parent=11 // pred_fallthru
          _
        // Predicated region
        $region33: #{tpu_custom_call.1} parent=11 // pred_check
          %p658 = pneg %p194
        $region34: #{tpu_custom_call.1} parent=11 // pred_check_branch
          %660 = sbr.rel (%p658) target = $region36
        $region35: #{tpu_custom_call.1} parent=11 // pred_region
          _
        $region36: #{tpu_custom_call.1} parent=11 // pred_fallthru
          _
        // Predicated region
        $region37: #{tpu_custom_call.1} parent=11 // pred_check
          %p661 = pneg %p215
        $region38: #{tpu_custom_call.1} parent=11 // pred_check_branch
          %663 = sbr.rel (%p661) target = $region40
        $region39: #{tpu_custom_call.1} parent=11 // pred_region
          _
        $region40: #{tpu_custom_call.1} parent=11 // pred_fallthru
          _
        // Predicated region
        $region41: #{tpu_custom_call.1} parent=11 // pred_check
          %p664 = pneg %p236
        $region42: #{tpu_custom_call.1} parent=11 // pred_check_branch
          %666 = sbr.rel (%p664) target = $region44
        $region43: #{tpu_custom_call.1} parent=11 // pred_region
          _
        $region44: #{tpu_custom_call.1} parent=11 // pred_fallthru
          _
        // Predicated region
        $region45: #{tpu_custom_call.1} parent=11 // pred_check
          %p667 = pneg %p257
        $region46: #{tpu_custom_call.1} parent=11 // pred_check_branch
          %669 = sbr.rel (%p667) target = $region48
        $region47: #{tpu_custom_call.1} parent=11 // pred_region
          %s671 = ssub.s32 4096, 4096
          %672 = vsyncadd [#allocation11], %s671
          %s673 = sshll.u32 [#allocation12], 4
          %s674 = int_to_ptr.vmem [resolvable:$true] %s673
          %679 = dma.hbm_to_vmem [thread:$0]  %s9, 4096, %s674, [#allocation11], 128, 128, 8
        $region48: #{tpu_custom_call.1} parent=11 // pred_fallthru
          _
        // Predicated region
        $region49: #{tpu_custom_call.1} parent=11 // pred_check
          %p680 = pneg %p278
        $region50: #{tpu_custom_call.1} parent=11 // pred_check_branch
          %682 = sbr.rel (%p680) target = $region52
        $region51: #{tpu_custom_call.1} parent=11 // pred_region
          _
        $region52: #{tpu_custom_call.1} parent=11 // pred_fallthru
          _
        // Predicated region
        $region53: #{tpu_custom_call.1} parent=11 // pred_check
          %p683 = pneg %p299
        $region54: #{tpu_custom_call.1} parent=11 // pred_check_branch
          %685 = sbr.rel (%p683) target = $region56
        $region55: #{tpu_custom_call.1} parent=11 // pred_region
          %s687 = ssub.s32 4096, 4096
          %688 = vsyncadd [#allocation14], %s687
          %s689 = sshll.u32 [#allocation13], 4
          %s690 = int_to_ptr.vmem [resolvable:$true] %s689
          %695 = dma.hbm_to_vmem [thread:$0]  %s11, 4096, %s690, [#allocation14], 128, 128, 8
        $region56: #{tpu_custom_call.1} parent=11 // pred_fallthru
          _
        // Predicated region
        $region57: #{tpu_custom_call.1} parent=11 // pred_check
          %p696 = pneg %p320
        $region58: #{tpu_custom_call.1} parent=11 // pred_check_branch
          %698 = sbr.rel (%p696) target = $region60
        $region59: #{tpu_custom_call.1} parent=11 // pred_region
          _
        $region60: #{tpu_custom_call.1} parent=11 // pred_fallthru
          _
        // Predicated region
        $region61: #{tpu_custom_call.1} parent=11 // pred_check
          %p699 = pneg %p341
        $region62: #{tpu_custom_call.1} parent=11 // pred_check_branch
          %701 = sbr.rel (%p699) target = $region64
        $region63: #{tpu_custom_call.1} parent=11 // pred_region
          _
        $region64: #{tpu_custom_call.1} parent=11 // pred_fallthru
          _
        // Predicated region
        $region65: #{tpu_custom_call.1} parent=11 // pred_check
          %p702 = pneg %p362
        $region66: #{tpu_custom_call.1} parent=11 // pred_check_branch
          %704 = sbr.rel (%p702) target = $region68
        $region67: #{tpu_custom_call.1} parent=11 // pred_region
          _
        $region68: #{tpu_custom_call.1} parent=11 // pred_fallthru
          _
        // Predicated region
        $region69: #{tpu_custom_call.1} parent=11 // pred_check
          %p705 = pneg %p383
        $region70: #{tpu_custom_call.1} parent=11 // pred_check_branch
          %707 = sbr.rel (%p705) target = $region72
        $region71: #{tpu_custom_call.1} parent=11 // pred_region
          %s709 = ssub.s32 4096, 4096
          %710 = vsyncadd [#allocation14], %s709
          %s711 = sshll.u32 [#allocation15], 4
          %s712 = int_to_ptr.vmem [resolvable:$true] %s711
          %717 = dma.hbm_to_vmem [thread:$0]  %s15, 4096, %s712, [#allocation14], 128, 128, 8
        $region72: #{tpu_custom_call.1} parent=11 // pred_fallthru
          _
        // Predicated region
        $region73: #{tpu_custom_call.1} parent=11 // pred_check
          %p718 = pneg %p404
        $region74: #{tpu_custom_call.1} parent=11 // pred_check_branch
          %720 = sbr.rel (%p718) target = $region76
        $region75: #{tpu_custom_call.1} parent=11 // pred_region
          _
        $region76: #{tpu_custom_call.1} parent=11 // pred_fallthru
          _
        // Predicated region
        $region77: #{tpu_custom_call.1} parent=11 // pred_check
          %p721 = pneg %p425
        $region78: #{tpu_custom_call.1} parent=11 // pred_check_branch
          %723 = sbr.rel (%p721) target = $region80
        $region79: #{tpu_custom_call.1} parent=11 // pred_region
          %s725 = ssub.s32 4096, 4096
          %726 = vsyncadd [#allocation17], %s725
          %s727 = sshll.u32 [#allocation16], 4
          %s728 = int_to_ptr.vmem [resolvable:$true] %s727
          %733 = dma.hbm_to_vmem [thread:$0]  %s17, 4096, %s728, [#allocation17], 128, 128, 8
        $region80: #{tpu_custom_call.1} parent=11 // pred_fallthru
          _
        // Predicated region
        $region81: #{tpu_custom_call.1} parent=11 // pred_check
          %p734 = pneg %p446
        $region82: #{tpu_custom_call.1} parent=11 // pred_check_branch
          %736 = sbr.rel (%p734) target = $region84
        $region83: #{tpu_custom_call.1} parent=11 // pred_region
          _
        $region84: #{tpu_custom_call.1} parent=11 // pred_fallthru
          _
        // Predicated region
        $region85: #{tpu_custom_call.1} parent=11 // pred_check
          %p737 = pneg %p467
        $region86: #{tpu_custom_call.1} parent=11 // pred_check_branch
          %739 = sbr.rel (%p737) target = $region88
        $region87: #{tpu_custom_call.1} parent=11 // pred_region
          %s741 = ssub.s32 2048, 2048
          %742 = vsyncadd [#allocation17], %s741
          %s743 = sshll.u32 [#allocation18], 4
          %s744 = int_to_ptr.vmem [resolvable:$true] %s743
          %749 = dma.hbm_to_vmem [thread:$0]  %s19, 2048, %s744, [#allocation17], 128, 128, 8
        $region88: #{tpu_custom_call.1} parent=11 // pred_fallthru
          _
        // Predicated region
        $region89: #{tpu_custom_call.1} parent=11 // pred_check
          %p750 = pneg %p488
        $region90: #{tpu_custom_call.1} parent=11 // pred_check_branch
          %752 = sbr.rel (%p750) target = $region92
        $region91: #{tpu_custom_call.1} parent=11 // pred_region
          _
        $region92: #{tpu_custom_call.1} parent=11 // pred_fallthru
          _
        // Predicated region
        $region93: #{tpu_custom_call.1} parent=11 // pred_check
          %p753 = pneg %p509
        $region94: #{tpu_custom_call.1} parent=11 // pred_check_branch
          %755 = sbr.rel (%p753) target = $region96
        $region95: #{tpu_custom_call.1} parent=11 // pred_region
          _
        $region96: #{tpu_custom_call.1} parent=11 // pred_fallthru
          _
        // Predicated region
        $region97: #{tpu_custom_call.1} parent=11 // pred_check
          %p756 = pneg %p530
        $region98: #{tpu_custom_call.1} parent=11 // pred_check_branch
          %758 = sbr.rel (%p756) target = $region100
        $region99: #{tpu_custom_call.1} parent=11 // pred_region
          _
        $region100: #{tpu_custom_call.1} parent=11 // pred_fallthru
          _
        // Predicated region
        $region101: #{tpu_custom_call.1} parent=11 // pred_check
          %p759 = pneg %p551
        $region102: #{tpu_custom_call.1} parent=11 // pred_check_branch
          %761 = sbr.rel (%p759) target = $region104
        $region103: #{tpu_custom_call.1} parent=11 // pred_region
          %s763 = ssub.s32 16384, 16384
          %764 = vsyncadd [#allocation20], %s763
          %s765 = sshll.u32 [#allocation19], 4
          %s766 = int_to_ptr.vmem [resolvable:$true] %s765
          %771 = dma.hbm_to_vmem [thread:$0]  %s23, 16384, %s766, [#allocation20], 128, 128, 8
        $region104: #{tpu_custom_call.1} parent=11 // pred_fallthru
          _
        // Predicated region
        $region105: #{tpu_custom_call.1} parent=11 // pred_check
          %p772 = pneg %p572
        $region106: #{tpu_custom_call.1} parent=11 // pred_check_branch
          %774 = sbr.rel (%p772) target = $region108
        $region107: #{tpu_custom_call.1} parent=11 // pred_region
          _
        $region108: #{tpu_custom_call.1} parent=11 // pred_fallthru
          _
      $region12: #{tpu_custom_call.1} parent=5 // pred_fallthru
        _
      %p775 = scmp.lt.s32.totalorder %s42, 2
      // Predicated region
      $region109: #{tpu_custom_call.1} parent=5 // pred_check
        %p776 = pneg %p775
      $region110: #{tpu_custom_call.1} parent=5 // pred_check_branch
        %778 = sbr.rel (%p776) target = $region112
      $region111: #{tpu_custom_call.1} parent=5 // pred_region
        // Predicated region
        $region113: #{tpu_custom_call.1} parent=111 // pred_check
          %p779 = pneg %p62
        $region114: #{tpu_custom_call.1} parent=111 // pred_check_branch
          %781 = sbr.rel (%p779) target = $region116
        $region115: #{tpu_custom_call.1} parent=111 // pred_region
          %s782 = sand.u32 %s52, 1
          %s783 = scalar_lea.sflag [#allocation5], %s782
          %s784 = sand.u32 %s52, 1
          %s785 = smul.addr %s784, 64
          %s786 = scalar_lea.vmem [#allocation4], %s785
          %s788 = ssub.s32 1024, 1024
          %789 = vsyncadd %s783, %s788
          %s790 = smul.addr %s42, 8
          %s791 = smul.addr %s790, 128
          %s792 = scalar_lea.hbm %s0, %s791
          %s793 = sshll.u32 %s786, 4
          %s794 = int_to_ptr.vmem [resolvable:$true] %s793
          %799 = dma.hbm_to_vmem [thread:$0]  %s792, 1024, %s794, %s783, 128, 128, 8
        $region116: #{tpu_custom_call.1} parent=111 // pred_fallthru
          _
      $region112: #{tpu_custom_call.1} parent=5 // pred_fallthru
        _
      %p800 = scmp.le.s32.totalorder 1, %s42
      %p801 = scmp.lt.s32.totalorder %s42, 3
      %p802 = pnand %p800, %p801
      %p803 = pneg %p802
      // Predicated region
      $region117: #{tpu_custom_call.1} parent=5 // pred_check
        _
      $region118: #{tpu_custom_call.1} parent=5 // pred_check_branch
        %805 = sbr.rel (%p802) target = $region120
      $region119: #{tpu_custom_call.1} parent=5 // pred_region
        %s806 = ssub.s32 %s42, 1
        %s807 = sand.u32 %s55, 1
        %s808 = scalar_lea.sflag [#allocation5], %s807
        %s809 = sand.u32 %s55, 1
        %s810 = smul.addr %s809, 64
        %s811 = scalar_lea.vmem [#allocation4], %s810
        // Predicated region
        $region121: #{tpu_custom_call.1} parent=119 // pred_check
          %p812 = pneg %p68
        $region122: #{tpu_custom_call.1} parent=119 // pred_check_branch
          %814 = sbr.rel (%p812) target = $region124
        $region123: #{tpu_custom_call.1} parent=119 // pred_region
          %815 = dma.done %s808, 1024
        $region124: #{tpu_custom_call.1} parent=119 // pred_fallthru
          _
        // Predicated region
        $region125: #{tpu_custom_call.1} parent=119 // pred_check
          %p816 = pneg %p89
        $region126: #{tpu_custom_call.1} parent=119 // pred_check_branch
          %818 = sbr.rel (%p816) target = $region128
        $region127: #{tpu_custom_call.1} parent=119 // pred_region
          %819 = dma.done [#allocation8], 4096
        $region128: #{tpu_custom_call.1} parent=119 // pred_fallthru
          _
        // Predicated region
        $region129: #{tpu_custom_call.1} parent=119 // pred_check
          %p820 = pneg %p131
        $region130: #{tpu_custom_call.1} parent=119 // pred_check_branch
          %822 = sbr.rel (%p820) target = $region132
        $region131: #{tpu_custom_call.1} parent=119 // pred_region
          %823 = dma.done [#allocation8], 4096
        $region132: #{tpu_custom_call.1} parent=119 // pred_fallthru
          _
        // Predicated region
        $region133: #{tpu_custom_call.1} parent=119 // pred_check
          %p824 = pneg %p173
        $region134: #{tpu_custom_call.1} parent=119 // pred_check_branch
          %826 = sbr.rel (%p824) target = $region136
        $region135: #{tpu_custom_call.1} parent=119 // pred_region
          %827 = dma.done [#allocation11], 2048
        $region136: #{tpu_custom_call.1} parent=119 // pred_fallthru
          _
        // Predicated region
        $region137: #{tpu_custom_call.1} parent=119 // pred_check
          %p828 = pneg %p257
        $region138: #{tpu_custom_call.1} parent=119 // pred_check_branch
          %830 = sbr.rel (%p828) target = $region140
        $region139: #{tpu_custom_call.1} parent=119 // pred_region
          %831 = dma.done [#allocation11], 4096
        $region140: #{tpu_custom_call.1} parent=119 // pred_fallthru
          _
        // Predicated region
        $region141: #{tpu_custom_call.1} parent=119 // pred_check
          %p832 = pneg %p299
        $region142: #{tpu_custom_call.1} parent=119 // pred_check_branch
          %834 = sbr.rel (%p832) target = $region144
        $region143: #{tpu_custom_call.1} parent=119 // pred_region
          %835 = dma.done [#allocation14], 4096
        $region144: #{tpu_custom_call.1} parent=119 // pred_fallthru
          _
        // Predicated region
        $region145: #{tpu_custom_call.1} parent=119 // pred_check
          %p836 = pneg %p383
        $region146: #{tpu_custom_call.1} parent=119 // pred_check_branch
          %838 = sbr.rel (%p836) target = $region148
        $region147: #{tpu_custom_call.1} parent=119 // pred_region
          %839 = dma.done [#allocation14], 4096
        $region148: #{tpu_custom_call.1} parent=119 // pred_fallthru
          _
        // Predicated region
        $region149: #{tpu_custom_call.1} parent=119 // pred_check
          %p840 = pneg %p425
        $region150: #{tpu_custom_call.1} parent=119 // pred_check_branch
          %842 = sbr.rel (%p840) target = $region152
        $region151: #{tpu_custom_call.1} parent=119 // pred_region
          %843 = dma.done [#allocation17], 4096
        $region152: #{tpu_custom_call.1} parent=119 // pred_fallthru
          _
        // Predicated region
        $region153: #{tpu_custom_call.1} parent=119 // pred_check
          %p844 = pneg %p467
        $region154: #{tpu_custom_call.1} parent=119 // pred_check_branch
          %846 = sbr.rel (%p844) target = $region156
        $region155: #{tpu_custom_call.1} parent=119 // pred_region
          %847 = dma.done [#allocation17], 2048
        $region156: #{tpu_custom_call.1} parent=119 // pred_fallthru
          _
        // Predicated region
        $region157: #{tpu_custom_call.1} parent=119 // pred_check
          %p848 = pneg %p551
        $region158: #{tpu_custom_call.1} parent=119 // pred_check_branch
          %850 = sbr.rel (%p848) target = $region160
        $region159: #{tpu_custom_call.1} parent=119 // pred_region
          %851 = dma.done [#allocation20], 16384
        $region160: #{tpu_custom_call.1} parent=119 // pred_fallthru
          _
        %s852 = sand.u32 %s55, 1
        %s853 = scalar_lea.sflag [#allocation5], %s852
        %s854 = sand.u32 %s55, 1
        %s855 = smul.addr %s854, 64
        %s856 = scalar_lea.vmem [#allocation4], %s855
        %p857 = pneg %p68
        %p858 = pneg %p65
        %p859 = pneg %p89
        %p860 = pneg %p86
        %p861 = pneg %p110
        %p862 = pneg %p107
        %p863 = pneg %p131
        %p864 = pneg %p128
        %p865 = pneg %p152
        %p866 = pneg %p149
        %p867 = pneg %p173
        %p868 = pneg %p170
        %p869 = pneg %p194
        %p870 = pneg %p191
        %p871 = pneg %p215
        %p872 = pneg %p212
        %p873 = pneg %p236
        %p874 = pneg %p233
        %p875 = pneg %p257
        %p876 = pneg %p254
        %p877 = pneg %p278
        %p878 = pneg %p275
        %p879 = pneg %p299
        %p880 = pneg %p296
        %p881 = pneg %p320
        %p882 = pneg %p317
        %p883 = pneg %p341
        %p884 = pneg %p338
        %p885 = pneg %p362
        %p886 = pneg %p359
        %p887 = pneg %p383
        %p888 = pneg %p380
        %p889 = pneg %p404
        %p890 = pneg %p401
        %p891 = pneg %p425
        %p892 = pneg %p422
        %p893 = pneg %p446
        %p894 = pneg %p443
        %p895 = pneg %p467
        %p896 = pneg %p464
        %p897 = pneg %p488
        %p898 = pneg %p485
        %p899 = pneg %p509
        %p900 = pneg %p506
        %p901 = pneg %p530
        %p902 = pneg %p527
        %p903 = pneg %p551
        %p904 = pneg %p548
        %p905 = pneg %p572
        %p906 = pneg %p569
        %p907 = pneg %p598
        %p908 = pneg %p595
        %s909 = sand.u32 %s585, 1
        %s910 = scalar_lea.sflag [#allocation6], %s909
        %s911 = sand.u32 %s585, 1
        %s912 = smul.addr %s911, 8
        %s913 = scalar_lea.vmem [#allocation21], %s912
        %914 = vst [vmem:[#allocation2] sm:$0xff] 0.0
        %915 = vst [vmem:[#allocation2 + $0x8] sm:$0xff] 0.0
        %916 = vst [vmem:[#allocation2 + $0x10] sm:$0xff] 0.0
        %917 = vst [vmem:[#allocation2 + $0x18] sm:$0xff] 0.0
        %918 = vst [vmem:[#allocation3] sm:$0xff] 0.0
        %919 = vst [vmem:[#allocation3 + $0x8] sm:$0xff] 0.0
        %920 = vst [vmem:[#allocation3 + $0x10] sm:$0xff] 0.0
        %921 = vst [vmem:[#allocation3 + $0x18] sm:$0xff] 0.0
        %v922 = vld [vmem:[%s811] sm:$0xff]
        %v923 = vld [vmem:[%s811 + $0x8] sm:$0xff]
        %v924 = vld [vmem:[%s811 + $0x10] sm:$0xff]
        %v925 = vld [vmem:[%s811 + $0x18] sm:$0xff]
        %v926 = vld [vmem:[%s811 + $0x20] sm:$0xff]
        %v927 = vld [vmem:[%s811 + $0x28] sm:$0xff]
        %v928 = vld [vmem:[%s811 + $0x30] sm:$0xff]
        %v929 = vld [vmem:[%s811 + $0x38] sm:$0xff]
        %930 = vst [vmem:[#allocation2 + $0x20] sm:$0xff] %v922
        %931 = vst [vmem:[#allocation2 + $0x28] sm:$0xff] %v923
        %932 = vst [vmem:[#allocation2 + $0x30] sm:$0xff] %v924
        %933 = vst [vmem:[#allocation2 + $0x38] sm:$0xff] %v925
        %934 = vst [vmem:[#allocation2 + $0x40] sm:$0xff] %v926
        %935 = vst [vmem:[#allocation2 + $0x48] sm:$0xff] %v927
        %936 = vst [vmem:[#allocation2 + $0x50] sm:$0xff] %v928
        %937 = vst [vmem:[#allocation2 + $0x58] sm:$0xff] %v929
        %v938 = vld [vmem:[%s2] sm:$0x1]
        %v940 = vlaneseq
        %v941 = vshrl.u32 %v940, 7
        %v942 = vsub.s32 0, %v941
        %v943 = vrot.slane %v938, %v942
        %v945 = vadd.f32 %v943, 0.0
        %v946 = vld [vmem:[#allocation2 + $0x18] sm:$0xff]
        %v947 = vld [vmem:[#allocation2 + $0x20] sm:$0xff]
        %v948 = vld [vmem:[#allocation2 + $0x28] sm:$0xff]
        %v949 = vld [vmem:[#allocation2 + $0x30] sm:$0xff]
        %v950 = vld [vmem:[#allocation2 + $0x38] sm:$0xff]
        %v951 = vld [vmem:[#allocation2 + $0x40] sm:$0xff]
        %v952 = vld [vmem:[#allocation2 + $0x48] sm:$0xff]
        %v953 = vld [vmem:[#allocation2 + $0x50] sm:$0xff]
        %v954 = vld [vmem:[#allocation7] sm:$0xff]
        %v955 = vld [vmem:[#allocation7 + $0x8] sm:$0xff]
        %v956 = vld [vmem:[#allocation7 + $0x10] sm:$0xff]
        %v957 = vld [vmem:[#allocation7 + $0x18] sm:$0xff]
        %v958 = vld [vmem:[#allocation7 + $0x20] sm:$0xff]
        %v959 = vld [vmem:[#allocation7 + $0x28] sm:$0xff]
        %v960 = vld [vmem:[#allocation7 + $0x30] sm:$0xff]
        %v961 = vld [vmem:[#allocation7 + $0x38] sm:$0xff]
        %v962 = vld [vmem:[#allocation7 + $0x40] sm:$0xff]
        %v963 = vld [vmem:[#allocation7 + $0x48] sm:$0xff]
        %v964 = vld [vmem:[#allocation7 + $0x50] sm:$0xff]
        %v965 = vld [vmem:[#allocation7 + $0x58] sm:$0xff]
        %v966 = vld [vmem:[#allocation7 + $0x60] sm:$0xff]
        %v967 = vld [vmem:[#allocation7 + $0x68] sm:$0xff]
        %v968 = vld [vmem:[#allocation7 + $0x70] sm:$0xff]
        %v969 = vld [vmem:[#allocation7 + $0x78] sm:$0xff]
        %970 = vmatprep.subr.mxu0 0.0
        %971 = vmatpush1.msra.mxu0 %v954
        %972 = vmatprep.subr.mxu0 0.0
        %973 = vmatpush1.msra.mxu0 %v955
        %974 = vmatprep.subr.mxu0 0.0
        %975 = vmatpush1.msra.mxu0 %v956
        %976 = vmatprep.subr.mxu0 0.0
        %977 = vmatpush1.msra.mxu0 %v957
        %978 = vmatprep.subr.mxu0 0.0
        %979 = vmatpush1.msra.mxu0 %v958
        %980 = vmatprep.subr.mxu0 0.0
        %981 = vmatpush1.msra.mxu0 %v959
        %982 = vmatprep.subr.mxu0 0.0
        %983 = vmatpush1.msra.mxu0 %v960
        %984 = vmatprep.subr.mxu0 0.0
        %985 = vmatpush1.msra.mxu0 %v961
        %986 = vmatprep.subr.mxu0 0.0
        %987 = vmatpush1.msra.mxu0 %v962
        %988 = vmatprep.subr.mxu0 0.0
        %989 = vmatpush1.msra.mxu0 %v963
        %990 = vmatprep.subr.mxu0 0.0
        %991 = vmatpush1.msra.mxu0 %v964
        %992 = vmatprep.subr.mxu0 0.0
        %993 = vmatpush1.msra.mxu0 %v965
        %994 = vmatprep.subr.mxu0 0.0
        %995 = vmatpush1.msra.mxu0 %v966
        %996 = vmatprep.subr.mxu0 0.0
        %997 = vmatpush1.msra.mxu0 %v967
        %998 = vmatprep.subr.mxu0 0.0
        %999 = vmatpush1.msra.mxu0 %v968
        %1000 = vmatprep.subr.mxu0 0.0
        %1001 = vmatpush1.msra.mxu0 %v969
        %1002 = vmatprep.subr.mxu0 0.0
        %1003 = vmatpush1.msra.mxu0 0.0
        %1004 = vmatprep.subr.mxu0 0.0
        %1005 = vmatpush1.msra.mxu0 0.0
        %1006 = vmatprep.subr.mxu0 0.0
        %1007 = vmatpush1.msra.mxu0 0.0
        %1008 = vmatprep.subr.mxu0 0.0
        %1009 = vmatpush1.msra.mxu0 0.0
        %1010 = vmatprep.subr.mxu0 0.0
        %1011 = vmatpush1.msra.mxu0 0.0
        %1012 = vmatprep.subr.mxu0 0.0
        %1013 = vmatpush1.msra.mxu0 0.0
        %1014 = vmatprep.subr.mxu0 0.0
        %1015 = vmatpush1.msra.mxu0 0.0
        %1016 = vmatprep.subr.mxu0 0.0
        %1017 = vmatpush1.msra.mxu0 0.0
        %1018 = vmatprep.subr.mxu0 0.0
        %1019 = vmatpush1.msra.mxu0 0.0
        %1020 = vmatprep.subr.mxu0 0.0
        %1021 = vmatpush1.msra.mxu0 0.0
        %1022 = vmatprep.subr.mxu0 0.0
        %1023 = vmatpush1.msra.mxu0 0.0
        %1024 = vmatprep.subr.mxu0 0.0
        %1025 = vmatpush1.msra.mxu0 0.0
        %1026 = vmatprep.subr.mxu0 0.0
        %1027 = vmatpush1.msra.mxu0 0.0
        %1028 = vmatprep.subr.mxu0 0.0
        %1029 = vmatpush1.msra.mxu0 0.0
        %1030 = vmatprep.subr.mxu0 0.0
        %1031 = vmatpush1.msra.mxu0 0.0
        %1032 = vmatprep.subr.mxu0 0.0
        %1033 = vmatpush1.msra.mxu0 0.0
        %1034 = vmatprep.mubr.f32.mxu0 0.0
        %1035 = vmatmul.mubr.f32.gmra.mrb[0].mxu0 %v946
        %v1036 = vpop.f32.mrb[0].mxu0
        %v1037 = vadd.f32 0.0, %v1036
        %v1038 = vpop.f32.mrb[0].mxu0
        %1039 = vmatprep.mubr.f32.mxu0 0.0
        %1040 = vmatmul.mubr.f32.gmra.mrb[0].mxu0 %v947
        %v1041 = vpop.f32.mrb[0].mxu0
        %v1042 = vadd.f32 0.0, %v1041
        %v1043 = vpop.f32.mrb[0].mxu0
        %1044 = vmatprep.mubr.f32.mxu0 0.0
        %1045 = vmatmul.mubr.f32.gmra.mrb[0].mxu0 %v948
        %v1046 = vpop.f32.mrb[0].mxu0
        %v1047 = vadd.f32 0.0, %v1046
        %v1048 = vpop.f32.mrb[0].mxu0
        %1049 = vmatprep.mubr.f32.mxu0 0.0
        %1050 = vmatmul.mubr.f32.gmra.mrb[0].mxu0 %v949
        %v1051 = vpop.f32.mrb[0].mxu0
        %v1052 = vadd.f32 0.0, %v1051
        %v1053 = vpop.f32.mrb[0].mxu0
        %1054 = vmatprep.mubr.f32.mxu0 0.0
        %1055 = vmatmul.mubr.f32.gmra.mrb[0].mxu0 %v950
        %v1056 = vpop.f32.mrb[0].mxu0
        %v1057 = vadd.f32 0.0, %v1056
        %v1058 = vpop.f32.mrb[0].mxu0
        %1059 = vmatprep.mubr.f32.mxu0 0.0
        %1060 = vmatmul.mubr.f32.gmra.mrb[0].mxu0 %v951
        %v1061 = vpop.f32.mrb[0].mxu0
        %v1062 = vadd.f32 0.0, %v1061
        %v1063 = vpop.f32.mrb[0].mxu0
        %1064 = vmatprep.mubr.f32.mxu0 0.0
        %1065 = vmatmul.mubr.f32.gmra.mrb[0].mxu0 %v952
        %v1066 = vpop.f32.mrb[0].mxu0
        %v1067 = vadd.f32 0.0, %v1066
        %v1068 = vpop.f32.mrb[0].mxu0
        %1069 = vmatprep.mubr.f32.mxu0 0.0
        %1070 = vmatmul.mubr.f32.gmra.mrb[0].mxu0 %v953
        %v1071 = vpop.f32.mrb[0].mxu0
        %v1072 = vadd.f32 0.0, %v1071
        %v1073 = vpop.f32.mrb[0].mxu0
        %1074 = vdwg.mxu0
        %v1075 = vadd.f32 %v945, %v1037
        %v1076 = vadd.f32 %v945, %v1042
        %v1077 = vadd.f32 %v945, %v1047
        %v1078 = vadd.f32 %v945, %v1052
        %v1079 = vadd.f32 %v945, %v1057
        %v1080 = vadd.f32 %v945, %v1062
        %v1081 = vadd.f32 %v945, %v1067
        %v1082 = vadd.f32 %v945, %v1072
        %v1083 = vld [vmem:[#allocation2 + $0x20] sm:$0xff]
        %v1084 = vld [vmem:[#allocation2 + $0x28] sm:$0xff]
        %v1085 = vld [vmem:[#allocation2 + $0x30] sm:$0xff]
        %v1086 = vld [vmem:[#allocation2 + $0x38] sm:$0xff]
        %v1087 = vld [vmem:[#allocation2 + $0x40] sm:$0xff]
        %v1088 = vld [vmem:[#allocation2 + $0x48] sm:$0xff]
        %v1089 = vld [vmem:[#allocation2 + $0x50] sm:$0xff]
        %v1090 = vld [vmem:[#allocation2 + $0x58] sm:$0xff]
        %s1091 = scalar_lea.vmem [#allocation7], 128
        %v1092 = vld [vmem:[%s1091] sm:$0xff]
        %v1093 = vld [vmem:[%s1091 + $0x8] sm:$0xff]
        %v1094 = vld [vmem:[%s1091 + $0x10] sm:$0xff]
        %v1095 = vld [vmem:[%s1091 + $0x18] sm:$0xff]
        %v1096 = vld [vmem:[%s1091 + $0x20] sm:$0xff]
        %v1097 = vld [vmem:[%s1091 + $0x28] sm:$0xff]
        %v1098 = vld [vmem:[%s1091 + $0x30] sm:$0xff]
        %v1099 = vld [vmem:[%s1091 + $0x38] sm:$0xff]
        %v1100 = vld [vmem:[%s1091 + $0x40] sm:$0xff]
        %v1101 = vld [vmem:[%s1091 + $0x48] sm:$0xff]
        %v1102 = vld [vmem:[%s1091 + $0x50] sm:$0xff]
        %v1103 = vld [vmem:[%s1091 + $0x58] sm:$0xff]
        %v1104 = vld [vmem:[%s1091 + $0x60] sm:$0xff]
        %v1105 = vld [vmem:[%s1091 + $0x68] sm:$0xff]
        %v1106 = vld [vmem:[%s1091 + $0x70] sm:$0xff]
        %v1107 = vld [vmem:[%s1091 + $0x78] sm:$0xff]
        %1108 = vmatprep.subr.mxu0 0.0
        %1109 = vmatpush1.msra.mxu0 %v1092
        %1110 = vmatprep.subr.mxu0 0.0
        %1111 = vmatpush1.msra.mxu0 %v1093
        %1112 = vmatprep.subr.mxu0 0.0
        %1113 = vmatpush1.msra.mxu0 %v1094
        %1114 = vmatprep.subr.mxu0 0.0
        %1115 = vmatpush1.msra.mxu0 %v1095
        %1116 = vmatprep.subr.mxu0 0.0
        %1117 = vmatpush1.msra.mxu0 %v1096
        %1118 = vmatprep.subr.mxu0 0.0
        %1119 = vmatpush1.msra.mxu0 %v1097
        %1120 = vmatprep.subr.mxu0 0.0
        %1121 = vmatpush1.msra.mxu0 %v1098
        %1122 = vmatprep.subr.mxu0 0.0
        %1123 = vmatpush1.msra.mxu0 %v1099
        %1124 = vmatprep.subr.mxu0 0.0
        %1125 = vmatpush1.msra.mxu0 %v1100
        %1126 = vmatprep.subr.mxu0 0.0
        %1127 = vmatpush1.msra.mxu0 %v1101
        %1128 = vmatprep.subr.mxu0 0.0
        %1129 = vmatpush1.msra.mxu0 %v1102
        %1130 = vmatprep.subr.mxu0 0.0
        %1131 = vmatpush1.msra.mxu0 %v1103
        %1132 = vmatprep.subr.mxu0 0.0
        %1133 = vmatpush1.msra.mxu0 %v1104
        %1134 = vmatprep.subr.mxu0 0.0
        %1135 = vmatpush1.msra.mxu0 %v1105
        %1136 = vmatprep.subr.mxu0 0.0
        %1137 = vmatpush1.msra.mxu0 %v1106
        %1138 = vmatprep.subr.mxu0 0.0
        %1139 = vmatpush1.msra.mxu0 %v1107
        %1140 = vmatprep.subr.mxu0 0.0
        %1141 = vmatpush1.msra.mxu0 0.0
        %1142 = vmatprep.subr.mxu0 0.0
        %1143 = vmatpush1.msra.mxu0 0.0
        %1144 = vmatprep.subr.mxu0 0.0
        %1145 = vmatpush1.msra.mxu0 0.0
        %1146 = vmatprep.subr.mxu0 0.0
        %1147 = vmatpush1.msra.mxu0 0.0
        %1148 = vmatprep.subr.mxu0 0.0
        %1149 = vmatpush1.msra.mxu0 0.0
        %1150 = vmatprep.subr.mxu0 0.0
        %1151 = vmatpush1.msra.mxu0 0.0
        %1152 = vmatprep.subr.mxu0 0.0
        %1153 = vmatpush1.msra.mxu0 0.0
        %1154 = vmatprep.subr.mxu0 0.0
        %1155 = vmatpush1.msra.mxu0 0.0
        %1156 = vmatprep.subr.mxu0 0.0
        %1157 = vmatpush1.msra.mxu0 0.0
        %1158 = vmatprep.subr.mxu0 0.0
        %1159 = vmatpush1.msra.mxu0 0.0
        %1160 = vmatprep.subr.mxu0 0.0
        %1161 = vmatpush1.msra.mxu0 0.0
        %1162 = vmatprep.subr.mxu0 0.0
        %1163 = vmatpush1.msra.mxu0 0.0
        %1164 = vmatprep.subr.mxu0 0.0
        %1165 = vmatpush1.msra.mxu0 0.0
        %1166 = vmatprep.subr.mxu0 0.0
        %1167 = vmatpush1.msra.mxu0 0.0
        %1168 = vmatprep.subr.mxu0 0.0
        %1169 = vmatpush1.msra.mxu0 0.0
        %1170 = vmatprep.subr.mxu0 0.0
        %1171 = vmatpush1.msra.mxu0 0.0
        %1172 = vmatprep.mubr.f32.mxu0 0.0
        %1173 = vmatmul.mubr.f32.gmra.mrb[0].mxu0 %v1083
        %v1174 = vpop.f32.mrb[0].mxu0
        %v1175 = vadd.f32 0.0, %v1174
        %v1176 = vpop.f32.mrb[0].mxu0
        %1177 = vmatprep.mubr.f32.mxu0 0.0
        %1178 = vmatmul.mubr.f32.gmra.mrb[0].mxu0 %v1084
        %v1179 = vpop.f32.mrb[0].mxu0
        %v1180 = vadd.f32 0.0, %v1179
        %v1181 = vpop.f32.mrb[0].mxu0
        %1182 = vmatprep.mubr.f32.mxu0 0.0
        %1183 = vmatmul.mubr.f32.gmra.mrb[0].mxu0 %v1085
        %v1184 = vpop.f32.mrb[0].mxu0
        %v1185 = vadd.f32 0.0, %v1184
        %v1186 = vpop.f32.mrb[0].mxu0
        %1187 = vmatprep.mubr.f32.mxu0 0.0
        %1188 = vmatmul.mubr.f32.gmra.mrb[0].mxu0 %v1086
        %v1189 = vpop.f32.mrb[0].mxu0
        %v1190 = vadd.f32 0.0, %v1189
        %v1191 = vpop.f32.mrb[0].mxu0
        %1192 = vmatprep.mubr.f32.mxu0 0.0
        %1193 = vmatmul.mubr.f32.gmra.mrb[0].mxu0 %v1087
        %v1194 = vpop.f32.mrb[0].mxu0
        %v1195 = vadd.f32 0.0, %v1194
        %v1196 = vpop.f32.mrb[0].mxu0
        %1197 = vmatprep.mubr.f32.mxu0 0.0
        %1198 = vmatmul.mubr.f32.gmra.mrb[0].mxu0 %v1088
        %v1199 = vpop.f32.mrb[0].mxu0
        %v1200 = vadd.f32 0.0, %v1199
        %v1201 = vpop.f32.mrb[0].mxu0
        %1202 = vmatprep.mubr.f32.mxu0 0.0
        %1203 = vmatmul.mubr.f32.gmra.mrb[0].mxu0 %v1089
        %v1204 = vpop.f32.mrb[0].mxu0
        %v1205 = vadd.f32 0.0, %v1204
        %v1206 = vpop.f32.mrb[0].mxu0
        %1207 = vmatprep.mubr.f32.mxu0 0.0
        %1208 = vmatmul.mubr.f32.gmra.mrb[0].mxu0 %v1090
        %v1209 = vpop.f32.mrb[0].mxu0
        %v1210 = vadd.f32 0.0, %v1209
        %v1211 = vpop.f32.mrb[0].mxu0
        %1212 = vdwg.mxu0
        %v1213 = vadd.f32 %v1075, %v1175
        %v1214 = vadd.f32 %v1076, %v1180
        %v1215 = vadd.f32 %v1077, %v1185
        %v1216 = vadd.f32 %v1078, %v1190
        %v1217 = vadd.f32 %v1079, %v1195
        %v1218 = vadd.f32 %v1080, %v1200
        %v1219 = vadd.f32 %v1081, %v1205
        %v1220 = vadd.f32 %v1082, %v1210
        %v1221 = vmax.f32 %v1213, 0.0
        %v1222 = vmax.f32 %v1214, 0.0
        %v1223 = vmax.f32 %v1215, 0.0
        %v1224 = vmax.f32 %v1216, 0.0
        %v1225 = vmax.f32 %v1217, 0.0
        %v1226 = vmax.f32 %v1218, 0.0
        %v1227 = vmax.f32 %v1219, 0.0
        %v1228 = vmax.f32 %v1220, 0.0
        %1229 = vst [vmem:[#allocation3 + $0x20] sm:$0xff] %v1221
        %1230 = vst [vmem:[#allocation3 + $0x28] sm:$0xff] %v1222
        %1231 = vst [vmem:[#allocation3 + $0x30] sm:$0xff] %v1223
        %1232 = vst [vmem:[#allocation3 + $0x38] sm:$0xff] %v1224
        %1233 = vst [vmem:[#allocation3 + $0x40] sm:$0xff] %v1225
        %1234 = vst [vmem:[#allocation3 + $0x48] sm:$0xff] %v1226
        %1235 = vst [vmem:[#allocation3 + $0x50] sm:$0xff] %v1227
        %1236 = vst [vmem:[#allocation3 + $0x58] sm:$0xff] %v1228
        %v1237 = vld [vmem:[%s4] sm:$0x1]
        %v1239 = vlaneseq
        %v1240 = vshrl.u32 %v1239, 7
        %v1241 = vsub.s32 0, %v1240
        %v1242 = vrot.slane %v1237, %v1241
        %v1244 = vadd.f32 %v1242, 0.0
        %v1245 = vld [vmem:[#allocation3 + $0x18] sm:$0xff]
        %v1246 = vld [vmem:[#allocation3 + $0x20] sm:$0xff]
        %v1247 = vld [vmem:[#allocation3 + $0x28] sm:$0xff]
        %v1248 = vld [vmem:[#allocation3 + $0x30] sm:$0xff]
        %v1249 = vld [vmem:[#allocation3 + $0x38] sm:$0xff]
        %v1250 = vld [vmem:[#allocation3 + $0x40] sm:$0xff]
        %v1251 = vld [vmem:[#allocation3 + $0x48] sm:$0xff]
        %v1252 = vld [vmem:[#allocation3 + $0x50] sm:$0xff]
        %v1253 = vld [vmem:[#allocation9] sm:$0xff]
        %v1254 = vld [vmem:[#allocation9 + $0x8] sm:$0xff]
        %v1255 = vld [vmem:[#allocation9 + $0x10] sm:$0xff]
        %v1256 = vld [vmem:[#allocation9 + $0x18] sm:$0xff]
        %v1257 = vld [vmem:[#allocation9 + $0x20] sm:$0xff]
        %v1258 = vld [vmem:[#allocation9 + $0x28] sm:$0xff]
        %v1259 = vld [vmem:[#allocation9 + $0x30] sm:$0xff]
        %v1260 = vld [vmem:[#allocation9 + $0x38] sm:$0xff]
        %v1261 = vld [vmem:[#allocation9 + $0x40] sm:$0xff]
        %v1262 = vld [vmem:[#allocation9 + $0x48] sm:$0xff]
        %v1263 = vld [vmem:[#allocation9 + $0x50] sm:$0xff]
        %v1264 = vld [vmem:[#allocation9 + $0x58] sm:$0xff]
        %v1265 = vld [vmem:[#allocation9 + $0x60] sm:$0xff]
        %v1266 = vld [vmem:[#allocation9 + $0x68] sm:$0xff]
        %v1267 = vld [vmem:[#allocation9 + $0x70] sm:$0xff]
        %v1268 = vld [vmem:[#allocation9 + $0x78] sm:$0xff]
        %1269 = vmatprep.subr.mxu0 0.0
        %1270 = vmatpush1.msra.mxu0 %v1253
        %1271 = vmatprep.subr.mxu0 0.0
        %1272 = vmatpush1.msra.mxu0 %v1254
        %1273 = vmatprep.subr.mxu0 0.0
        %1274 = vmatpush1.msra.mxu0 %v1255
        %1275 = vmatprep.subr.mxu0 0.0
        %1276 = vmatpush1.msra.mxu0 %v1256
        %1277 = vmatprep.subr.mxu0 0.0
        %1278 = vmatpush1.msra.mxu0 %v1257
        %1279 = vmatprep.subr.mxu0 0.0
        %1280 = vmatpush1.msra.mxu0 %v1258
        %1281 = vmatprep.subr.mxu0 0.0
        %1282 = vmatpush1.msra.mxu0 %v1259
        %1283 = vmatprep.subr.mxu0 0.0
        %1284 = vmatpush1.msra.mxu0 %v1260
        %1285 = vmatprep.subr.mxu0 0.0
        %1286 = vmatpush1.msra.mxu0 %v1261
        %1287 = vmatprep.subr.mxu0 0.0
        %1288 = vmatpush1.msra.mxu0 %v1262
        %1289 = vmatprep.subr.mxu0 0.0
        %1290 = vmatpush1.msra.mxu0 %v1263
        %1291 = vmatprep.subr.mxu0 0.0
        %1292 = vmatpush1.msra.mxu0 %v1264
        %1293 = vmatprep.subr.mxu0 0.0
        %1294 = vmatpush1.msra.mxu0 %v1265
        %1295 = vmatprep.subr.mxu0 0.0
        %1296 = vmatpush1.msra.mxu0 %v1266
        %1297 = vmatprep.subr.mxu0 0.0
        %1298 = vmatpush1.msra.mxu0 %v1267
        %1299 = vmatprep.subr.mxu0 0.0
        %1300 = vmatpush1.msra.mxu0 %v1268
        %1301 = vmatprep.subr.mxu0 0.0
        %1302 = vmatpush1.msra.mxu0 0.0
        %1303 = vmatprep.subr.mxu0 0.0
        %1304 = vmatpush1.msra.mxu0 0.0
        %1305 = vmatprep.subr.mxu0 0.0
        %1306 = vmatpush1.msra.mxu0 0.0
        %1307 = vmatprep.subr.mxu0 0.0
        %1308 = vmatpush1.msra.mxu0 0.0
        %1309 = vmatprep.subr.mxu0 0.0
        %1310 = vmatpush1.msra.mxu0 0.0
        %1311 = vmatprep.subr.mxu0 0.0
        %1312 = vmatpush1.msra.mxu0 0.0
        %1313 = vmatprep.subr.mxu0 0.0
        %1314 = vmatpush1.msra.mxu0 0.0
        %1315 = vmatprep.subr.mxu0 0.0
        %1316 = vmatpush1.msra.mxu0 0.0
        %1317 = vmatprep.subr.mxu0 0.0
        %1318 = vmatpush1.msra.mxu0 0.0
        %1319 = vmatprep.subr.mxu0 0.0
        %1320 = vmatpush1.msra.mxu0 0.0
        %1321 = vmatprep.subr.mxu0 0.0
        %1322 = vmatpush1.msra.mxu0 0.0
        %1323 = vmatprep.subr.mxu0 0.0
        %1324 = vmatpush1.msra.mxu0 0.0
        %1325 = vmatprep.subr.mxu0 0.0
        %1326 = vmatpush1.msra.mxu0 0.0
        %1327 = vmatprep.subr.mxu0 0.0
        %1328 = vmatpush1.msra.mxu0 0.0
        %1329 = vmatprep.subr.mxu0 0.0
        %1330 = vmatpush1.msra.mxu0 0.0
        %1331 = vmatprep.subr.mxu0 0.0
        %1332 = vmatpush1.msra.mxu0 0.0
        %1333 = vmatprep.mubr.f32.mxu0 0.0
        %1334 = vmatmul.mubr.f32.gmra.mrb[0].mxu0 %v1245
        %v1335 = vpop.f32.mrb[0].mxu0
        %v1336 = vadd.f32 0.0, %v1335
        %v1337 = vpop.f32.mrb[0].mxu0
        %1338 = vmatprep.mubr.f32.mxu0 0.0
        %1339 = vmatmul.mubr.f32.gmra.mrb[0].mxu0 %v1246
        %v1340 = vpop.f32.mrb[0].mxu0
        %v1341 = vadd.f32 0.0, %v1340
        %v1342 = vpop.f32.mrb[0].mxu0
        %1343 = vmatprep.mubr.f32.mxu0 0.0
        %1344 = vmatmul.mubr.f32.gmra.mrb[0].mxu0 %v1247
        %v1345 = vpop.f32.mrb[0].mxu0
        %v1346 = vadd.f32 0.0, %v1345
        %v1347 = vpop.f32.mrb[0].mxu0
        %1348 = vmatprep.mubr.f32.mxu0 0.0
        %1349 = vmatmul.mubr.f32.gmra.mrb[0].mxu0 %v1248
        %v1350 = vpop.f32.mrb[0].mxu0
        %v1351 = vadd.f32 0.0, %v1350
        %v1352 = vpop.f32.mrb[0].mxu0
        %1353 = vmatprep.mubr.f32.mxu0 0.0
        %1354 = vmatmul.mubr.f32.gmra.mrb[0].mxu0 %v1249
        %v1355 = vpop.f32.mrb[0].mxu0
        %v1356 = vadd.f32 0.0, %v1355
        %v1357 = vpop.f32.mrb[0].mxu0
        %1358 = vmatprep.mubr.f32.mxu0 0.0
        %1359 = vmatmul.mubr.f32.gmra.mrb[0].mxu0 %v1250
        %v1360 = vpop.f32.mrb[0].mxu0
        %v1361 = vadd.f32 0.0, %v1360
        %v1362 = vpop.f32.mrb[0].mxu0
        %1363 = vmatprep.mubr.f32.mxu0 0.0
        %1364 = vmatmul.mubr.f32.gmra.mrb[0].mxu0 %v1251
        %v1365 = vpop.f32.mrb[0].mxu0
        %v1366 = vadd.f32 0.0, %v1365
        %v1367 = vpop.f32.mrb[0].mxu0
        %1368 = vmatprep.mubr.f32.mxu0 0.0
        %1369 = vmatmul.mubr.f32.gmra.mrb[0].mxu0 %v1252
        %v1370 = vpop.f32.mrb[0].mxu0
        %v1371 = vadd.f32 0.0, %v1370
        %v1372 = vpop.f32.mrb[0].mxu0
        %1373 = vdwg.mxu0
        %v1374 = vadd.f32 %v1244, %v1336
        %v1375 = vadd.f32 %v1244, %v1341
        %v1376 = vadd.f32 %v1244, %v1346
        %v1377 = vadd.f32 %v1244, %v1351
        %v1378 = vadd.f32 %v1244, %v1356
        %v1379 = vadd.f32 %v1244, %v1361
        %v1380 = vadd.f32 %v1244, %v1366
        %v1381 = vadd.f32 %v1244, %v1371
        %v1382 = vld [vmem:[#allocation3 + $0x20] sm:$0xff]
        %v1383 = vld [vmem:[#allocation3 + $0x28] sm:$0xff]
        %v1384 = vld [vmem:[#allocation3 + $0x30] sm:$0xff]
        %v1385 = vld [vmem:[#allocation3 + $0x38] sm:$0xff]
        %v1386 = vld [vmem:[#allocation3 + $0x40] sm:$0xff]
        %v1387 = vld [vmem:[#allocation3 + $0x48] sm:$0xff]
        %v1388 = vld [vmem:[#allocation3 + $0x50] sm:$0xff]
        %v1389 = vld [vmem:[#allocation3 + $0x58] sm:$0xff]
        %s1390 = scalar_lea.vmem [#allocation9], 128
        %v1391 = vld [vmem:[%s1390] sm:$0xff]
        %v1392 = vld [vmem:[%s1390 + $0x8] sm:$0xff]
        %v1393 = vld [vmem:[%s1390 + $0x10] sm:$0xff]
        %v1394 = vld [vmem:[%s1390 + $0x18] sm:$0xff]
        %v1395 = vld [vmem:[%s1390 + $0x20] sm:$0xff]
        %v1396 = vld [vmem:[%s1390 + $0x28] sm:$0xff]
        %v1397 = vld [vmem:[%s1390 + $0x30] sm:$0xff]
        %v1398 = vld [vmem:[%s1390 + $0x38] sm:$0xff]
        %v1399 = vld [vmem:[%s1390 + $0x40] sm:$0xff]
        %v1400 = vld [vmem:[%s1390 + $0x48] sm:$0xff]
        %v1401 = vld [vmem:[%s1390 + $0x50] sm:$0xff]
        %v1402 = vld [vmem:[%s1390 + $0x58] sm:$0xff]
        %v1403 = vld [vmem:[%s1390 + $0x60] sm:$0xff]
        %v1404 = vld [vmem:[%s1390 + $0x68] sm:$0xff]
        %v1405 = vld [vmem:[%s1390 + $0x70] sm:$0xff]
        %v1406 = vld [vmem:[%s1390 + $0x78] sm:$0xff]
        %1407 = vmatprep.subr.mxu0 0.0
        %1408 = vmatpush1.msra.mxu0 %v1391
        %1409 = vmatprep.subr.mxu0 0.0
        %1410 = vmatpush1.msra.mxu0 %v1392
        %1411 = vmatprep.subr.mxu0 0.0
        %1412 = vmatpush1.msra.mxu0 %v1393
        %1413 = vmatprep.subr.mxu0 0.0
        %1414 = vmatpush1.msra.mxu0 %v1394
        %1415 = vmatprep.subr.mxu0 0.0
        %1416 = vmatpush1.msra.mxu0 %v1395
        %1417 = vmatprep.subr.mxu0 0.0
        %1418 = vmatpush1.msra.mxu0 %v1396
        %1419 = vmatprep.subr.mxu0 0.0
        %1420 = vmatpush1.msra.mxu0 %v1397
        %1421 = vmatprep.subr.mxu0 0.0
        %1422 = vmatpush1.msra.mxu0 %v1398
        %1423 = vmatprep.subr.mxu0 0.0
        %1424 = vmatpush1.msra.mxu0 %v1399
        %1425 = vmatprep.subr.mxu0 0.0
        %1426 = vmatpush1.msra.mxu0 %v1400
        %1427 = vmatprep.subr.mxu0 0.0
        %1428 = vmatpush1.msra.mxu0 %v1401
        %1429 = vmatprep.subr.mxu0 0.0
        %1430 = vmatpush1.msra.mxu0 %v1402
        %1431 = vmatprep.subr.mxu0 0.0
        %1432 = vmatpush1.msra.mxu0 %v1403
        %1433 = vmatprep.subr.mxu0 0.0
        %1434 = vmatpush1.msra.mxu0 %v1404
        %1435 = vmatprep.subr.mxu0 0.0
        %1436 = vmatpush1.msra.mxu0 %v1405
        %1437 = vmatprep.subr.mxu0 0.0
        %1438 = vmatpush1.msra.mxu0 %v1406
        %1439 = vmatprep.subr.mxu0 0.0
        %1440 = vmatpush1.msra.mxu0 0.0
        %1441 = vmatprep.subr.mxu0 0.0
        %1442 = vmatpush1.msra.mxu0 0.0
        %1443 = vmatprep.subr.mxu0 0.0
        %1444 = vmatpush1.msra.mxu0 0.0
        %1445 = vmatprep.subr.mxu0 0.0
        %1446 = vmatpush1.msra.mxu0 0.0
        %1447 = vmatprep.subr.mxu0 0.0
        %1448 = vmatpush1.msra.mxu0 0.0
        %1449 = vmatprep.subr.mxu0 0.0
        %1450 = vmatpush1.msra.mxu0 0.0
        %1451 = vmatprep.subr.mxu0 0.0
        %1452 = vmatpush1.msra.mxu0 0.0
        %1453 = vmatprep.subr.mxu0 0.0
        %1454 = vmatpush1.msra.mxu0 0.0
        %1455 = vmatprep.subr.mxu0 0.0
        %1456 = vmatpush1.msra.mxu0 0.0
        %1457 = vmatprep.subr.mxu0 0.0
        %1458 = vmatpush1.msra.mxu0 0.0
        %1459 = vmatprep.subr.mxu0 0.0
        %1460 = vmatpush1.msra.mxu0 0.0
        %1461 = vmatprep.subr.mxu0 0.0
        %1462 = vmatpush1.msra.mxu0 0.0
        %1463 = vmatprep.subr.mxu0 0.0
        %1464 = vmatpush1.msra.mxu0 0.0
        %1465 = vmatprep.subr.mxu0 0.0
        %1466 = vmatpush1.msra.mxu0 0.0
        %1467 = vmatprep.subr.mxu0 0.0
        %1468 = vmatpush1.msra.mxu0 0.0
        %1469 = vmatprep.subr.mxu0 0.0
        %1470 = vmatpush1.msra.mxu0 0.0
        %1471 = vmatprep.mubr.f32.mxu0 0.0
        %1472 = vmatmul.mubr.f32.gmra.mrb[0].mxu0 %v1382
        %v1473 = vpop.f32.mrb[0].mxu0
        %v1474 = vadd.f32 0.0, %v1473
        %v1475 = vpop.f32.mrb[0].mxu0
        %1476 = vmatprep.mubr.f32.mxu0 0.0
        %1477 = vmatmul.mubr.f32.gmra.mrb[0].mxu0 %v1383
        %v1478 = vpop.f32.mrb[0].mxu0
        %v1479 = vadd.f32 0.0, %v1478
        %v1480 = vpop.f32.mrb[0].mxu0
        %1481 = vmatprep.mubr.f32.mxu0 0.0
        %1482 = vmatmul.mubr.f32.gmra.mrb[0].mxu0 %v1384
        %v1483 = vpop.f32.mrb[0].mxu0
        %v1484 = vadd.f32 0.0, %v1483
        %v1485 = vpop.f32.mrb[0].mxu0
        %1486 = vmatprep.mubr.f32.mxu0 0.0
        %1487 = vmatmul.mubr.f32.gmra.mrb[0].mxu0 %v1385
        %v1488 = vpop.f32.mrb[0].mxu0
        %v1489 = vadd.f32 0.0, %v1488
        %v1490 = vpop.f32.mrb[0].mxu0
        %1491 = vmatprep.mubr.f32.mxu0 0.0
        %1492 = vmatmul.mubr.f32.gmra.mrb[0].mxu0 %v1386
        %v1493 = vpop.f32.mrb[0].mxu0
        %v1494 = vadd.f32 0.0, %v1493
        %v1495 = vpop.f32.mrb[0].mxu0
        %1496 = vmatprep.mubr.f32.mxu0 0.0
        %1497 = vmatmul.mubr.f32.gmra.mrb[0].mxu0 %v1387
        %v1498 = vpop.f32.mrb[0].mxu0
        %v1499 = vadd.f32 0.0, %v1498
        %v1500 = vpop.f32.mrb[0].mxu0
        %1501 = vmatprep.mubr.f32.mxu0 0.0
        %1502 = vmatmul.mubr.f32.gmra.mrb[0].mxu0 %v1388
        %v1503 = vpop.f32.mrb[0].mxu0
        %v1504 = vadd.f32 0.0, %v1503
        %v1505 = vpop.f32.mrb[0].mxu0
        %1506 = vmatprep.mubr.f32.mxu0 0.0
        %1507 = vmatmul.mubr.f32.gmra.mrb[0].mxu0 %v1389
        %v1508 = vpop.f32.mrb[0].mxu0
        %v1509 = vadd.f32 0.0, %v1508
        %v1510 = vpop.f32.mrb[0].mxu0
        %1511 = vdwg.mxu0
        %v1512 = vadd.f32 %v1374, %v1474
        %v1513 = vadd.f32 %v1375, %v1479
        %v1514 = vadd.f32 %v1376, %v1484
        %v1515 = vadd.f32 %v1377, %v1489
        %v1516 = vadd.f32 %v1378, %v1494
        %v1517 = vadd.f32 %v1379, %v1499
        %v1518 = vadd.f32 %v1380, %v1504
        %v1519 = vadd.f32 %v1381, %v1509
        %v1520 = vmax.f32 %v1512, 0.0
        %v1521 = vmax.f32 %v1513, 0.0
        %v1522 = vmax.f32 %v1514, 0.0
        %v1523 = vmax.f32 %v1515, 0.0
        %v1524 = vmax.f32 %v1516, 0.0
        %v1525 = vmax.f32 %v1517, 0.0
        %v1526 = vmax.f32 %v1518, 0.0
        %v1527 = vmax.f32 %v1519, 0.0
        %v1528 = vld [vmem:[%s7] sm:$0x1]
        %v1530 = vlaneseq
        %v1531 = vshrl.u32 %v1530, 7
        %v1532 = vsub.s32 0, %v1531
        %v1533 = vrot.slane %v1528, %v1532
        %v1535 = vmul.f32 %v1520, %v1533
        %v1536 = vmul.f32 %v1521, %v1533
        %v1537 = vmul.f32 %v1522, %v1533
        %v1538 = vmul.f32 %v1523, %v1533
        %v1539 = vmul.f32 %v1524, %v1533
        %v1540 = vmul.f32 %v1525, %v1533
        %v1541 = vmul.f32 %v1526, %v1533
        %v1542 = vmul.f32 %v1527, %v1533
        %v1543 = vld [vmem:[%s8] sm:$0x1]
        %v1545 = vlaneseq
        %v1546 = vshrl.u32 %v1545, 7
        %v1547 = vsub.s32 0, %v1546
        %v1548 = vrot.slane %v1543, %v1547
        %v1550 = vadd.f32 %v1535, %v1548
        %v1551 = vadd.f32 %v1536, %v1548
        %v1552 = vadd.f32 %v1537, %v1548
        %v1553 = vadd.f32 %v1538, %v1548
        %v1554 = vadd.f32 %v1539, %v1548
        %v1555 = vadd.f32 %v1540, %v1548
        %v1556 = vadd.f32 %v1541, %v1548
        %v1557 = vadd.f32 %v1542, %v1548
        %v1558 = vld [vmem:[#allocation2 + $0x20] sm:$0xff]
        %v1559 = vld [vmem:[#allocation2 + $0x28] sm:$0xff]
        %v1560 = vld [vmem:[#allocation2 + $0x30] sm:$0xff]
        %v1561 = vld [vmem:[#allocation2 + $0x38] sm:$0xff]
        %v1562 = vld [vmem:[#allocation2 + $0x40] sm:$0xff]
        %v1563 = vld [vmem:[#allocation2 + $0x48] sm:$0xff]
        %v1564 = vld [vmem:[#allocation2 + $0x50] sm:$0xff]
        %v1565 = vld [vmem:[#allocation2 + $0x58] sm:$0xff]
        %v1566 = vld [vmem:[#allocation10] sm:$0xff]
        %v1567 = vld [vmem:[#allocation10 + $0x8] sm:$0xff]
        %v1568 = vld [vmem:[#allocation10 + $0x10] sm:$0xff]
        %v1569 = vld [vmem:[#allocation10 + $0x18] sm:$0xff]
        %v1570 = vld [vmem:[#allocation10 + $0x20] sm:$0xff]
        %v1571 = vld [vmem:[#allocation10 + $0x28] sm:$0xff]
        %v1572 = vld [vmem:[#allocation10 + $0x30] sm:$0xff]
        %v1573 = vld [vmem:[#allocation10 + $0x38] sm:$0xff]
        %v1574 = vld [vmem:[#allocation10 + $0x40] sm:$0xff]
        %v1575 = vld [vmem:[#allocation10 + $0x48] sm:$0xff]
        %v1576 = vld [vmem:[#allocation10 + $0x50] sm:$0xff]
        %v1577 = vld [vmem:[#allocation10 + $0x58] sm:$0xff]
        %v1578 = vld [vmem:[#allocation10 + $0x60] sm:$0xff]
        %v1579 = vld [vmem:[#allocation10 + $0x68] sm:$0xff]
        %v1580 = vld [vmem:[#allocation10 + $0x70] sm:$0xff]
        %v1581 = vld [vmem:[#allocation10 + $0x78] sm:$0xff]
        %v1582 = vld [vmem:[%s6] sm:$0x1]
        %v1584 = vlaneseq
        %v1585 = vshrl.u32 %v1584, 7
        %v1586 = vsub.s32 0, %v1585
        %v1587 = vrot.slane %v1582, %v1586
        %1589 = vmatprep.subr.mxu0 0.0
        %1590 = vmatpush1.msra.mxu0 %v1566
        %1591 = vmatprep.subr.mxu0 0.0
        %1592 = vmatpush1.msra.mxu0 %v1567
        %1593 = vmatprep.subr.mxu0 0.0
        %1594 = vmatpush1.msra.mxu0 %v1568
        %1595 = vmatprep.subr.mxu0 0.0
        %1596 = vmatpush1.msra.mxu0 %v1569
        %1597 = vmatprep.subr.mxu0 0.0
        %1598 = vmatpush1.msra.mxu0 %v1570
        %1599 = vmatprep.subr.mxu0 0.0
        %1600 = vmatpush1.msra.mxu0 %v1571
        %1601 = vmatprep.subr.mxu0 0.0
        %1602 = vmatpush1.msra.mxu0 %v1572
        %1603 = vmatprep.subr.mxu0 0.0
        %1604 = vmatpush1.msra.mxu0 %v1573
        %1605 = vmatprep.subr.mxu0 0.0
        %1606 = vmatpush1.msra.mxu0 %v1574
        %1607 = vmatprep.subr.mxu0 0.0
        %1608 = vmatpush1.msra.mxu0 %v1575
        %1609 = vmatprep.subr.mxu0 0.0
        %1610 = vmatpush1.msra.mxu0 %v1576
        %1611 = vmatprep.subr.mxu0 0.0
        %1612 = vmatpush1.msra.mxu0 %v1577
        %1613 = vmatprep.subr.mxu0 0.0
        %1614 = vmatpush1.msra.mxu0 %v1578
        %1615 = vmatprep.subr.mxu0 0.0
        %1616 = vmatpush1.msra.mxu0 %v1579
        %1617 = vmatprep.subr.mxu0 0.0
        %1618 = vmatpush1.msra.mxu0 %v1580
        %1619 = vmatprep.subr.mxu0 0.0
        %1620 = vmatpush1.msra.mxu0 %v1581
        %1621 = vmatprep.subr.mxu0 0.0
        %1622 = vmatpush1.msra.mxu0 0.0
        %1623 = vmatprep.subr.mxu0 0.0
        %1624 = vmatpush1.msra.mxu0 0.0
        %1625 = vmatprep.subr.mxu0 0.0
        %1626 = vmatpush1.msra.mxu0 0.0
        %1627 = vmatprep.subr.mxu0 0.0
        %1628 = vmatpush1.msra.mxu0 0.0
        %1629 = vmatprep.subr.mxu0 0.0
        %1630 = vmatpush1.msra.mxu0 0.0
        %1631 = vmatprep.subr.mxu0 0.0
        %1632 = vmatpush1.msra.mxu0 0.0
        %1633 = vmatprep.subr.mxu0 0.0
        %1634 = vmatpush1.msra.mxu0 0.0
        %1635 = vmatprep.subr.mxu0 0.0
        %1636 = vmatpush1.msra.mxu0 0.0
        %1637 = vmatprep.subr.mxu0 0.0
        %1638 = vmatpush1.msra.mxu0 0.0
        %1639 = vmatprep.subr.mxu0 0.0
        %1640 = vmatpush1.msra.mxu0 0.0
        %1641 = vmatprep.subr.mxu0 0.0
        %1642 = vmatpush1.msra.mxu0 0.0
        %1643 = vmatprep.subr.mxu0 0.0
        %1644 = vmatpush1.msra.mxu0 0.0
        %1645 = vmatprep.subr.mxu0 0.0
        %1646 = vmatpush1.msra.mxu0 0.0
        %1647 = vmatprep.subr.mxu0 0.0
        %1648 = vmatpush1.msra.mxu0 0.0
        %1649 = vmatprep.subr.mxu0 0.0
        %1650 = vmatpush1.msra.mxu0 0.0
        %1651 = vmatprep.subr.mxu0 0.0
        %1652 = vmatpush1.msra.mxu0 0.0
        %1653 = vmatprep.mubr.f32.mxu0 0.0
        %1654 = vmatmul.mubr.f32.gmra.mrb[0].mxu0 %v1558
        %v1655 = vpop.f32.mrb[0].mxu0
        %v1656 = vadd.f32 %v1587, %v1655
        %v1657 = vpop.f32.mrb[0].mxu0
        %1658 = vmatprep.mubr.f32.mxu0 0.0
        %1659 = vmatmul.mubr.f32.gmra.mrb[0].mxu0 %v1559
        %v1660 = vpop.f32.mrb[0].mxu0
        %v1661 = vadd.f32 %v1587, %v1660
        %v1662 = vpop.f32.mrb[0].mxu0
        %1663 = vmatprep.mubr.f32.mxu0 0.0
        %1664 = vmatmul.mubr.f32.gmra.mrb[0].mxu0 %v1560
        %v1665 = vpop.f32.mrb[0].mxu0
        %v1666 = vadd.f32 %v1587, %v1665
        %v1667 = vpop.f32.mrb[0].mxu0
        %1668 = vmatprep.mubr.f32.mxu0 0.0
        %1669 = vmatmul.mubr.f32.gmra.mrb[0].mxu0 %v1561
        %v1670 = vpop.f32.mrb[0].mxu0
        %v1671 = vadd.f32 %v1587, %v1670
        %v1672 = vpop.f32.mrb[0].mxu0
        %1673 = vmatprep.mubr.f32.mxu0 0.0
        %1674 = vmatmul.mubr.f32.gmra.mrb[0].mxu0 %v1562
        %v1675 = vpop.f32.mrb[0].mxu0
        %v1676 = vadd.f32 %v1587, %v1675
        %v1677 = vpop.f32.mrb[0].mxu0
        %1678 = vmatprep.mubr.f32.mxu0 0.0
        %1679 = vmatmul.mubr.f32.gmra.mrb[0].mxu0 %v1563
        %v1680 = vpop.f32.mrb[0].mxu0
        %v1681 = vadd.f32 %v1587, %v1680
        %v1682 = vpop.f32.mrb[0].mxu0
        %1683 = vmatprep.mubr.f32.mxu0 0.0
        %1684 = vmatmul.mubr.f32.gmra.mrb[0].mxu0 %v1564
        %v1685 = vpop.f32.mrb[0].mxu0
        %v1686 = vadd.f32 %v1587, %v1685
        %v1687 = vpop.f32.mrb[0].mxu0
        %1688 = vmatprep.mubr.f32.mxu0 0.0
        %1689 = vmatmul.mubr.f32.gmra.mrb[0].mxu0 %v1565
        %v1690 = vpop.f32.mrb[0].mxu0
        %v1691 = vadd.f32 %v1587, %v1690
        %v1692 = vpop.f32.mrb[0].mxu0
        %1693 = vdwg.mxu0
        %v1694 = vadd.f32 %v1656, %v1550
        %v1695 = vadd.f32 %v1661, %v1551
        %v1696 = vadd.f32 %v1666, %v1552
        %v1697 = vadd.f32 %v1671, %v1553
        %v1698 = vadd.f32 %v1676, %v1554
        %v1699 = vadd.f32 %v1681, %v1555
        %v1700 = vadd.f32 %v1686, %v1556
        %v1701 = vadd.f32 %v1691, %v1557
        %v1702 = vmax.f32 %v1694, 0.0
        %v1703 = vmax.f32 %v1695, 0.0
        %v1704 = vmax.f32 %v1696, 0.0
        %v1705 = vmax.f32 %v1697, 0.0
        %v1706 = vmax.f32 %v1698, 0.0
        %v1707 = vmax.f32 %v1699, 0.0
        %v1708 = vmax.f32 %v1700, 0.0
        %v1709 = vmax.f32 %v1701, 0.0
        %1710 = vst [vmem:[#allocation2 + $0x20] sm:$0xff] %v1702
        %1711 = vst [vmem:[#allocation2 + $0x28] sm:$0xff] %v1703
        %1712 = vst [vmem:[#allocation2 + $0x30] sm:$0xff] %v1704
        %1713 = vst [vmem:[#allocation2 + $0x38] sm:$0xff] %v1705
        %1714 = vst [vmem:[#allocation2 + $0x40] sm:$0xff] %v1706
        %1715 = vst [vmem:[#allocation2 + $0x48] sm:$0xff] %v1707
        %1716 = vst [vmem:[#allocation2 + $0x50] sm:$0xff] %v1708
        %1717 = vst [vmem:[#allocation2 + $0x58] sm:$0xff] %v1709
        %v1718 = vld [vmem:[%s10] sm:$0x1]
        %v1720 = vlaneseq
        %v1721 = vshrl.u32 %v1720, 7
        %v1722 = vsub.s32 0, %v1721
        %v1723 = vrot.slane %v1718, %v1722
        %v1725 = vadd.f32 %v1723, 0.0
        %v1726 = vld [vmem:[#allocation2 + $0x10] sm:$0xff]
        %v1727 = vld [vmem:[#allocation2 + $0x18] sm:$0xff]
        %v1728 = vld [vmem:[#allocation2 + $0x20] sm:$0xff]
        %v1729 = vld [vmem:[#allocation2 + $0x28] sm:$0xff]
        %v1730 = vld [vmem:[#allocation2 + $0x30] sm:$0xff]
        %v1731 = vld [vmem:[#allocation2 + $0x38] sm:$0xff]
        %v1732 = vld [vmem:[#allocation2 + $0x40] sm:$0xff]
        %v1733 = vld [vmem:[#allocation2 + $0x48] sm:$0xff]
        %v1734 = vld [vmem:[#allocation12] sm:$0xff]
        %v1735 = vld [vmem:[#allocation12 + $0x8] sm:$0xff]
        %v1736 = vld [vmem:[#allocation12 + $0x10] sm:$0xff]
        %v1737 = vld [vmem:[#allocation12 + $0x18] sm:$0xff]
        %v1738 = vld [vmem:[#allocation12 + $0x20] sm:$0xff]
        %v1739 = vld [vmem:[#allocation12 + $0x28] sm:$0xff]
        %v1740 = vld [vmem:[#allocation12 + $0x30] sm:$0xff]
        %v1741 = vld [vmem:[#allocation12 + $0x38] sm:$0xff]
        %v1742 = vld [vmem:[#allocation12 + $0x40] sm:$0xff]
        %v1743 = vld [vmem:[#allocation12 + $0x48] sm:$0xff]
        %v1744 = vld [vmem:[#allocation12 + $0x50] sm:$0xff]
        %v1745 = vld [vmem:[#allocation12 + $0x58] sm:$0xff]
        %v1746 = vld [vmem:[#allocation12 + $0x60] sm:$0xff]
        %v1747 = vld [vmem:[#allocation12 + $0x68] sm:$0xff]
        %v1748 = vld [vmem:[#allocation12 + $0x70] sm:$0xff]
        %v1749 = vld [vmem:[#allocation12 + $0x78] sm:$0xff]
        %1750 = vmatprep.subr.mxu0 0.0
        %1751 = vmatpush1.msra.mxu0 %v1734
        %1752 = vmatprep.subr.mxu0 0.0
        %1753 = vmatpush1.msra.mxu0 %v1735
        %1754 = vmatprep.subr.mxu0 0.0
        %1755 = vmatpush1.msra.mxu0 %v1736
        %1756 = vmatprep.subr.mxu0 0.0
        %1757 = vmatpush1.msra.mxu0 %v1737
        %1758 = vmatprep.subr.mxu0 0.0
        %1759 = vmatpush1.msra.mxu0 %v1738
        %1760 = vmatprep.subr.mxu0 0.0
        %1761 = vmatpush1.msra.mxu0 %v1739
        %1762 = vmatprep.subr.mxu0 0.0
        %1763 = vmatpush1.msra.mxu0 %v1740
        %1764 = vmatprep.subr.mxu0 0.0
        %1765 = vmatpush1.msra.mxu0 %v1741
        %1766 = vmatprep.subr.mxu0 0.0
        %1767 = vmatpush1.msra.mxu0 %v1742
        %1768 = vmatprep.subr.mxu0 0.0
        %1769 = vmatpush1.msra.mxu0 %v1743
        %1770 = vmatprep.subr.mxu0 0.0
        %1771 = vmatpush1.msra.mxu0 %v1744
        %1772 = vmatprep.subr.mxu0 0.0
        %1773 = vmatpush1.msra.mxu0 %v1745
        %1774 = vmatprep.subr.mxu0 0.0
        %1775 = vmatpush1.msra.mxu0 %v1746
        %1776 = vmatprep.subr.mxu0 0.0
        %1777 = vmatpush1.msra.mxu0 %v1747
        %1778 = vmatprep.subr.mxu0 0.0
        %1779 = vmatpush1.msra.mxu0 %v1748
        %1780 = vmatprep.subr.mxu0 0.0
        %1781 = vmatpush1.msra.mxu0 %v1749
        %1782 = vmatprep.subr.mxu0 0.0
        %1783 = vmatpush1.msra.mxu0 0.0
        %1784 = vmatprep.subr.mxu0 0.0
        %1785 = vmatpush1.msra.mxu0 0.0
        %1786 = vmatprep.subr.mxu0 0.0
        %1787 = vmatpush1.msra.mxu0 0.0
        %1788 = vmatprep.subr.mxu0 0.0
        %1789 = vmatpush1.msra.mxu0 0.0
        %1790 = vmatprep.subr.mxu0 0.0
        %1791 = vmatpush1.msra.mxu0 0.0
        %1792 = vmatprep.subr.mxu0 0.0
        %1793 = vmatpush1.msra.mxu0 0.0
        %1794 = vmatprep.subr.mxu0 0.0
        %1795 = vmatpush1.msra.mxu0 0.0
        %1796 = vmatprep.subr.mxu0 0.0
        %1797 = vmatpush1.msra.mxu0 0.0
        %1798 = vmatprep.subr.mxu0 0.0
        %1799 = vmatpush1.msra.mxu0 0.0
        %1800 = vmatprep.subr.mxu0 0.0
        %1801 = vmatpush1.msra.mxu0 0.0
        %1802 = vmatprep.subr.mxu0 0.0
        %1803 = vmatpush1.msra.mxu0 0.0
        %1804 = vmatprep.subr.mxu0 0.0
        %1805 = vmatpush1.msra.mxu0 0.0
        %1806 = vmatprep.subr.mxu0 0.0
        %1807 = vmatpush1.msra.mxu0 0.0
        %1808 = vmatprep.subr.mxu0 0.0
        %1809 = vmatpush1.msra.mxu0 0.0
        %1810 = vmatprep.subr.mxu0 0.0
        %1811 = vmatpush1.msra.mxu0 0.0
        %1812 = vmatprep.subr.mxu0 0.0
        %1813 = vmatpush1.msra.mxu0 0.0
        %1814 = vmatprep.mubr.f32.mxu0 0.0
        %1815 = vmatmul.mubr.f32.gmra.mrb[0].mxu0 %v1726
        %v1816 = vpop.f32.mrb[0].mxu0
        %v1817 = vadd.f32 0.0, %v1816
        %v1818 = vpop.f32.mrb[0].mxu0
        %1819 = vmatprep.mubr.f32.mxu0 0.0
        %1820 = vmatmul.mubr.f32.gmra.mrb[0].mxu0 %v1727
        %v1821 = vpop.f32.mrb[0].mxu0
        %v1822 = vadd.f32 0.0, %v1821
        %v1823 = vpop.f32.mrb[0].mxu0
        %1824 = vmatprep.mubr.f32.mxu0 0.0
        %1825 = vmatmul.mubr.f32.gmra.mrb[0].mxu0 %v1728
        %v1826 = vpop.f32.mrb[0].mxu0
        %v1827 = vadd.f32 0.0, %v1826
        %v1828 = vpop.f32.mrb[0].mxu0
        %1829 = vmatprep.mubr.f32.mxu0 0.0
        %1830 = vmatmul.mubr.f32.gmra.mrb[0].mxu0 %v1729
        %v1831 = vpop.f32.mrb[0].mxu0
        %v1832 = vadd.f32 0.0, %v1831
        %v1833 = vpop.f32.mrb[0].mxu0
        %1834 = vmatprep.mubr.f32.mxu0 0.0
        %1835 = vmatmul.mubr.f32.gmra.mrb[0].mxu0 %v1730
        %v1836 = vpop.f32.mrb[0].mxu0
        %v1837 = vadd.f32 0.0, %v1836
        %v1838 = vpop.f32.mrb[0].mxu0
        %1839 = vmatprep.mubr.f32.mxu0 0.0
        %1840 = vmatmul.mubr.f32.gmra.mrb[0].mxu0 %v1731
        %v1841 = vpop.f32.mrb[0].mxu0
        %v1842 = vadd.f32 0.0, %v1841
        %v1843 = vpop.f32.mrb[0].mxu0
        %1844 = vmatprep.mubr.f32.mxu0 0.0
        %1845 = vmatmul.mubr.f32.gmra.mrb[0].mxu0 %v1732
        %v1846 = vpop.f32.mrb[0].mxu0
        %v1847 = vadd.f32 0.0, %v1846
        %v1848 = vpop.f32.mrb[0].mxu0
        %1849 = vmatprep.mubr.f32.mxu0 0.0
        %1850 = vmatmul.mubr.f32.gmra.mrb[0].mxu0 %v1733
        %v1851 = vpop.f32.mrb[0].mxu0
        %v1852 = vadd.f32 0.0, %v1851
        %v1853 = vpop.f32.mrb[0].mxu0
        %1854 = vdwg.mxu0
        %v1855 = vadd.f32 %v1725, %v1817
        %v1856 = vadd.f32 %v1725, %v1822
        %v1857 = vadd.f32 %v1725, %v1827
        %v1858 = vadd.f32 %v1725, %v1832
        %v1859 = vadd.f32 %v1725, %v1837
        %v1860 = vadd.f32 %v1725, %v1842
        %v1861 = vadd.f32 %v1725, %v1847
        %v1862 = vadd.f32 %v1725, %v1852
        %v1863 = vld [vmem:[#allocation2 + $0x20] sm:$0xff]
        %v1864 = vld [vmem:[#allocation2 + $0x28] sm:$0xff]
        %v1865 = vld [vmem:[#allocation2 + $0x30] sm:$0xff]
        %v1866 = vld [vmem:[#allocation2 + $0x38] sm:$0xff]
        %v1867 = vld [vmem:[#allocation2 + $0x40] sm:$0xff]
        %v1868 = vld [vmem:[#allocation2 + $0x48] sm:$0xff]
        %v1869 = vld [vmem:[#allocation2 + $0x50] sm:$0xff]
        %v1870 = vld [vmem:[#allocation2 + $0x58] sm:$0xff]
        %s1871 = scalar_lea.vmem [#allocation12], 128
        %v1872 = vld [vmem:[%s1871] sm:$0xff]
        %v1873 = vld [vmem:[%s1871 + $0x8] sm:$0xff]
        %v1874 = vld [vmem:[%s1871 + $0x10] sm:$0xff]
        %v1875 = vld [vmem:[%s1871 + $0x18] sm:$0xff]
        %v1876 = vld [vmem:[%s1871 + $0x20] sm:$0xff]
        %v1877 = vld [vmem:[%s1871 + $0x28] sm:$0xff]
        %v1878 = vld [vmem:[%s1871 + $0x30] sm:$0xff]
        %v1879 = vld [vmem:[%s1871 + $0x38] sm:$0xff]
        %v1880 = vld [vmem:[%s1871 + $0x40] sm:$0xff]
        %v1881 = vld [vmem:[%s1871 + $0x48] sm:$0xff]
        %v1882 = vld [vmem:[%s1871 + $0x50] sm:$0xff]
        %v1883 = vld [vmem:[%s1871 + $0x58] sm:$0xff]
        %v1884 = vld [vmem:[%s1871 + $0x60] sm:$0xff]
        %v1885 = vld [vmem:[%s1871 + $0x68] sm:$0xff]
        %v1886 = vld [vmem:[%s1871 + $0x70] sm:$0xff]
        %v1887 = vld [vmem:[%s1871 + $0x78] sm:$0xff]
        %1888 = vmatprep.subr.mxu0 0.0
        %1889 = vmatpush1.msra.mxu0 %v1872
        %1890 = vmatprep.subr.mxu0 0.0
        %1891 = vmatpush1.msra.mxu0 %v1873
        %1892 = vmatprep.subr.mxu0 0.0
        %1893 = vmatpush1.msra.mxu0 %v1874
        %1894 = vmatprep.subr.mxu0 0.0
        %1895 = vmatpush1.msra.mxu0 %v1875
        %1896 = vmatprep.subr.mxu0 0.0
        %1897 = vmatpush1.msra.mxu0 %v1876
        %1898 = vmatprep.subr.mxu0 0.0
        %1899 = vmatpush1.msra.mxu0 %v1877
        %1900 = vmatprep.subr.mxu0 0.0
        %1901 = vmatpush1.msra.mxu0 %v1878
        %1902 = vmatprep.subr.mxu0 0.0
        %1903 = vmatpush1.msra.mxu0 %v1879
        %1904 = vmatprep.subr.mxu0 0.0
        %1905 = vmatpush1.msra.mxu0 %v1880
        %1906 = vmatprep.subr.mxu0 0.0
        %1907 = vmatpush1.msra.mxu0 %v1881
        %1908 = vmatprep.subr.mxu0 0.0
        %1909 = vmatpush1.msra.mxu0 %v1882
        %1910 = vmatprep.subr.mxu0 0.0
        %1911 = vmatpush1.msra.mxu0 %v1883
        %1912 = vmatprep.subr.mxu0 0.0
        %1913 = vmatpush1.msra.mxu0 %v1884
        %1914 = vmatprep.subr.mxu0 0.0
        %1915 = vmatpush1.msra.mxu0 %v1885
        %1916 = vmatprep.subr.mxu0 0.0
        %1917 = vmatpush1.msra.mxu0 %v1886
        %1918 = vmatprep.subr.mxu0 0.0
        %1919 = vmatpush1.msra.mxu0 %v1887
        %1920 = vmatprep.subr.mxu0 0.0
        %1921 = vmatpush1.msra.mxu0 0.0
        %1922 = vmatprep.subr.mxu0 0.0
        %1923 = vmatpush1.msra.mxu0 0.0
        %1924 = vmatprep.subr.mxu0 0.0
        %1925 = vmatpush1.msra.mxu0 0.0
        %1926 = vmatprep.subr.mxu0 0.0
        %1927 = vmatpush1.msra.mxu0 0.0
        %1928 = vmatprep.subr.mxu0 0.0
        %1929 = vmatpush1.msra.mxu0 0.0
        %1930 = vmatprep.subr.mxu0 0.0
        %1931 = vmatpush1.msra.mxu0 0.0
        %1932 = vmatprep.subr.mxu0 0.0
        %1933 = vmatpush1.msra.mxu0 0.0
        %1934 = vmatprep.subr.mxu0 0.0
        %1935 = vmatpush1.msra.mxu0 0.0
        %1936 = vmatprep.subr.mxu0 0.0
        %1937 = vmatpush1.msra.mxu0 0.0
        %1938 = vmatprep.subr.mxu0 0.0
        %1939 = vmatpush1.msra.mxu0 0.0
        %1940 = vmatprep.subr.mxu0 0.0
        %1941 = vmatpush1.msra.mxu0 0.0
        %1942 = vmatprep.subr.mxu0 0.0
        %1943 = vmatpush1.msra.mxu0 0.0
        %1944 = vmatprep.subr.mxu0 0.0
        %1945 = vmatpush1.msra.mxu0 0.0
        %1946 = vmatprep.subr.mxu0 0.0
        %1947 = vmatpush1.msra.mxu0 0.0
        %1948 = vmatprep.subr.mxu0 0.0
        %1949 = vmatpush1.msra.mxu0 0.0
        %1950 = vmatprep.subr.mxu0 0.0
        %1951 = vmatpush1.msra.mxu0 0.0
        %1952 = vmatprep.mubr.f32.mxu0 0.0
        %1953 = vmatmul.mubr.f32.gmra.mrb[0].mxu0 %v1863
        %v1954 = vpop.f32.mrb[0].mxu0
        %v1955 = vadd.f32 0.0, %v1954
        %v1956 = vpop.f32.mrb[0].mxu0
        %1957 = vmatprep.mubr.f32.mxu0 0.0
        %1958 = vmatmul.mubr.f32.gmra.mrb[0].mxu0 %v1864
        %v1959 = vpop.f32.mrb[0].mxu0
        %v1960 = vadd.f32 0.0, %v1959
        %v1961 = vpop.f32.mrb[0].mxu0
        %1962 = vmatprep.mubr.f32.mxu0 0.0
        %1963 = vmatmul.mubr.f32.gmra.mrb[0].mxu0 %v1865
        %v1964 = vpop.f32.mrb[0].mxu0
        %v1965 = vadd.f32 0.0, %v1964
        %v1966 = vpop.f32.mrb[0].mxu0
        %1967 = vmatprep.mubr.f32.mxu0 0.0
        %1968 = vmatmul.mubr.f32.gmra.mrb[0].mxu0 %v1866
        %v1969 = vpop.f32.mrb[0].mxu0
        %v1970 = vadd.f32 0.0, %v1969
        %v1971 = vpop.f32.mrb[0].mxu0
        %1972 = vmatprep.mubr.f32.mxu0 0.0
        %1973 = vmatmul.mubr.f32.gmra.mrb[0].mxu0 %v1867
        %v1974 = vpop.f32.mrb[0].mxu0
        %v1975 = vadd.f32 0.0, %v1974
        %v1976 = vpop.f32.mrb[0].mxu0
        %1977 = vmatprep.mubr.f32.mxu0 0.0
        %1978 = vmatmul.mubr.f32.gmra.mrb[0].mxu0 %v1868
        %v1979 = vpop.f32.mrb[0].mxu0
        %v1980 = vadd.f32 0.0, %v1979
        %v1981 = vpop.f32.mrb[0].mxu0
        %1982 = vmatprep.mubr.f32.mxu0 0.0
        %1983 = vmatmul.mubr.f32.gmra.mrb[0].mxu0 %v1869
        %v1984 = vpop.f32.mrb[0].mxu0
        %v1985 = vadd.f32 0.0, %v1984
        %v1986 = vpop.f32.mrb[0].mxu0
        %1987 = vmatprep.mubr.f32.mxu0 0.0
        %1988 = vmatmul.mubr.f32.gmra.mrb[0].mxu0 %v1870
        %v1989 = vpop.f32.mrb[0].mxu0
        %v1990 = vadd.f32 0.0, %v1989
        %v1991 = vpop.f32.mrb[0].mxu0
        %1992 = vdwg.mxu0
        %v1993 = vadd.f32 %v1855, %v1955
        %v1994 = vadd.f32 %v1856, %v1960
        %v1995 = vadd.f32 %v1857, %v1965
        %v1996 = vadd.f32 %v1858, %v1970
        %v1997 = vadd.f32 %v1859, %v1975
        %v1998 = vadd.f32 %v1860, %v1980
        %v1999 = vadd.f32 %v1861, %v1985
        %v2000 = vadd.f32 %v1862, %v1990
        %v2001 = vmax.f32 %v1993, 0.0
        %v2002 = vmax.f32 %v1994, 0.0
        %v2003 = vmax.f32 %v1995, 0.0
        %v2004 = vmax.f32 %v1996, 0.0
        %v2005 = vmax.f32 %v1997, 0.0
        %v2006 = vmax.f32 %v1998, 0.0
        %v2007 = vmax.f32 %v1999, 0.0
        %v2008 = vmax.f32 %v2000, 0.0
        %2009 = vst [vmem:[#allocation3 + $0x20] sm:$0xff] %v2001
        %2010 = vst [vmem:[#allocation3 + $0x28] sm:$0xff] %v2002
        %2011 = vst [vmem:[#allocation3 + $0x30] sm:$0xff] %v2003
        %2012 = vst [vmem:[#allocation3 + $0x38] sm:$0xff] %v2004
        %2013 = vst [vmem:[#allocation3 + $0x40] sm:$0xff] %v2005
        %2014 = vst [vmem:[#allocation3 + $0x48] sm:$0xff] %v2006
        %2015 = vst [vmem:[#allocation3 + $0x50] sm:$0xff] %v2007
        %2016 = vst [vmem:[#allocation3 + $0x58] sm:$0xff] %v2008
        %v2017 = vld [vmem:[%s12] sm:$0x1]
        %v2019 = vlaneseq
        %v2020 = vshrl.u32 %v2019, 7
        %v2021 = vsub.s32 0, %v2020
        %v2022 = vrot.slane %v2017, %v2021
        %v2024 = vadd.f32 %v2022, 0.0
        %v2025 = vld [vmem:[#allocation3 + $0x10] sm:$0xff]
        %v2026 = vld [vmem:[#allocation3 + $0x18] sm:$0xff]
        %v2027 = vld [vmem:[#allocation3 + $0x20] sm:$0xff]
        %v2028 = vld [vmem:[#allocation3 + $0x28] sm:$0xff]
        %v2029 = vld [vmem:[#allocation3 + $0x30] sm:$0xff]
        %v2030 = vld [vmem:[#allocation3 + $0x38] sm:$0xff]
        %v2031 = vld [vmem:[#allocation3 + $0x40] sm:$0xff]
        %v2032 = vld [vmem:[#allocation3 + $0x48] sm:$0xff]
        %v2033 = vld [vmem:[#allocation13] sm:$0xff]
        %v2034 = vld [vmem:[#allocation13 + $0x8] sm:$0xff]
        %v2035 = vld [vmem:[#allocation13 + $0x10] sm:$0xff]
        %v2036 = vld [vmem:[#allocation13 + $0x18] sm:$0xff]
        %v2037 = vld [vmem:[#allocation13 + $0x20] sm:$0xff]
        %v2038 = vld [vmem:[#allocation13 + $0x28] sm:$0xff]
        %v2039 = vld [vmem:[#allocation13 + $0x30] sm:$0xff]
        %v2040 = vld [vmem:[#allocation13 + $0x38] sm:$0xff]
        %v2041 = vld [vmem:[#allocation13 + $0x40] sm:$0xff]
        %v2042 = vld [vmem:[#allocation13 + $0x48] sm:$0xff]
        %v2043 = vld [vmem:[#allocation13 + $0x50] sm:$0xff]
        %v2044 = vld [vmem:[#allocation13 + $0x58] sm:$0xff]
        %v2045 = vld [vmem:[#allocation13 + $0x60] sm:$0xff]
        %v2046 = vld [vmem:[#allocation13 + $0x68] sm:$0xff]
        %v2047 = vld [vmem:[#allocation13 + $0x70] sm:$0xff]
        %v2048 = vld [vmem:[#allocation13 + $0x78] sm:$0xff]
        %2049 = vmatprep.subr.mxu0 0.0
        %2050 = vmatpush1.msra.mxu0 %v2033
        %2051 = vmatprep.subr.mxu0 0.0
        %2052 = vmatpush1.msra.mxu0 %v2034
        %2053 = vmatprep.subr.mxu0 0.0
        %2054 = vmatpush1.msra.mxu0 %v2035
        %2055 = vmatprep.subr.mxu0 0.0
        %2056 = vmatpush1.msra.mxu0 %v2036
        %2057 = vmatprep.subr.mxu0 0.0
        %2058 = vmatpush1.msra.mxu0 %v2037
        %2059 = vmatprep.subr.mxu0 0.0
        %2060 = vmatpush1.msra.mxu0 %v2038
        %2061 = vmatprep.subr.mxu0 0.0
        %2062 = vmatpush1.msra.mxu0 %v2039
        %2063 = vmatprep.subr.mxu0 0.0
        %2064 = vmatpush1.msra.mxu0 %v2040
        %2065 = vmatprep.subr.mxu0 0.0
        %2066 = vmatpush1.msra.mxu0 %v2041
        %2067 = vmatprep.subr.mxu0 0.0
        %2068 = vmatpush1.msra.mxu0 %v2042
        %2069 = vmatprep.subr.mxu0 0.0
        %2070 = vmatpush1.msra.mxu0 %v2043
        %2071 = vmatprep.subr.mxu0 0.0
        %2072 = vmatpush1.msra.mxu0 %v2044
        %2073 = vmatprep.subr.mxu0 0.0
        %2074 = vmatpush1.msra.mxu0 %v2045
        %2075 = vmatprep.subr.mxu0 0.0
        %2076 = vmatpush1.msra.mxu0 %v2046
        %2077 = vmatprep.subr.mxu0 0.0
        %2078 = vmatpush1.msra.mxu0 %v2047
        %2079 = vmatprep.subr.mxu0 0.0
        %2080 = vmatpush1.msra.mxu0 %v2048
        %2081 = vmatprep.subr.mxu0 0.0
        %2082 = vmatpush1.msra.mxu0 0.0
        %2083 = vmatprep.subr.mxu0 0.0
        %2084 = vmatpush1.msra.mxu0 0.0
        %2085 = vmatprep.subr.mxu0 0.0
        %2086 = vmatpush1.msra.mxu0 0.0
        %2087 = vmatprep.subr.mxu0 0.0
        %2088 = vmatpush1.msra.mxu0 0.0
        %2089 = vmatprep.subr.mxu0 0.0
        %2090 = vmatpush1.msra.mxu0 0.0
        %2091 = vmatprep.subr.mxu0 0.0
        %2092 = vmatpush1.msra.mxu0 0.0
        %2093 = vmatprep.subr.mxu0 0.0
        %2094 = vmatpush1.msra.mxu0 0.0
        %2095 = vmatprep.subr.mxu0 0.0
        %2096 = vmatpush1.msra.mxu0 0.0
        %2097 = vmatprep.subr.mxu0 0.0
        %2098 = vmatpush1.msra.mxu0 0.0
        %2099 = vmatprep.subr.mxu0 0.0
        %2100 = vmatpush1.msra.mxu0 0.0
        %2101 = vmatprep.subr.mxu0 0.0
        %2102 = vmatpush1.msra.mxu0 0.0
        %2103 = vmatprep.subr.mxu0 0.0
        %2104 = vmatpush1.msra.mxu0 0.0
        %2105 = vmatprep.subr.mxu0 0.0
        %2106 = vmatpush1.msra.mxu0 0.0
        %2107 = vmatprep.subr.mxu0 0.0
        %2108 = vmatpush1.msra.mxu0 0.0
        %2109 = vmatprep.subr.mxu0 0.0
        %2110 = vmatpush1.msra.mxu0 0.0
        %2111 = vmatprep.subr.mxu0 0.0
        %2112 = vmatpush1.msra.mxu0 0.0
        %2113 = vmatprep.mubr.f32.mxu0 0.0
        %2114 = vmatmul.mubr.f32.gmra.mrb[0].mxu0 %v2025
        %v2115 = vpop.f32.mrb[0].mxu0
        %v2116 = vadd.f32 0.0, %v2115
        %v2117 = vpop.f32.mrb[0].mxu0
        %2118 = vmatprep.mubr.f32.mxu0 0.0
        %2119 = vmatmul.mubr.f32.gmra.mrb[0].mxu0 %v2026
        %v2120 = vpop.f32.mrb[0].mxu0
        %v2121 = vadd.f32 0.0, %v2120
        %v2122 = vpop.f32.mrb[0].mxu0
        %2123 = vmatprep.mubr.f32.mxu0 0.0
        %2124 = vmatmul.mubr.f32.gmra.mrb[0].mxu0 %v2027
        %v2125 = vpop.f32.mrb[0].mxu0
        %v2126 = vadd.f32 0.0, %v2125
        %v2127 = vpop.f32.mrb[0].mxu0
        %2128 = vmatprep.mubr.f32.mxu0 0.0
        %2129 = vmatmul.mubr.f32.gmra.mrb[0].mxu0 %v2028
        %v2130 = vpop.f32.mrb[0].mxu0
        %v2131 = vadd.f32 0.0, %v2130
        %v2132 = vpop.f32.mrb[0].mxu0
        %2133 = vmatprep.mubr.f32.mxu0 0.0
        %2134 = vmatmul.mubr.f32.gmra.mrb[0].mxu0 %v2029
        %v2135 = vpop.f32.mrb[0].mxu0
        %v2136 = vadd.f32 0.0, %v2135
        %v2137 = vpop.f32.mrb[0].mxu0
        %2138 = vmatprep.mubr.f32.mxu0 0.0
        %2139 = vmatmul.mubr.f32.gmra.mrb[0].mxu0 %v2030
        %v2140 = vpop.f32.mrb[0].mxu0
        %v2141 = vadd.f32 0.0, %v2140
        %v2142 = vpop.f32.mrb[0].mxu0
        %2143 = vmatprep.mubr.f32.mxu0 0.0
        %2144 = vmatmul.mubr.f32.gmra.mrb[0].mxu0 %v2031
        %v2145 = vpop.f32.mrb[0].mxu0
        %v2146 = vadd.f32 0.0, %v2145
        %v2147 = vpop.f32.mrb[0].mxu0
        %2148 = vmatprep.mubr.f32.mxu0 0.0
        %2149 = vmatmul.mubr.f32.gmra.mrb[0].mxu0 %v2032
        %v2150 = vpop.f32.mrb[0].mxu0
        %v2151 = vadd.f32 0.0, %v2150
        %v2152 = vpop.f32.mrb[0].mxu0
        %2153 = vdwg.mxu0
        %v2154 = vadd.f32 %v2024, %v2116
        %v2155 = vadd.f32 %v2024, %v2121
        %v2156 = vadd.f32 %v2024, %v2126
        %v2157 = vadd.f32 %v2024, %v2131
        %v2158 = vadd.f32 %v2024, %v2136
        %v2159 = vadd.f32 %v2024, %v2141
        %v2160 = vadd.f32 %v2024, %v2146
        %v2161 = vadd.f32 %v2024, %v2151
        %v2162 = vld [vmem:[#allocation3 + $0x20] sm:$0xff]
        %v2163 = vld [vmem:[#allocation3 + $0x28] sm:$0xff]
        %v2164 = vld [vmem:[#allocation3 + $0x30] sm:$0xff]
        %v2165 = vld [vmem:[#allocation3 + $0x38] sm:$0xff]
        %v2166 = vld [vmem:[#allocation3 + $0x40] sm:$0xff]
        %v2167 = vld [vmem:[#allocation3 + $0x48] sm:$0xff]
        %v2168 = vld [vmem:[#allocation3 + $0x50] sm:$0xff]
        %v2169 = vld [vmem:[#allocation3 + $0x58] sm:$0xff]
        %s2170 = scalar_lea.vmem [#allocation13], 128
        %v2171 = vld [vmem:[%s2170] sm:$0xff]
        %v2172 = vld [vmem:[%s2170 + $0x8] sm:$0xff]
        %v2173 = vld [vmem:[%s2170 + $0x10] sm:$0xff]
        %v2174 = vld [vmem:[%s2170 + $0x18] sm:$0xff]
        %v2175 = vld [vmem:[%s2170 + $0x20] sm:$0xff]
        %v2176 = vld [vmem:[%s2170 + $0x28] sm:$0xff]
        %v2177 = vld [vmem:[%s2170 + $0x30] sm:$0xff]
        %v2178 = vld [vmem:[%s2170 + $0x38] sm:$0xff]
        %v2179 = vld [vmem:[%s2170 + $0x40] sm:$0xff]
        %v2180 = vld [vmem:[%s2170 + $0x48] sm:$0xff]
        %v2181 = vld [vmem:[%s2170 + $0x50] sm:$0xff]
        %v2182 = vld [vmem:[%s2170 + $0x58] sm:$0xff]
        %v2183 = vld [vmem:[%s2170 + $0x60] sm:$0xff]
        %v2184 = vld [vmem:[%s2170 + $0x68] sm:$0xff]
        %v2185 = vld [vmem:[%s2170 + $0x70] sm:$0xff]
        %v2186 = vld [vmem:[%s2170 + $0x78] sm:$0xff]
        %2187 = vmatprep.subr.mxu0 0.0
        %2188 = vmatpush1.msra.mxu0 %v2171
        %2189 = vmatprep.subr.mxu0 0.0
        %2190 = vmatpush1.msra.mxu0 %v2172
        %2191 = vmatprep.subr.mxu0 0.0
        %2192 = vmatpush1.msra.mxu0 %v2173
        %2193 = vmatprep.subr.mxu0 0.0
        %2194 = vmatpush1.msra.mxu0 %v2174
        %2195 = vmatprep.subr.mxu0 0.0
        %2196 = vmatpush1.msra.mxu0 %v2175
        %2197 = vmatprep.subr.mxu0 0.0
        %2198 = vmatpush1.msra.mxu0 %v2176
        %2199 = vmatprep.subr.mxu0 0.0
        %2200 = vmatpush1.msra.mxu0 %v2177
        %2201 = vmatprep.subr.mxu0 0.0
        %2202 = vmatpush1.msra.mxu0 %v2178
        %2203 = vmatprep.subr.mxu0 0.0
        %2204 = vmatpush1.msra.mxu0 %v2179
        %2205 = vmatprep.subr.mxu0 0.0
        %2206 = vmatpush1.msra.mxu0 %v2180
        %2207 = vmatprep.subr.mxu0 0.0
        %2208 = vmatpush1.msra.mxu0 %v2181
        %2209 = vmatprep.subr.mxu0 0.0
        %2210 = vmatpush1.msra.mxu0 %v2182
        %2211 = vmatprep.subr.mxu0 0.0
        %2212 = vmatpush1.msra.mxu0 %v2183
        %2213 = vmatprep.subr.mxu0 0.0
        %2214 = vmatpush1.msra.mxu0 %v2184
        %2215 = vmatprep.subr.mxu0 0.0
        %2216 = vmatpush1.msra.mxu0 %v2185
        %2217 = vmatprep.subr.mxu0 0.0
        %2218 = vmatpush1.msra.mxu0 %v2186
        %2219 = vmatprep.subr.mxu0 0.0
        %2220 = vmatpush1.msra.mxu0 0.0
        %2221 = vmatprep.subr.mxu0 0.0
        %2222 = vmatpush1.msra.mxu0 0.0
        %2223 = vmatprep.subr.mxu0 0.0
        %2224 = vmatpush1.msra.mxu0 0.0
        %2225 = vmatprep.subr.mxu0 0.0
        %2226 = vmatpush1.msra.mxu0 0.0
        %2227 = vmatprep.subr.mxu0 0.0
        %2228 = vmatpush1.msra.mxu0 0.0
        %2229 = vmatprep.subr.mxu0 0.0
        %2230 = vmatpush1.msra.mxu0 0.0
        %2231 = vmatprep.subr.mxu0 0.0
        %2232 = vmatpush1.msra.mxu0 0.0
        %2233 = vmatprep.subr.mxu0 0.0
        %2234 = vmatpush1.msra.mxu0 0.0
        %2235 = vmatprep.subr.mxu0 0.0
        %2236 = vmatpush1.msra.mxu0 0.0
        %2237 = vmatprep.subr.mxu0 0.0
        %2238 = vmatpush1.msra.mxu0 0.0
        %2239 = vmatprep.subr.mxu0 0.0
        %2240 = vmatpush1.msra.mxu0 0.0
        %2241 = vmatprep.subr.mxu0 0.0
        %2242 = vmatpush1.msra.mxu0 0.0
        %2243 = vmatprep.subr.mxu0 0.0
        %2244 = vmatpush1.msra.mxu0 0.0
        %2245 = vmatprep.subr.mxu0 0.0
        %2246 = vmatpush1.msra.mxu0 0.0
        %2247 = vmatprep.subr.mxu0 0.0
        %2248 = vmatpush1.msra.mxu0 0.0
        %2249 = vmatprep.subr.mxu0 0.0
        %2250 = vmatpush1.msra.mxu0 0.0
        %2251 = vmatprep.mubr.f32.mxu0 0.0
        %2252 = vmatmul.mubr.f32.gmra.mrb[0].mxu0 %v2162
        %v2253 = vpop.f32.mrb[0].mxu0
        %v2254 = vadd.f32 0.0, %v2253
        %v2255 = vpop.f32.mrb[0].mxu0
        %2256 = vmatprep.mubr.f32.mxu0 0.0
        %2257 = vmatmul.mubr.f32.gmra.mrb[0].mxu0 %v2163
        %v2258 = vpop.f32.mrb[0].mxu0
        %v2259 = vadd.f32 0.0, %v2258
        %v2260 = vpop.f32.mrb[0].mxu0
        %2261 = vmatprep.mubr.f32.mxu0 0.0
        %2262 = vmatmul.mubr.f32.gmra.mrb[0].mxu0 %v2164
        %v2263 = vpop.f32.mrb[0].mxu0
        %v2264 = vadd.f32 0.0, %v2263
        %v2265 = vpop.f32.mrb[0].mxu0
        %2266 = vmatprep.mubr.f32.mxu0 0.0
        %2267 = vmatmul.mubr.f32.gmra.mrb[0].mxu0 %v2165
        %v2268 = vpop.f32.mrb[0].mxu0
        %v2269 = vadd.f32 0.0, %v2268
        %v2270 = vpop.f32.mrb[0].mxu0
        %2271 = vmatprep.mubr.f32.mxu0 0.0
        %2272 = vmatmul.mubr.f32.gmra.mrb[0].mxu0 %v2166
        %v2273 = vpop.f32.mrb[0].mxu0
        %v2274 = vadd.f32 0.0, %v2273
        %v2275 = vpop.f32.mrb[0].mxu0
        %2276 = vmatprep.mubr.f32.mxu0 0.0
        %2277 = vmatmul.mubr.f32.gmra.mrb[0].mxu0 %v2167
        %v2278 = vpop.f32.mrb[0].mxu0
        %v2279 = vadd.f32 0.0, %v2278
        %v2280 = vpop.f32.mrb[0].mxu0
        %2281 = vmatprep.mubr.f32.mxu0 0.0
        %2282 = vmatmul.mubr.f32.gmra.mrb[0].mxu0 %v2168
        %v2283 = vpop.f32.mrb[0].mxu0
        %v2284 = vadd.f32 0.0, %v2283
        %v2285 = vpop.f32.mrb[0].mxu0
        %2286 = vmatprep.mubr.f32.mxu0 0.0
        %2287 = vmatmul.mubr.f32.gmra.mrb[0].mxu0 %v2169
        %v2288 = vpop.f32.mrb[0].mxu0
        %v2289 = vadd.f32 0.0, %v2288
        %v2290 = vpop.f32.mrb[0].mxu0
        %2291 = vdwg.mxu0
        %v2292 = vadd.f32 %v2154, %v2254
        %v2293 = vadd.f32 %v2155, %v2259
        %v2294 = vadd.f32 %v2156, %v2264
        %v2295 = vadd.f32 %v2157, %v2269
        %v2296 = vadd.f32 %v2158, %v2274
        %v2297 = vadd.f32 %v2159, %v2279
        %v2298 = vadd.f32 %v2160, %v2284
        %v2299 = vadd.f32 %v2161, %v2289
        %v2300 = vmax.f32 %v2292, 0.0
        %v2301 = vmax.f32 %v2293, 0.0
        %v2302 = vmax.f32 %v2294, 0.0
        %v2303 = vmax.f32 %v2295, 0.0
        %v2304 = vmax.f32 %v2296, 0.0
        %v2305 = vmax.f32 %v2297, 0.0
        %v2306 = vmax.f32 %v2298, 0.0
        %v2307 = vmax.f32 %v2299, 0.0
        %v2308 = vld [vmem:[%s13] sm:$0x1]
        %v2310 = vlaneseq
        %v2311 = vshrl.u32 %v2310, 7
        %v2312 = vsub.s32 0, %v2311
        %v2313 = vrot.slane %v2308, %v2312
        %v2315 = vmul.f32 %v2300, %v2313
        %v2316 = vmul.f32 %v2301, %v2313
        %v2317 = vmul.f32 %v2302, %v2313
        %v2318 = vmul.f32 %v2303, %v2313
        %v2319 = vmul.f32 %v2304, %v2313
        %v2320 = vmul.f32 %v2305, %v2313
        %v2321 = vmul.f32 %v2306, %v2313
        %v2322 = vmul.f32 %v2307, %v2313
        %v2323 = vld [vmem:[%s14] sm:$0x1]
        %v2325 = vlaneseq
        %v2326 = vshrl.u32 %v2325, 7
        %v2327 = vsub.s32 0, %v2326
        %v2328 = vrot.slane %v2323, %v2327
        %v2330 = vadd.f32 %v2315, %v2328
        %v2331 = vadd.f32 %v2316, %v2328
        %v2332 = vadd.f32 %v2317, %v2328
        %v2333 = vadd.f32 %v2318, %v2328
        %v2334 = vadd.f32 %v2319, %v2328
        %v2335 = vadd.f32 %v2320, %v2328
        %v2336 = vadd.f32 %v2321, %v2328
        %v2337 = vadd.f32 %v2322, %v2328
        %v2338 = vld [vmem:[#allocation2 + $0x20] sm:$0xff]
        %v2339 = vld [vmem:[#allocation2 + $0x28] sm:$0xff]
        %v2340 = vld [vmem:[#allocation2 + $0x30] sm:$0xff]
        %v2341 = vld [vmem:[#allocation2 + $0x38] sm:$0xff]
        %v2342 = vld [vmem:[#allocation2 + $0x40] sm:$0xff]
        %v2343 = vld [vmem:[#allocation2 + $0x48] sm:$0xff]
        %v2344 = vld [vmem:[#allocation2 + $0x50] sm:$0xff]
        %v2345 = vld [vmem:[#allocation2 + $0x58] sm:$0xff]
        %v2346 = vadd.f32 %v2338, %v2330
        %v2347 = vadd.f32 %v2339, %v2331
        %v2348 = vadd.f32 %v2340, %v2332
        %v2349 = vadd.f32 %v2341, %v2333
        %v2350 = vadd.f32 %v2342, %v2334
        %v2351 = vadd.f32 %v2343, %v2335
        %v2352 = vadd.f32 %v2344, %v2336
        %v2353 = vadd.f32 %v2345, %v2337
        %v2354 = vmax.f32 %v2346, 0.0
        %v2355 = vmax.f32 %v2347, 0.0
        %v2356 = vmax.f32 %v2348, 0.0
        %v2357 = vmax.f32 %v2349, 0.0
        %v2358 = vmax.f32 %v2350, 0.0
        %v2359 = vmax.f32 %v2351, 0.0
        %v2360 = vmax.f32 %v2352, 0.0
        %v2361 = vmax.f32 %v2353, 0.0
        %2362 = vst [vmem:[#allocation2 + $0x20] sm:$0xff] %v2354
        %2363 = vst [vmem:[#allocation2 + $0x28] sm:$0xff] %v2355
        %2364 = vst [vmem:[#allocation2 + $0x30] sm:$0xff] %v2356
        %2365 = vst [vmem:[#allocation2 + $0x38] sm:$0xff] %v2357
        %2366 = vst [vmem:[#allocation2 + $0x40] sm:$0xff] %v2358
        %2367 = vst [vmem:[#allocation2 + $0x48] sm:$0xff] %v2359
        %2368 = vst [vmem:[#allocation2 + $0x50] sm:$0xff] %v2360
        %2369 = vst [vmem:[#allocation2 + $0x58] sm:$0xff] %v2361
        %v2370 = vld [vmem:[%s16] sm:$0x1]
        %v2372 = vlaneseq
        %v2373 = vshrl.u32 %v2372, 7
        %v2374 = vsub.s32 0, %v2373
        %v2375 = vrot.slane %v2370, %v2374
        %v2377 = vadd.f32 %v2375, 0.0
        %v2378 = vld [vmem:[#allocation2] sm:$0xff]
        %v2379 = vld [vmem:[#allocation2 + $0x8] sm:$0xff]
        %v2380 = vld [vmem:[#allocation2 + $0x10] sm:$0xff]
        %v2381 = vld [vmem:[#allocation2 + $0x18] sm:$0xff]
        %v2382 = vld [vmem:[#allocation2 + $0x20] sm:$0xff]
        %v2383 = vld [vmem:[#allocation2 + $0x28] sm:$0xff]
        %v2384 = vld [vmem:[#allocation2 + $0x30] sm:$0xff]
        %v2385 = vld [vmem:[#allocation2 + $0x38] sm:$0xff]
        %v2386 = vld [vmem:[#allocation15] sm:$0xff]
        %v2387 = vld [vmem:[#allocation15 + $0x8] sm:$0xff]
        %v2388 = vld [vmem:[#allocation15 + $0x10] sm:$0xff]
        %v2389 = vld [vmem:[#allocation15 + $0x18] sm:$0xff]
        %v2390 = vld [vmem:[#allocation15 + $0x20] sm:$0xff]
        %v2391 = vld [vmem:[#allocation15 + $0x28] sm:$0xff]
        %v2392 = vld [vmem:[#allocation15 + $0x30] sm:$0xff]
        %v2393 = vld [vmem:[#allocation15 + $0x38] sm:$0xff]
        %v2394 = vld [vmem:[#allocation15 + $0x40] sm:$0xff]
        %v2395 = vld [vmem:[#allocation15 + $0x48] sm:$0xff]
        %v2396 = vld [vmem:[#allocation15 + $0x50] sm:$0xff]
        %v2397 = vld [vmem:[#allocation15 + $0x58] sm:$0xff]
        %v2398 = vld [vmem:[#allocation15 + $0x60] sm:$0xff]
        %v2399 = vld [vmem:[#allocation15 + $0x68] sm:$0xff]
        %v2400 = vld [vmem:[#allocation15 + $0x70] sm:$0xff]
        %v2401 = vld [vmem:[#allocation15 + $0x78] sm:$0xff]
        %2402 = vmatprep.subr.mxu0 0.0
        %2403 = vmatpush1.msra.mxu0 %v2386
        %2404 = vmatprep.subr.mxu0 0.0
        %2405 = vmatpush1.msra.mxu0 %v2387
        %2406 = vmatprep.subr.mxu0 0.0
        %2407 = vmatpush1.msra.mxu0 %v2388
        %2408 = vmatprep.subr.mxu0 0.0
        %2409 = vmatpush1.msra.mxu0 %v2389
        %2410 = vmatprep.subr.mxu0 0.0
        %2411 = vmatpush1.msra.mxu0 %v2390
        %2412 = vmatprep.subr.mxu0 0.0
        %2413 = vmatpush1.msra.mxu0 %v2391
        %2414 = vmatprep.subr.mxu0 0.0
        %2415 = vmatpush1.msra.mxu0 %v2392
        %2416 = vmatprep.subr.mxu0 0.0
        %2417 = vmatpush1.msra.mxu0 %v2393
        %2418 = vmatprep.subr.mxu0 0.0
        %2419 = vmatpush1.msra.mxu0 %v2394
        %2420 = vmatprep.subr.mxu0 0.0
        %2421 = vmatpush1.msra.mxu0 %v2395
        %2422 = vmatprep.subr.mxu0 0.0
        %2423 = vmatpush1.msra.mxu0 %v2396
        %2424 = vmatprep.subr.mxu0 0.0
        %2425 = vmatpush1.msra.mxu0 %v2397
        %2426 = vmatprep.subr.mxu0 0.0
        %2427 = vmatpush1.msra.mxu0 %v2398
        %2428 = vmatprep.subr.mxu0 0.0
        %2429 = vmatpush1.msra.mxu0 %v2399
        %2430 = vmatprep.subr.mxu0 0.0
        %2431 = vmatpush1.msra.mxu0 %v2400
        %2432 = vmatprep.subr.mxu0 0.0
        %2433 = vmatpush1.msra.mxu0 %v2401
        %2434 = vmatprep.subr.mxu0 0.0
        %2435 = vmatpush1.msra.mxu0 0.0
        %2436 = vmatprep.subr.mxu0 0.0
        %2437 = vmatpush1.msra.mxu0 0.0
        %2438 = vmatprep.subr.mxu0 0.0
        %2439 = vmatpush1.msra.mxu0 0.0
        %2440 = vmatprep.subr.mxu0 0.0
        %2441 = vmatpush1.msra.mxu0 0.0
        %2442 = vmatprep.subr.mxu0 0.0
        %2443 = vmatpush1.msra.mxu0 0.0
        %2444 = vmatprep.subr.mxu0 0.0
        %2445 = vmatpush1.msra.mxu0 0.0
        %2446 = vmatprep.subr.mxu0 0.0
        %2447 = vmatpush1.msra.mxu0 0.0
        %2448 = vmatprep.subr.mxu0 0.0
        %2449 = vmatpush1.msra.mxu0 0.0
        %2450 = vmatprep.subr.mxu0 0.0
        %2451 = vmatpush1.msra.mxu0 0.0
        %2452 = vmatprep.subr.mxu0 0.0
        %2453 = vmatpush1.msra.mxu0 0.0
        %2454 = vmatprep.subr.mxu0 0.0
        %2455 = vmatpush1.msra.mxu0 0.0
        %2456 = vmatprep.subr.mxu0 0.0
        %2457 = vmatpush1.msra.mxu0 0.0
        %2458 = vmatprep.subr.mxu0 0.0
        %2459 = vmatpush1.msra.mxu0 0.0
        %2460 = vmatprep.subr.mxu0 0.0
        %2461 = vmatpush1.msra.mxu0 0.0
        %2462 = vmatprep.subr.mxu0 0.0
        %2463 = vmatpush1.msra.mxu0 0.0
        %2464 = vmatprep.subr.mxu0 0.0
        %2465 = vmatpush1.msra.mxu0 0.0
        %2466 = vmatprep.mubr.f32.mxu0 0.0
        %2467 = vmatmul.mubr.f32.gmra.mrb[0].mxu0 %v2378
        %v2468 = vpop.f32.mrb[0].mxu0
        %v2469 = vadd.f32 0.0, %v2468
        %v2470 = vpop.f32.mrb[0].mxu0
        %2471 = vmatprep.mubr.f32.mxu0 0.0
        %2472 = vmatmul.mubr.f32.gmra.mrb[0].mxu0 %v2379
        %v2473 = vpop.f32.mrb[0].mxu0
        %v2474 = vadd.f32 0.0, %v2473
        %v2475 = vpop.f32.mrb[0].mxu0
        %2476 = vmatprep.mubr.f32.mxu0 0.0
        %2477 = vmatmul.mubr.f32.gmra.mrb[0].mxu0 %v2380
        %v2478 = vpop.f32.mrb[0].mxu0
        %v2479 = vadd.f32 0.0, %v2478
        %v2480 = vpop.f32.mrb[0].mxu0
        %2481 = vmatprep.mubr.f32.mxu0 0.0
        %2482 = vmatmul.mubr.f32.gmra.mrb[0].mxu0 %v2381
        %v2483 = vpop.f32.mrb[0].mxu0
        %v2484 = vadd.f32 0.0, %v2483
        %v2485 = vpop.f32.mrb[0].mxu0
        %2486 = vmatprep.mubr.f32.mxu0 0.0
        %2487 = vmatmul.mubr.f32.gmra.mrb[0].mxu0 %v2382
        %v2488 = vpop.f32.mrb[0].mxu0
        %v2489 = vadd.f32 0.0, %v2488
        %v2490 = vpop.f32.mrb[0].mxu0
        %2491 = vmatprep.mubr.f32.mxu0 0.0
        %2492 = vmatmul.mubr.f32.gmra.mrb[0].mxu0 %v2383
        %v2493 = vpop.f32.mrb[0].mxu0
        %v2494 = vadd.f32 0.0, %v2493
        %v2495 = vpop.f32.mrb[0].mxu0
        %2496 = vmatprep.mubr.f32.mxu0 0.0
        %2497 = vmatmul.mubr.f32.gmra.mrb[0].mxu0 %v2384
        %v2498 = vpop.f32.mrb[0].mxu0
        %v2499 = vadd.f32 0.0, %v2498
        %v2500 = vpop.f32.mrb[0].mxu0
        %2501 = vmatprep.mubr.f32.mxu0 0.0
        %2502 = vmatmul.mubr.f32.gmra.mrb[0].mxu0 %v2385
        %v2503 = vpop.f32.mrb[0].mxu0
        %v2504 = vadd.f32 0.0, %v2503
        %v2505 = vpop.f32.mrb[0].mxu0
        %2506 = vdwg.mxu0
        %v2507 = vadd.f32 %v2377, %v2469
        %v2508 = vadd.f32 %v2377, %v2474
        %v2509 = vadd.f32 %v2377, %v2479
        %v2510 = vadd.f32 %v2377, %v2484
        %v2511 = vadd.f32 %v2377, %v2489
        %v2512 = vadd.f32 %v2377, %v2494
        %v2513 = vadd.f32 %v2377, %v2499
        %v2514 = vadd.f32 %v2377, %v2504
        %v2515 = vld [vmem:[#allocation2 + $0x20] sm:$0xff]
        %v2516 = vld [vmem:[#allocation2 + $0x28] sm:$0xff]
        %v2517 = vld [vmem:[#allocation2 + $0x30] sm:$0xff]
        %v2518 = vld [vmem:[#allocation2 + $0x38] sm:$0xff]
        %v2519 = vld [vmem:[#allocation2 + $0x40] sm:$0xff]
        %v2520 = vld [vmem:[#allocation2 + $0x48] sm:$0xff]
        %v2521 = vld [vmem:[#allocation2 + $0x50] sm:$0xff]
        %v2522 = vld [vmem:[#allocation2 + $0x58] sm:$0xff]
        %s2523 = scalar_lea.vmem [#allocation15], 128
        %v2524 = vld [vmem:[%s2523] sm:$0xff]
        %v2525 = vld [vmem:[%s2523 + $0x8] sm:$0xff]
        %v2526 = vld [vmem:[%s2523 + $0x10] sm:$0xff]
        %v2527 = vld [vmem:[%s2523 + $0x18] sm:$0xff]
        %v2528 = vld [vmem:[%s2523 + $0x20] sm:$0xff]
        %v2529 = vld [vmem:[%s2523 + $0x28] sm:$0xff]
        %v2530 = vld [vmem:[%s2523 + $0x30] sm:$0xff]
        %v2531 = vld [vmem:[%s2523 + $0x38] sm:$0xff]
        %v2532 = vld [vmem:[%s2523 + $0x40] sm:$0xff]
        %v2533 = vld [vmem:[%s2523 + $0x48] sm:$0xff]
        %v2534 = vld [vmem:[%s2523 + $0x50] sm:$0xff]
        %v2535 = vld [vmem:[%s2523 + $0x58] sm:$0xff]
        %v2536 = vld [vmem:[%s2523 + $0x60] sm:$0xff]
        %v2537 = vld [vmem:[%s2523 + $0x68] sm:$0xff]
        %v2538 = vld [vmem:[%s2523 + $0x70] sm:$0xff]
        %v2539 = vld [vmem:[%s2523 + $0x78] sm:$0xff]
        %2540 = vmatprep.subr.mxu0 0.0
        %2541 = vmatpush1.msra.mxu0 %v2524
        %2542 = vmatprep.subr.mxu0 0.0
        %2543 = vmatpush1.msra.mxu0 %v2525
        %2544 = vmatprep.subr.mxu0 0.0
        %2545 = vmatpush1.msra.mxu0 %v2526
        %2546 = vmatprep.subr.mxu0 0.0
        %2547 = vmatpush1.msra.mxu0 %v2527
        %2548 = vmatprep.subr.mxu0 0.0
        %2549 = vmatpush1.msra.mxu0 %v2528
        %2550 = vmatprep.subr.mxu0 0.0
        %2551 = vmatpush1.msra.mxu0 %v2529
        %2552 = vmatprep.subr.mxu0 0.0
        %2553 = vmatpush1.msra.mxu0 %v2530
        %2554 = vmatprep.subr.mxu0 0.0
        %2555 = vmatpush1.msra.mxu0 %v2531
        %2556 = vmatprep.subr.mxu0 0.0
        %2557 = vmatpush1.msra.mxu0 %v2532
        %2558 = vmatprep.subr.mxu0 0.0
        %2559 = vmatpush1.msra.mxu0 %v2533
        %2560 = vmatprep.subr.mxu0 0.0
        %2561 = vmatpush1.msra.mxu0 %v2534
        %2562 = vmatprep.subr.mxu0 0.0
        %2563 = vmatpush1.msra.mxu0 %v2535
        %2564 = vmatprep.subr.mxu0 0.0
        %2565 = vmatpush1.msra.mxu0 %v2536
        %2566 = vmatprep.subr.mxu0 0.0
        %2567 = vmatpush1.msra.mxu0 %v2537
        %2568 = vmatprep.subr.mxu0 0.0
        %2569 = vmatpush1.msra.mxu0 %v2538
        %2570 = vmatprep.subr.mxu0 0.0
        %2571 = vmatpush1.msra.mxu0 %v2539
        %2572 = vmatprep.subr.mxu0 0.0
        %2573 = vmatpush1.msra.mxu0 0.0
        %2574 = vmatprep.subr.mxu0 0.0
        %2575 = vmatpush1.msra.mxu0 0.0
        %2576 = vmatprep.subr.mxu0 0.0
        %2577 = vmatpush1.msra.mxu0 0.0
        %2578 = vmatprep.subr.mxu0 0.0
        %2579 = vmatpush1.msra.mxu0 0.0
        %2580 = vmatprep.subr.mxu0 0.0
        %2581 = vmatpush1.msra.mxu0 0.0
        %2582 = vmatprep.subr.mxu0 0.0
        %2583 = vmatpush1.msra.mxu0 0.0
        %2584 = vmatprep.subr.mxu0 0.0
        %2585 = vmatpush1.msra.mxu0 0.0
        %2586 = vmatprep.subr.mxu0 0.0
        %2587 = vmatpush1.msra.mxu0 0.0
        %2588 = vmatprep.subr.mxu0 0.0
        %2589 = vmatpush1.msra.mxu0 0.0
        %2590 = vmatprep.subr.mxu0 0.0
        %2591 = vmatpush1.msra.mxu0 0.0
        %2592 = vmatprep.subr.mxu0 0.0
        %2593 = vmatpush1.msra.mxu0 0.0
        %2594 = vmatprep.subr.mxu0 0.0
        %2595 = vmatpush1.msra.mxu0 0.0
        %2596 = vmatprep.subr.mxu0 0.0
        %2597 = vmatpush1.msra.mxu0 0.0
        %2598 = vmatprep.subr.mxu0 0.0
        %2599 = vmatpush1.msra.mxu0 0.0
        %2600 = vmatprep.subr.mxu0 0.0
        %2601 = vmatpush1.msra.mxu0 0.0
        %2602 = vmatprep.subr.mxu0 0.0
        %2603 = vmatpush1.msra.mxu0 0.0
        %2604 = vmatprep.mubr.f32.mxu0 0.0
        %2605 = vmatmul.mubr.f32.gmra.mrb[0].mxu0 %v2515
        %v2606 = vpop.f32.mrb[0].mxu0
        %v2607 = vadd.f32 0.0, %v2606
        %v2608 = vpop.f32.mrb[0].mxu0
        %2609 = vmatprep.mubr.f32.mxu0 0.0
        %2610 = vmatmul.mubr.f32.gmra.mrb[0].mxu0 %v2516
        %v2611 = vpop.f32.mrb[0].mxu0
        %v2612 = vadd.f32 0.0, %v2611
        %v2613 = vpop.f32.mrb[0].mxu0
        %2614 = vmatprep.mubr.f32.mxu0 0.0
        %2615 = vmatmul.mubr.f32.gmra.mrb[0].mxu0 %v2517
        %v2616 = vpop.f32.mrb[0].mxu0
        %v2617 = vadd.f32 0.0, %v2616
        %v2618 = vpop.f32.mrb[0].mxu0
        %2619 = vmatprep.mubr.f32.mxu0 0.0
        %2620 = vmatmul.mubr.f32.gmra.mrb[0].mxu0 %v2518
        %v2621 = vpop.f32.mrb[0].mxu0
        %v2622 = vadd.f32 0.0, %v2621
        %v2623 = vpop.f32.mrb[0].mxu0
        %2624 = vmatprep.mubr.f32.mxu0 0.0
        %2625 = vmatmul.mubr.f32.gmra.mrb[0].mxu0 %v2519
        %v2626 = vpop.f32.mrb[0].mxu0
        %v2627 = vadd.f32 0.0, %v2626
        %v2628 = vpop.f32.mrb[0].mxu0
        %2629 = vmatprep.mubr.f32.mxu0 0.0
        %2630 = vmatmul.mubr.f32.gmra.mrb[0].mxu0 %v2520
        %v2631 = vpop.f32.mrb[0].mxu0
        %v2632 = vadd.f32 0.0, %v2631
        %v2633 = vpop.f32.mrb[0].mxu0
        %2634 = vmatprep.mubr.f32.mxu0 0.0
        %2635 = vmatmul.mubr.f32.gmra.mrb[0].mxu0 %v2521
        %v2636 = vpop.f32.mrb[0].mxu0
        %v2637 = vadd.f32 0.0, %v2636
        %v2638 = vpop.f32.mrb[0].mxu0
        %2639 = vmatprep.mubr.f32.mxu0 0.0
        %2640 = vmatmul.mubr.f32.gmra.mrb[0].mxu0 %v2522
        %v2641 = vpop.f32.mrb[0].mxu0
        %v2642 = vadd.f32 0.0, %v2641
        %v2643 = vpop.f32.mrb[0].mxu0
        %2644 = vdwg.mxu0
        %v2645 = vadd.f32 %v2507, %v2607
        %v2646 = vadd.f32 %v2508, %v2612
        %v2647 = vadd.f32 %v2509, %v2617
        %v2648 = vadd.f32 %v2510, %v2622
        %v2649 = vadd.f32 %v2511, %v2627
        %v2650 = vadd.f32 %v2512, %v2632
        %v2651 = vadd.f32 %v2513, %v2637
        %v2652 = vadd.f32 %v2514, %v2642
        %v2653 = vmax.f32 %v2645, 0.0
        %v2654 = vmax.f32 %v2646, 0.0
        %v2655 = vmax.f32 %v2647, 0.0
        %v2656 = vmax.f32 %v2648, 0.0
        %v2657 = vmax.f32 %v2649, 0.0
        %v2658 = vmax.f32 %v2650, 0.0
        %v2659 = vmax.f32 %v2651, 0.0
        %v2660 = vmax.f32 %v2652, 0.0
        %2661 = vst [vmem:[#allocation3 + $0x20] sm:$0xff] %v2653
        %2662 = vst [vmem:[#allocation3 + $0x28] sm:$0xff] %v2654
        %2663 = vst [vmem:[#allocation3 + $0x30] sm:$0xff] %v2655
        %2664 = vst [vmem:[#allocation3 + $0x38] sm:$0xff] %v2656
        %2665 = vst [vmem:[#allocation3 + $0x40] sm:$0xff] %v2657
        %2666 = vst [vmem:[#allocation3 + $0x48] sm:$0xff] %v2658
        %2667 = vst [vmem:[#allocation3 + $0x50] sm:$0xff] %v2659
        %2668 = vst [vmem:[#allocation3 + $0x58] sm:$0xff] %v2660
        %v2669 = vld [vmem:[%s18] sm:$0x1]
        %v2671 = vlaneseq
        %v2672 = vshrl.u32 %v2671, 7
        %v2673 = vsub.s32 0, %v2672
        %v2674 = vrot.slane %v2669, %v2673
        %v2676 = vadd.f32 %v2674, 0.0
        %v2677 = vld [vmem:[#allocation3] sm:$0xff]
        %v2678 = vld [vmem:[#allocation3 + $0x8] sm:$0xff]
        %v2679 = vld [vmem:[#allocation3 + $0x10] sm:$0xff]
        %v2680 = vld [vmem:[#allocation3 + $0x18] sm:$0xff]
        %v2681 = vld [vmem:[#allocation3 + $0x20] sm:$0xff]
        %v2682 = vld [vmem:[#allocation3 + $0x28] sm:$0xff]
        %v2683 = vld [vmem:[#allocation3 + $0x30] sm:$0xff]
        %v2684 = vld [vmem:[#allocation3 + $0x38] sm:$0xff]
        %v2685 = vld [vmem:[#allocation16] sm:$0xff]
        %v2686 = vld [vmem:[#allocation16 + $0x8] sm:$0xff]
        %v2687 = vld [vmem:[#allocation16 + $0x10] sm:$0xff]
        %v2688 = vld [vmem:[#allocation16 + $0x18] sm:$0xff]
        %v2689 = vld [vmem:[#allocation16 + $0x20] sm:$0xff]
        %v2690 = vld [vmem:[#allocation16 + $0x28] sm:$0xff]
        %v2691 = vld [vmem:[#allocation16 + $0x30] sm:$0xff]
        %v2692 = vld [vmem:[#allocation16 + $0x38] sm:$0xff]
        %v2693 = vld [vmem:[#allocation16 + $0x40] sm:$0xff]
        %v2694 = vld [vmem:[#allocation16 + $0x48] sm:$0xff]
        %v2695 = vld [vmem:[#allocation16 + $0x50] sm:$0xff]
        %v2696 = vld [vmem:[#allocation16 + $0x58] sm:$0xff]
        %v2697 = vld [vmem:[#allocation16 + $0x60] sm:$0xff]
        %v2698 = vld [vmem:[#allocation16 + $0x68] sm:$0xff]
        %v2699 = vld [vmem:[#allocation16 + $0x70] sm:$0xff]
        %v2700 = vld [vmem:[#allocation16 + $0x78] sm:$0xff]
        %2701 = vmatprep.subr.mxu0 0.0
        %2702 = vmatpush1.msra.mxu0 %v2685
        %2703 = vmatprep.subr.mxu0 0.0
        %2704 = vmatpush1.msra.mxu0 %v2686
        %2705 = vmatprep.subr.mxu0 0.0
        %2706 = vmatpush1.msra.mxu0 %v2687
        %2707 = vmatprep.subr.mxu0 0.0
        %2708 = vmatpush1.msra.mxu0 %v2688
        %2709 = vmatprep.subr.mxu0 0.0
        %2710 = vmatpush1.msra.mxu0 %v2689
        %2711 = vmatprep.subr.mxu0 0.0
        %2712 = vmatpush1.msra.mxu0 %v2690
        %2713 = vmatprep.subr.mxu0 0.0
        %2714 = vmatpush1.msra.mxu0 %v2691
        %2715 = vmatprep.subr.mxu0 0.0
        %2716 = vmatpush1.msra.mxu0 %v2692
        %2717 = vmatprep.subr.mxu0 0.0
        %2718 = vmatpush1.msra.mxu0 %v2693
        %2719 = vmatprep.subr.mxu0 0.0
        %2720 = vmatpush1.msra.mxu0 %v2694
        %2721 = vmatprep.subr.mxu0 0.0
        %2722 = vmatpush1.msra.mxu0 %v2695
        %2723 = vmatprep.subr.mxu0 0.0
        %2724 = vmatpush1.msra.mxu0 %v2696
        %2725 = vmatprep.subr.mxu0 0.0
        %2726 = vmatpush1.msra.mxu0 %v2697
        %2727 = vmatprep.subr.mxu0 0.0
        %2728 = vmatpush1.msra.mxu0 %v2698
        %2729 = vmatprep.subr.mxu0 0.0
        %2730 = vmatpush1.msra.mxu0 %v2699
        %2731 = vmatprep.subr.mxu0 0.0
        %2732 = vmatpush1.msra.mxu0 %v2700
        %2733 = vmatprep.subr.mxu0 0.0
        %2734 = vmatpush1.msra.mxu0 0.0
        %2735 = vmatprep.subr.mxu0 0.0
        %2736 = vmatpush1.msra.mxu0 0.0
        %2737 = vmatprep.subr.mxu0 0.0
        %2738 = vmatpush1.msra.mxu0 0.0
        %2739 = vmatprep.subr.mxu0 0.0
        %2740 = vmatpush1.msra.mxu0 0.0
        %2741 = vmatprep.subr.mxu0 0.0
        %2742 = vmatpush1.msra.mxu0 0.0
        %2743 = vmatprep.subr.mxu0 0.0
        %2744 = vmatpush1.msra.mxu0 0.0
        %2745 = vmatprep.subr.mxu0 0.0
        %2746 = vmatpush1.msra.mxu0 0.0
        %2747 = vmatprep.subr.mxu0 0.0
        %2748 = vmatpush1.msra.mxu0 0.0
        %2749 = vmatprep.subr.mxu0 0.0
        %2750 = vmatpush1.msra.mxu0 0.0
        %2751 = vmatprep.subr.mxu0 0.0
        %2752 = vmatpush1.msra.mxu0 0.0
        %2753 = vmatprep.subr.mxu0 0.0
        %2754 = vmatpush1.msra.mxu0 0.0
        %2755 = vmatprep.subr.mxu0 0.0
        %2756 = vmatpush1.msra.mxu0 0.0
        %2757 = vmatprep.subr.mxu0 0.0
        %2758 = vmatpush1.msra.mxu0 0.0
        %2759 = vmatprep.subr.mxu0 0.0
        %2760 = vmatpush1.msra.mxu0 0.0
        %2761 = vmatprep.subr.mxu0 0.0
        %2762 = vmatpush1.msra.mxu0 0.0
        %2763 = vmatprep.subr.mxu0 0.0
        %2764 = vmatpush1.msra.mxu0 0.0
        %2765 = vmatprep.mubr.f32.mxu0 0.0
        %2766 = vmatmul.mubr.f32.gmra.mrb[0].mxu0 %v2677
        %v2767 = vpop.f32.mrb[0].mxu0
        %v2768 = vadd.f32 0.0, %v2767
        %v2769 = vpop.f32.mrb[0].mxu0
        %2770 = vmatprep.mubr.f32.mxu0 0.0
        %2771 = vmatmul.mubr.f32.gmra.mrb[0].mxu0 %v2678
        %v2772 = vpop.f32.mrb[0].mxu0
        %v2773 = vadd.f32 0.0, %v2772
        %v2774 = vpop.f32.mrb[0].mxu0
        %2775 = vmatprep.mubr.f32.mxu0 0.0
        %2776 = vmatmul.mubr.f32.gmra.mrb[0].mxu0 %v2679
        %v2777 = vpop.f32.mrb[0].mxu0
        %v2778 = vadd.f32 0.0, %v2777
        %v2779 = vpop.f32.mrb[0].mxu0
        %2780 = vmatprep.mubr.f32.mxu0 0.0
        %2781 = vmatmul.mubr.f32.gmra.mrb[0].mxu0 %v2680
        %v2782 = vpop.f32.mrb[0].mxu0
        %v2783 = vadd.f32 0.0, %v2782
        %v2784 = vpop.f32.mrb[0].mxu0
        %2785 = vmatprep.mubr.f32.mxu0 0.0
        %2786 = vmatmul.mubr.f32.gmra.mrb[0].mxu0 %v2681
        %v2787 = vpop.f32.mrb[0].mxu0
        %v2788 = vadd.f32 0.0, %v2787
        %v2789 = vpop.f32.mrb[0].mxu0
        %2790 = vmatprep.mubr.f32.mxu0 0.0
        %2791 = vmatmul.mubr.f32.gmra.mrb[0].mxu0 %v2682
        %v2792 = vpop.f32.mrb[0].mxu0
        %v2793 = vadd.f32 0.0, %v2792
        %v2794 = vpop.f32.mrb[0].mxu0
        %2795 = vmatprep.mubr.f32.mxu0 0.0
        %2796 = vmatmul.mubr.f32.gmra.mrb[0].mxu0 %v2683
        %v2797 = vpop.f32.mrb[0].mxu0
        %v2798 = vadd.f32 0.0, %v2797
        %v2799 = vpop.f32.mrb[0].mxu0
        %2800 = vmatprep.mubr.f32.mxu0 0.0
        %2801 = vmatmul.mubr.f32.gmra.mrb[0].mxu0 %v2684
        %v2802 = vpop.f32.mrb[0].mxu0
        %v2803 = vadd.f32 0.0, %v2802
        %v2804 = vpop.f32.mrb[0].mxu0
        %2805 = vdwg.mxu0
        %v2806 = vadd.f32 %v2676, %v2768
        %v2807 = vadd.f32 %v2676, %v2773
        %v2808 = vadd.f32 %v2676, %v2778
        %v2809 = vadd.f32 %v2676, %v2783
        %v2810 = vadd.f32 %v2676, %v2788
        %v2811 = vadd.f32 %v2676, %v2793
        %v2812 = vadd.f32 %v2676, %v2798
        %v2813 = vadd.f32 %v2676, %v2803
        %v2814 = vld [vmem:[#allocation3 + $0x20] sm:$0xff]
        %v2815 = vld [vmem:[#allocation3 + $0x28] sm:$0xff]
        %v2816 = vld [vmem:[#allocation3 + $0x30] sm:$0xff]
        %v2817 = vld [vmem:[#allocation3 + $0x38] sm:$0xff]
        %v2818 = vld [vmem:[#allocation3 + $0x40] sm:$0xff]
        %v2819 = vld [vmem:[#allocation3 + $0x48] sm:$0xff]
        %v2820 = vld [vmem:[#allocation3 + $0x50] sm:$0xff]
        %v2821 = vld [vmem:[#allocation3 + $0x58] sm:$0xff]
        %s2822 = scalar_lea.vmem [#allocation16], 128
        %v2823 = vld [vmem:[%s2822] sm:$0xff]
        %v2824 = vld [vmem:[%s2822 + $0x8] sm:$0xff]
        %v2825 = vld [vmem:[%s2822 + $0x10] sm:$0xff]
        %v2826 = vld [vmem:[%s2822 + $0x18] sm:$0xff]
        %v2827 = vld [vmem:[%s2822 + $0x20] sm:$0xff]
        %v2828 = vld [vmem:[%s2822 + $0x28] sm:$0xff]
        %v2829 = vld [vmem:[%s2822 + $0x30] sm:$0xff]
        %v2830 = vld [vmem:[%s2822 + $0x38] sm:$0xff]
        %v2831 = vld [vmem:[%s2822 + $0x40] sm:$0xff]
        %v2832 = vld [vmem:[%s2822 + $0x48] sm:$0xff]
        %v2833 = vld [vmem:[%s2822 + $0x50] sm:$0xff]
        %v2834 = vld [vmem:[%s2822 + $0x58] sm:$0xff]
        %v2835 = vld [vmem:[%s2822 + $0x60] sm:$0xff]
        %v2836 = vld [vmem:[%s2822 + $0x68] sm:$0xff]
        %v2837 = vld [vmem:[%s2822 + $0x70] sm:$0xff]
        %v2838 = vld [vmem:[%s2822 + $0x78] sm:$0xff]
        %2839 = vmatprep.subr.mxu0 0.0
        %2840 = vmatpush1.msra.mxu0 %v2823
        %2841 = vmatprep.subr.mxu0 0.0
        %2842 = vmatpush1.msra.mxu0 %v2824
        %2843 = vmatprep.subr.mxu0 0.0
        %2844 = vmatpush1.msra.mxu0 %v2825
        %2845 = vmatprep.subr.mxu0 0.0
        %2846 = vmatpush1.msra.mxu0 %v2826
        %2847 = vmatprep.subr.mxu0 0.0
        %2848 = vmatpush1.msra.mxu0 %v2827
        %2849 = vmatprep.subr.mxu0 0.0
        %2850 = vmatpush1.msra.mxu0 %v2828
        %2851 = vmatprep.subr.mxu0 0.0
        %2852 = vmatpush1.msra.mxu0 %v2829
        %2853 = vmatprep.subr.mxu0 0.0
        %2854 = vmatpush1.msra.mxu0 %v2830
        %2855 = vmatprep.subr.mxu0 0.0
        %2856 = vmatpush1.msra.mxu0 %v2831
        %2857 = vmatprep.subr.mxu0 0.0
        %2858 = vmatpush1.msra.mxu0 %v2832
        %2859 = vmatprep.subr.mxu0 0.0
        %2860 = vmatpush1.msra.mxu0 %v2833
        %2861 = vmatprep.subr.mxu0 0.0
        %2862 = vmatpush1.msra.mxu0 %v2834
        %2863 = vmatprep.subr.mxu0 0.0
        %2864 = vmatpush1.msra.mxu0 %v2835
        %2865 = vmatprep.subr.mxu0 0.0
        %2866 = vmatpush1.msra.mxu0 %v2836
        %2867 = vmatprep.subr.mxu0 0.0
        %2868 = vmatpush1.msra.mxu0 %v2837
        %2869 = vmatprep.subr.mxu0 0.0
        %2870 = vmatpush1.msra.mxu0 %v2838
        %2871 = vmatprep.subr.mxu0 0.0
        %2872 = vmatpush1.msra.mxu0 0.0
        %2873 = vmatprep.subr.mxu0 0.0
        %2874 = vmatpush1.msra.mxu0 0.0
        %2875 = vmatprep.subr.mxu0 0.0
        %2876 = vmatpush1.msra.mxu0 0.0
        %2877 = vmatprep.subr.mxu0 0.0
        %2878 = vmatpush1.msra.mxu0 0.0
        %2879 = vmatprep.subr.mxu0 0.0
        %2880 = vmatpush1.msra.mxu0 0.0
        %2881 = vmatprep.subr.mxu0 0.0
        %2882 = vmatpush1.msra.mxu0 0.0
        %2883 = vmatprep.subr.mxu0 0.0
        %2884 = vmatpush1.msra.mxu0 0.0
        %2885 = vmatprep.subr.mxu0 0.0
        %2886 = vmatpush1.msra.mxu0 0.0
        %2887 = vmatprep.subr.mxu0 0.0
        %2888 = vmatpush1.msra.mxu0 0.0
        %2889 = vmatprep.subr.mxu0 0.0
        %2890 = vmatpush1.msra.mxu0 0.0
        %2891 = vmatprep.subr.mxu0 0.0
        %2892 = vmatpush1.msra.mxu0 0.0
        %2893 = vmatprep.subr.mxu0 0.0
        %2894 = vmatpush1.msra.mxu0 0.0
        %2895 = vmatprep.subr.mxu0 0.0
        %2896 = vmatpush1.msra.mxu0 0.0
        %2897 = vmatprep.subr.mxu0 0.0
        %2898 = vmatpush1.msra.mxu0 0.0
        %2899 = vmatprep.subr.mxu0 0.0
        %2900 = vmatpush1.msra.mxu0 0.0
        %2901 = vmatprep.subr.mxu0 0.0
        %2902 = vmatpush1.msra.mxu0 0.0
        %2903 = vmatprep.mubr.f32.mxu0 0.0
        %2904 = vmatmul.mubr.f32.gmra.mrb[0].mxu0 %v2814
        %v2905 = vpop.f32.mrb[0].mxu0
        %v2906 = vadd.f32 0.0, %v2905
        %v2907 = vpop.f32.mrb[0].mxu0
        %2908 = vmatprep.mubr.f32.mxu0 0.0
        %2909 = vmatmul.mubr.f32.gmra.mrb[0].mxu0 %v2815
        %v2910 = vpop.f32.mrb[0].mxu0
        %v2911 = vadd.f32 0.0, %v2910
        %v2912 = vpop.f32.mrb[0].mxu0
        %2913 = vmatprep.mubr.f32.mxu0 0.0
        %2914 = vmatmul.mubr.f32.gmra.mrb[0].mxu0 %v2816
        %v2915 = vpop.f32.mrb[0].mxu0
        %v2916 = vadd.f32 0.0, %v2915
        %v2917 = vpop.f32.mrb[0].mxu0
        %2918 = vmatprep.mubr.f32.mxu0 0.0
        %2919 = vmatmul.mubr.f32.gmra.mrb[0].mxu0 %v2817
        %v2920 = vpop.f32.mrb[0].mxu0
        %v2921 = vadd.f32 0.0, %v2920
        %v2922 = vpop.f32.mrb[0].mxu0
        %2923 = vmatprep.mubr.f32.mxu0 0.0
        %2924 = vmatmul.mubr.f32.gmra.mrb[0].mxu0 %v2818
        %v2925 = vpop.f32.mrb[0].mxu0
        %v2926 = vadd.f32 0.0, %v2925
        %v2927 = vpop.f32.mrb[0].mxu0
        %2928 = vmatprep.mubr.f32.mxu0 0.0
        %2929 = vmatmul.mubr.f32.gmra.mrb[0].mxu0 %v2819
        %v2930 = vpop.f32.mrb[0].mxu0
        %v2931 = vadd.f32 0.0, %v2930
        %v2932 = vpop.f32.mrb[0].mxu0
        %2933 = vmatprep.mubr.f32.mxu0 0.0
        %2934 = vmatmul.mubr.f32.gmra.mrb[0].mxu0 %v2820
        %v2935 = vpop.f32.mrb[0].mxu0
        %v2936 = vadd.f32 0.0, %v2935
        %v2937 = vpop.f32.mrb[0].mxu0
        %2938 = vmatprep.mubr.f32.mxu0 0.0
        %2939 = vmatmul.mubr.f32.gmra.mrb[0].mxu0 %v2821
        %v2940 = vpop.f32.mrb[0].mxu0
        %v2941 = vadd.f32 0.0, %v2940
        %v2942 = vpop.f32.mrb[0].mxu0
        %2943 = vdwg.mxu0
        %v2944 = vadd.f32 %v2806, %v2906
        %v2945 = vadd.f32 %v2807, %v2911
        %v2946 = vadd.f32 %v2808, %v2916
        %v2947 = vadd.f32 %v2809, %v2921
        %v2948 = vadd.f32 %v2810, %v2926
        %v2949 = vadd.f32 %v2811, %v2931
        %v2950 = vadd.f32 %v2812, %v2936
        %v2951 = vadd.f32 %v2813, %v2941
        %v2952 = vmax.f32 %v2944, 0.0
        %v2953 = vmax.f32 %v2945, 0.0
        %v2954 = vmax.f32 %v2946, 0.0
        %v2955 = vmax.f32 %v2947, 0.0
        %v2956 = vmax.f32 %v2948, 0.0
        %v2957 = vmax.f32 %v2949, 0.0
        %v2958 = vmax.f32 %v2950, 0.0
        %v2959 = vmax.f32 %v2951, 0.0
        %v2960 = vld [vmem:[%s21] sm:$0x1]
        %v2962 = vlaneseq
        %v2963 = vshrl.u32 %v2962, 7
        %v2964 = vsub.s32 0, %v2963
        %v2965 = vrot.slane %v2960, %v2964
        %v2967 = vmul.f32 %v2952, %v2965
        %v2968 = vmul.f32 %v2953, %v2965
        %v2969 = vmul.f32 %v2954, %v2965
        %v2970 = vmul.f32 %v2955, %v2965
        %v2971 = vmul.f32 %v2956, %v2965
        %v2972 = vmul.f32 %v2957, %v2965
        %v2973 = vmul.f32 %v2958, %v2965
        %v2974 = vmul.f32 %v2959, %v2965
        %v2975 = vld [vmem:[%s22] sm:$0x1]
        %v2977 = vlaneseq
        %v2978 = vshrl.u32 %v2977, 7
        %v2979 = vsub.s32 0, %v2978
        %v2980 = vrot.slane %v2975, %v2979
        %v2982 = vadd.f32 %v2967, %v2980
        %v2983 = vadd.f32 %v2968, %v2980
        %v2984 = vadd.f32 %v2969, %v2980
        %v2985 = vadd.f32 %v2970, %v2980
        %v2986 = vadd.f32 %v2971, %v2980
        %v2987 = vadd.f32 %v2972, %v2980
        %v2988 = vadd.f32 %v2973, %v2980
        %v2989 = vadd.f32 %v2974, %v2980
        %v2990 = vld [vmem:[#allocation2 + $0x20] sm:$0xff]
        %v2991 = vld [vmem:[#allocation2 + $0x28] sm:$0xff]
        %v2992 = vld [vmem:[#allocation2 + $0x30] sm:$0xff]
        %v2993 = vld [vmem:[#allocation2 + $0x38] sm:$0xff]
        %v2994 = vld [vmem:[#allocation2 + $0x40] sm:$0xff]
        %v2995 = vld [vmem:[#allocation2 + $0x48] sm:$0xff]
        %v2996 = vld [vmem:[#allocation2 + $0x50] sm:$0xff]
        %v2997 = vld [vmem:[#allocation2 + $0x58] sm:$0xff]
        %v2998 = vld [vmem:[#allocation18] sm:$0xff]
        %v2999 = vld [vmem:[#allocation18 + $0x8] sm:$0xff]
        %v3000 = vld [vmem:[#allocation18 + $0x10] sm:$0xff]
        %v3001 = vld [vmem:[#allocation18 + $0x18] sm:$0xff]
        %v3002 = vld [vmem:[#allocation18 + $0x20] sm:$0xff]
        %v3003 = vld [vmem:[#allocation18 + $0x28] sm:$0xff]
        %v3004 = vld [vmem:[#allocation18 + $0x30] sm:$0xff]
        %v3005 = vld [vmem:[#allocation18 + $0x38] sm:$0xff]
        %v3006 = vld [vmem:[#allocation18 + $0x40] sm:$0xff]
        %v3007 = vld [vmem:[#allocation18 + $0x48] sm:$0xff]
        %v3008 = vld [vmem:[#allocation18 + $0x50] sm:$0xff]
        %v3009 = vld [vmem:[#allocation18 + $0x58] sm:$0xff]
        %v3010 = vld [vmem:[#allocation18 + $0x60] sm:$0xff]
        %v3011 = vld [vmem:[#allocation18 + $0x68] sm:$0xff]
        %v3012 = vld [vmem:[#allocation18 + $0x70] sm:$0xff]
        %v3013 = vld [vmem:[#allocation18 + $0x78] sm:$0xff]
        %v3014 = vld [vmem:[%s20] sm:$0x1]
        %v3016 = vlaneseq
        %v3017 = vshrl.u32 %v3016, 7
        %v3018 = vsub.s32 0, %v3017
        %v3019 = vrot.slane %v3014, %v3018
        %3021 = vmatprep.subr.mxu0 0.0
        %3022 = vmatpush1.msra.mxu0 %v2998
        %3023 = vmatprep.subr.mxu0 0.0
        %3024 = vmatpush1.msra.mxu0 %v2999
        %3025 = vmatprep.subr.mxu0 0.0
        %3026 = vmatpush1.msra.mxu0 %v3000
        %3027 = vmatprep.subr.mxu0 0.0
        %3028 = vmatpush1.msra.mxu0 %v3001
        %3029 = vmatprep.subr.mxu0 0.0
        %3030 = vmatpush1.msra.mxu0 %v3002
        %3031 = vmatprep.subr.mxu0 0.0
        %3032 = vmatpush1.msra.mxu0 %v3003
        %3033 = vmatprep.subr.mxu0 0.0
        %3034 = vmatpush1.msra.mxu0 %v3004
        %3035 = vmatprep.subr.mxu0 0.0
        %3036 = vmatpush1.msra.mxu0 %v3005
        %3037 = vmatprep.subr.mxu0 0.0
        %3038 = vmatpush1.msra.mxu0 %v3006
        %3039 = vmatprep.subr.mxu0 0.0
        %3040 = vmatpush1.msra.mxu0 %v3007
        %3041 = vmatprep.subr.mxu0 0.0
        %3042 = vmatpush1.msra.mxu0 %v3008
        %3043 = vmatprep.subr.mxu0 0.0
        %3044 = vmatpush1.msra.mxu0 %v3009
        %3045 = vmatprep.subr.mxu0 0.0
        %3046 = vmatpush1.msra.mxu0 %v3010
        %3047 = vmatprep.subr.mxu0 0.0
        %3048 = vmatpush1.msra.mxu0 %v3011
        %3049 = vmatprep.subr.mxu0 0.0
        %3050 = vmatpush1.msra.mxu0 %v3012
        %3051 = vmatprep.subr.mxu0 0.0
        %3052 = vmatpush1.msra.mxu0 %v3013
        %3053 = vmatprep.subr.mxu0 0.0
        %3054 = vmatpush1.msra.mxu0 0.0
        %3055 = vmatprep.subr.mxu0 0.0
        %3056 = vmatpush1.msra.mxu0 0.0
        %3057 = vmatprep.subr.mxu0 0.0
        %3058 = vmatpush1.msra.mxu0 0.0
        %3059 = vmatprep.subr.mxu0 0.0
        %3060 = vmatpush1.msra.mxu0 0.0
        %3061 = vmatprep.subr.mxu0 0.0
        %3062 = vmatpush1.msra.mxu0 0.0
        %3063 = vmatprep.subr.mxu0 0.0
        %3064 = vmatpush1.msra.mxu0 0.0
        %3065 = vmatprep.subr.mxu0 0.0
        %3066 = vmatpush1.msra.mxu0 0.0
        %3067 = vmatprep.subr.mxu0 0.0
        %3068 = vmatpush1.msra.mxu0 0.0
        %3069 = vmatprep.subr.mxu0 0.0
        %3070 = vmatpush1.msra.mxu0 0.0
        %3071 = vmatprep.subr.mxu0 0.0
        %3072 = vmatpush1.msra.mxu0 0.0
        %3073 = vmatprep.subr.mxu0 0.0
        %3074 = vmatpush1.msra.mxu0 0.0
        %3075 = vmatprep.subr.mxu0 0.0
        %3076 = vmatpush1.msra.mxu0 0.0
        %3077 = vmatprep.subr.mxu0 0.0
        %3078 = vmatpush1.msra.mxu0 0.0
        %3079 = vmatprep.subr.mxu0 0.0
        %3080 = vmatpush1.msra.mxu0 0.0
        %3081 = vmatprep.subr.mxu0 0.0
        %3082 = vmatpush1.msra.mxu0 0.0
        %3083 = vmatprep.subr.mxu0 0.0
        %3084 = vmatpush1.msra.mxu0 0.0
        %3085 = vmatprep.mubr.f32.mxu0 0.0
        %3086 = vmatmul.mubr.f32.gmra.mrb[0].mxu0 %v2990
        %v3087 = vpop.f32.mrb[0].mxu0
        %v3088 = vadd.f32 %v3019, %v3087
        %v3089 = vpop.f32.mrb[0].mxu0
        %3090 = vmatprep.mubr.f32.mxu0 0.0
        %3091 = vmatmul.mubr.f32.gmra.mrb[0].mxu0 %v2991
        %v3092 = vpop.f32.mrb[0].mxu0
        %v3093 = vadd.f32 %v3019, %v3092
        %v3094 = vpop.f32.mrb[0].mxu0
        %3095 = vmatprep.mubr.f32.mxu0 0.0
        %3096 = vmatmul.mubr.f32.gmra.mrb[0].mxu0 %v2992
        %v3097 = vpop.f32.mrb[0].mxu0
        %v3098 = vadd.f32 %v3019, %v3097
        %v3099 = vpop.f32.mrb[0].mxu0
        %3100 = vmatprep.mubr.f32.mxu0 0.0
        %3101 = vmatmul.mubr.f32.gmra.mrb[0].mxu0 %v2993
        %v3102 = vpop.f32.mrb[0].mxu0
        %v3103 = vadd.f32 %v3019, %v3102
        %v3104 = vpop.f32.mrb[0].mxu0
        %3105 = vmatprep.mubr.f32.mxu0 0.0
        %3106 = vmatmul.mubr.f32.gmra.mrb[0].mxu0 %v2994
        %v3107 = vpop.f32.mrb[0].mxu0
        %v3108 = vadd.f32 %v3019, %v3107
        %v3109 = vpop.f32.mrb[0].mxu0
        %3110 = vmatprep.mubr.f32.mxu0 0.0
        %3111 = vmatmul.mubr.f32.gmra.mrb[0].mxu0 %v2995
        %v3112 = vpop.f32.mrb[0].mxu0
        %v3113 = vadd.f32 %v3019, %v3112
        %v3114 = vpop.f32.mrb[0].mxu0
        %3115 = vmatprep.mubr.f32.mxu0 0.0
        %3116 = vmatmul.mubr.f32.gmra.mrb[0].mxu0 %v2996
        %v3117 = vpop.f32.mrb[0].mxu0
        %v3118 = vadd.f32 %v3019, %v3117
        %v3119 = vpop.f32.mrb[0].mxu0
        %3120 = vmatprep.mubr.f32.mxu0 0.0
        %3121 = vmatmul.mubr.f32.gmra.mrb[0].mxu0 %v2997
        %v3122 = vpop.f32.mrb[0].mxu0
        %v3123 = vadd.f32 %v3019, %v3122
        %v3124 = vpop.f32.mrb[0].mxu0
        %3125 = vdwg.mxu0
        %v3126 = vadd.f32 %v3088, %v2982
        %v3127 = vadd.f32 %v3093, %v2983
        %v3128 = vadd.f32 %v3098, %v2984
        %v3129 = vadd.f32 %v3103, %v2985
        %v3130 = vadd.f32 %v3108, %v2986
        %v3131 = vadd.f32 %v3113, %v2987
        %v3132 = vadd.f32 %v3118, %v2988
        %v3133 = vadd.f32 %v3123, %v2989
        %v3134 = vmax.f32 %v3126, 0.0
        %v3135 = vmax.f32 %v3127, 0.0
        %v3136 = vmax.f32 %v3128, 0.0
        %v3137 = vmax.f32 %v3129, 0.0
        %v3138 = vmax.f32 %v3130, 0.0
        %v3139 = vmax.f32 %v3131, 0.0
        %v3140 = vmax.f32 %v3132, 0.0
        %v3141 = vmax.f32 %v3133, 0.0
        %3142 = vst [vmem:[#allocation2 + $0x20] sm:$0xff] %v3134
        %3143 = vst [vmem:[#allocation2 + $0x28] sm:$0xff] %v3135
        %3144 = vst [vmem:[#allocation2 + $0x30] sm:$0xff] %v3136
        %3145 = vst [vmem:[#allocation2 + $0x38] sm:$0xff] %v3137
        %3146 = vst [vmem:[#allocation2 + $0x40] sm:$0xff] %v3138
        %3147 = vst [vmem:[#allocation2 + $0x48] sm:$0xff] %v3139
        %3148 = vst [vmem:[#allocation2 + $0x50] sm:$0xff] %v3140
        %3149 = vst [vmem:[#allocation2 + $0x58] sm:$0xff] %v3141
        %v3150 = vld [vmem:[%s24] sm:$0x1]
        %v3152 = vlaneseq
        %v3153 = vshrl.u32 %v3152, 7
        %v3154 = vsub.s32 0, %v3153
        %v3155 = vrot.slane %v3150, %v3154
        %v3157 = vadd.f32 %v3155, 0.0
        %s3158 = scalar_lea.vmem [#allocation2], 32
        %v3159 = vld [vmem:[%s3158] sm:$0xff]
        %v3160 = vld [vmem:[#allocation19] sm:$0xff]
        %v3161 = vld [vmem:[#allocation19 + $0x8] sm:$0xff]
        %v3162 = vld [vmem:[#allocation19 + $0x10] sm:$0xff]
        %v3163 = vld [vmem:[#allocation19 + $0x18] sm:$0xff]
        %v3164 = vld [vmem:[#allocation19 + $0x20] sm:$0xff]
        %v3165 = vld [vmem:[#allocation19 + $0x28] sm:$0xff]
        %v3166 = vld [vmem:[#allocation19 + $0x30] sm:$0xff]
        %v3167 = vld [vmem:[#allocation19 + $0x38] sm:$0xff]
        %v3168 = vld [vmem:[#allocation19 + $0x40] sm:$0xff]
        %v3169 = vld [vmem:[#allocation19 + $0x48] sm:$0xff]
        %v3170 = vld [vmem:[#allocation19 + $0x50] sm:$0xff]
        %v3171 = vld [vmem:[#allocation19 + $0x58] sm:$0xff]
        %v3172 = vld [vmem:[#allocation19 + $0x60] sm:$0xff]
        %v3173 = vld [vmem:[#allocation19 + $0x68] sm:$0xff]
        %v3174 = vld [vmem:[#allocation19 + $0x70] sm:$0xff]
        %v3175 = vld [vmem:[#allocation19 + $0x78] sm:$0xff]
        %3176 = vmatprep.subr.mxu0 0.0
        %3177 = vmatpush1.msra.mxu0 %v3160
        %3178 = vmatprep.subr.mxu0 0.0
        %3179 = vmatpush1.msra.mxu0 %v3161
        %3180 = vmatprep.subr.mxu0 0.0
        %3181 = vmatpush1.msra.mxu0 %v3162
        %3182 = vmatprep.subr.mxu0 0.0
        %3183 = vmatpush1.msra.mxu0 %v3163
        %3184 = vmatprep.subr.mxu0 0.0
        %3185 = vmatpush1.msra.mxu0 %v3164
        %3186 = vmatprep.subr.mxu0 0.0
        %3187 = vmatpush1.msra.mxu0 %v3165
        %3188 = vmatprep.subr.mxu0 0.0
        %3189 = vmatpush1.msra.mxu0 %v3166
        %3190 = vmatprep.subr.mxu0 0.0
        %3191 = vmatpush1.msra.mxu0 %v3167
        %3192 = vmatprep.subr.mxu0 0.0
        %3193 = vmatpush1.msra.mxu0 %v3168
        %3194 = vmatprep.subr.mxu0 0.0
        %3195 = vmatpush1.msra.mxu0 %v3169
        %3196 = vmatprep.subr.mxu0 0.0
        %3197 = vmatpush1.msra.mxu0 %v3170
        %3198 = vmatprep.subr.mxu0 0.0
        %3199 = vmatpush1.msra.mxu0 %v3171
        %3200 = vmatprep.subr.mxu0 0.0
        %3201 = vmatpush1.msra.mxu0 %v3172
        %3202 = vmatprep.subr.mxu0 0.0
        %3203 = vmatpush1.msra.mxu0 %v3173
        %3204 = vmatprep.subr.mxu0 0.0
        %3205 = vmatpush1.msra.mxu0 %v3174
        %3206 = vmatprep.subr.mxu0 0.0
        %3207 = vmatpush1.msra.mxu0 %v3175
        %3208 = vmatprep.subr.mxu0 0.0
        %3209 = vmatpush1.msra.mxu0 0.0
        %3210 = vmatprep.subr.mxu0 0.0
        %3211 = vmatpush1.msra.mxu0 0.0
        %3212 = vmatprep.subr.mxu0 0.0
        %3213 = vmatpush1.msra.mxu0 0.0
        %3214 = vmatprep.subr.mxu0 0.0
        %3215 = vmatpush1.msra.mxu0 0.0
        %3216 = vmatprep.subr.mxu0 0.0
        %3217 = vmatpush1.msra.mxu0 0.0
        %3218 = vmatprep.subr.mxu0 0.0
        %3219 = vmatpush1.msra.mxu0 0.0
        %3220 = vmatprep.subr.mxu0 0.0
        %3221 = vmatpush1.msra.mxu0 0.0
        %3222 = vmatprep.subr.mxu0 0.0
        %3223 = vmatpush1.msra.mxu0 0.0
        %3224 = vmatprep.subr.mxu0 0.0
        %3225 = vmatpush1.msra.mxu0 0.0
        %3226 = vmatprep.subr.mxu0 0.0
        %3227 = vmatpush1.msra.mxu0 0.0
        %3228 = vmatprep.subr.mxu0 0.0
        %3229 = vmatpush1.msra.mxu0 0.0
        %3230 = vmatprep.subr.mxu0 0.0
        %3231 = vmatpush1.msra.mxu0 0.0
        %3232 = vmatprep.subr.mxu0 0.0
        %3233 = vmatpush1.msra.mxu0 0.0
        %3234 = vmatprep.subr.mxu0 0.0
        %3235 = vmatpush1.msra.mxu0 0.0
        %3236 = vmatprep.subr.mxu0 0.0
        %3237 = vmatpush1.msra.mxu0 0.0
        %3238 = vmatprep.subr.mxu0 0.0
        %3239 = vmatpush1.msra.mxu0 0.0
        %3240 = vmatprep.mubr.f32.mxu0 0.0
        %3241 = vmatmul.mubr.f32.gmra.mrb[0].mxu0 %v3159
        %v3242 = vpop.f32.mrb[0].mxu0
        %v3243 = vadd.f32 0.0, %v3242
        %v3244 = vpop.f32.mrb[0].mxu0
        %3245 = vdwg.mxu0
        %v3246 = vadd.f32 %v3157, %v3243
        %s3247 = scalar_lea.vmem [#allocation2], 40
        %v3248 = vld [vmem:[%s3247] sm:$0xff]
        %s3249 = scalar_lea.vmem [#allocation19], 128
        %v3250 = vld [vmem:[%s3249] sm:$0xff]
        %v3251 = vld [vmem:[%s3249 + $0x8] sm:$0xff]
        %v3252 = vld [vmem:[%s3249 + $0x10] sm:$0xff]
        %v3253 = vld [vmem:[%s3249 + $0x18] sm:$0xff]
        %v3254 = vld [vmem:[%s3249 + $0x20] sm:$0xff]
        %v3255 = vld [vmem:[%s3249 + $0x28] sm:$0xff]
        %v3256 = vld [vmem:[%s3249 + $0x30] sm:$0xff]
        %v3257 = vld [vmem:[%s3249 + $0x38] sm:$0xff]
        %v3258 = vld [vmem:[%s3249 + $0x40] sm:$0xff]
        %v3259 = vld [vmem:[%s3249 + $0x48] sm:$0xff]
        %v3260 = vld [vmem:[%s3249 + $0x50] sm:$0xff]
        %v3261 = vld [vmem:[%s3249 + $0x58] sm:$0xff]
        %v3262 = vld [vmem:[%s3249 + $0x60] sm:$0xff]
        %v3263 = vld [vmem:[%s3249 + $0x68] sm:$0xff]
        %v3264 = vld [vmem:[%s3249 + $0x70] sm:$0xff]
        %v3265 = vld [vmem:[%s3249 + $0x78] sm:$0xff]
        %3266 = vmatprep.subr.mxu0 0.0
        %3267 = vmatpush1.msra.mxu0 %v3250
        %3268 = vmatprep.subr.mxu0 0.0
        %3269 = vmatpush1.msra.mxu0 %v3251
        %3270 = vmatprep.subr.mxu0 0.0
        %3271 = vmatpush1.msra.mxu0 %v3252
        %3272 = vmatprep.subr.mxu0 0.0
        %3273 = vmatpush1.msra.mxu0 %v3253
        %3274 = vmatprep.subr.mxu0 0.0
        %3275 = vmatpush1.msra.mxu0 %v3254
        %3276 = vmatprep.subr.mxu0 0.0
        %3277 = vmatpush1.msra.mxu0 %v3255
        %3278 = vmatprep.subr.mxu0 0.0
        %3279 = vmatpush1.msra.mxu0 %v3256
        %3280 = vmatprep.subr.mxu0 0.0
        %3281 = vmatpush1.msra.mxu0 %v3257
        %3282 = vmatprep.subr.mxu0 0.0
        %3283 = vmatpush1.msra.mxu0 %v3258
        %3284 = vmatprep.subr.mxu0 0.0
        %3285 = vmatpush1.msra.mxu0 %v3259
        %3286 = vmatprep.subr.mxu0 0.0
        %3287 = vmatpush1.msra.mxu0 %v3260
        %3288 = vmatprep.subr.mxu0 0.0
        %3289 = vmatpush1.msra.mxu0 %v3261
        %3290 = vmatprep.subr.mxu0 0.0
        %3291 = vmatpush1.msra.mxu0 %v3262
        %3292 = vmatprep.subr.mxu0 0.0
        %3293 = vmatpush1.msra.mxu0 %v3263
        %3294 = vmatprep.subr.mxu0 0.0
        %3295 = vmatpush1.msra.mxu0 %v3264
        %3296 = vmatprep.subr.mxu0 0.0
        %3297 = vmatpush1.msra.mxu0 %v3265
        %3298 = vmatprep.subr.mxu0 0.0
        %3299 = vmatpush1.msra.mxu0 0.0
        %3300 = vmatprep.subr.mxu0 0.0
        %3301 = vmatpush1.msra.mxu0 0.0
        %3302 = vmatprep.subr.mxu0 0.0
        %3303 = vmatpush1.msra.mxu0 0.0
        %3304 = vmatprep.subr.mxu0 0.0
        %3305 = vmatpush1.msra.mxu0 0.0
        %3306 = vmatprep.subr.mxu0 0.0
        %3307 = vmatpush1.msra.mxu0 0.0
        %3308 = vmatprep.subr.mxu0 0.0
        %3309 = vmatpush1.msra.mxu0 0.0
        %3310 = vmatprep.subr.mxu0 0.0
        %3311 = vmatpush1.msra.mxu0 0.0
        %3312 = vmatprep.subr.mxu0 0.0
        %3313 = vmatpush1.msra.mxu0 0.0
        %3314 = vmatprep.subr.mxu0 0.0
        %3315 = vmatpush1.msra.mxu0 0.0
        %3316 = vmatprep.subr.mxu0 0.0
        %3317 = vmatpush1.msra.mxu0 0.0
        %3318 = vmatprep.subr.mxu0 0.0
        %3319 = vmatpush1.msra.mxu0 0.0
        %3320 = vmatprep.subr.mxu0 0.0
        %3321 = vmatpush1.msra.mxu0 0.0
        %3322 = vmatprep.subr.mxu0 0.0
        %3323 = vmatpush1.msra.mxu0 0.0
        %3324 = vmatprep.subr.mxu0 0.0
        %3325 = vmatpush1.msra.mxu0 0.0
        %3326 = vmatprep.subr.mxu0 0.0
        %3327 = vmatpush1.msra.mxu0 0.0
        %3328 = vmatprep.subr.mxu0 0.0
        %3329 = vmatpush1.msra.mxu0 0.0
        %3330 = vmatprep.mubr.f32.mxu0 0.0
        %3331 = vmatmul.mubr.f32.gmra.mrb[0].mxu0 %v3248
        %v3332 = vpop.f32.mrb[0].mxu0
        %v3333 = vadd.f32 0.0, %v3332
        %v3334 = vpop.f32.mrb[0].mxu0
        %3335 = vdwg.mxu0
        %v3336 = vadd.f32 %v3246, %v3333
        %s3337 = scalar_lea.vmem [#allocation2], 48
        %v3338 = vld [vmem:[%s3337] sm:$0xff]
        %s3339 = scalar_lea.vmem [#allocation19], 256
        %v3340 = vld [vmem:[%s3339] sm:$0xff]
        %v3341 = vld [vmem:[%s3339 + $0x8] sm:$0xff]
        %v3342 = vld [vmem:[%s3339 + $0x10] sm:$0xff]
        %v3343 = vld [vmem:[%s3339 + $0x18] sm:$0xff]
        %v3344 = vld [vmem:[%s3339 + $0x20] sm:$0xff]
        %v3345 = vld [vmem:[%s3339 + $0x28] sm:$0xff]
        %v3346 = vld [vmem:[%s3339 + $0x30] sm:$0xff]
        %v3347 = vld [vmem:[%s3339 + $0x38] sm:$0xff]
        %v3348 = vld [vmem:[%s3339 + $0x40] sm:$0xff]
        %v3349 = vld [vmem:[%s3339 + $0x48] sm:$0xff]
        %v3350 = vld [vmem:[%s3339 + $0x50] sm:$0xff]
        %v3351 = vld [vmem:[%s3339 + $0x58] sm:$0xff]
        %v3352 = vld [vmem:[%s3339 + $0x60] sm:$0xff]
        %v3353 = vld [vmem:[%s3339 + $0x68] sm:$0xff]
        %v3354 = vld [vmem:[%s3339 + $0x70] sm:$0xff]
        %v3355 = vld [vmem:[%s3339 + $0x78] sm:$0xff]
        %3356 = vmatprep.subr.mxu0 0.0
        %3357 = vmatpush1.msra.mxu0 %v3340
        %3358 = vmatprep.subr.mxu0 0.0
        %3359 = vmatpush1.msra.mxu0 %v3341
        %3360 = vmatprep.subr.mxu0 0.0
        %3361 = vmatpush1.msra.mxu0 %v3342
        %3362 = vmatprep.subr.mxu0 0.0
        %3363 = vmatpush1.msra.mxu0 %v3343
        %3364 = vmatprep.subr.mxu0 0.0
        %3365 = vmatpush1.msra.mxu0 %v3344
        %3366 = vmatprep.subr.mxu0 0.0
        %3367 = vmatpush1.msra.mxu0 %v3345
        %3368 = vmatprep.subr.mxu0 0.0
        %3369 = vmatpush1.msra.mxu0 %v3346
        %3370 = vmatprep.subr.mxu0 0.0
        %3371 = vmatpush1.msra.mxu0 %v3347
        %3372 = vmatprep.subr.mxu0 0.0
        %3373 = vmatpush1.msra.mxu0 %v3348
        %3374 = vmatprep.subr.mxu0 0.0
        %3375 = vmatpush1.msra.mxu0 %v3349
        %3376 = vmatprep.subr.mxu0 0.0
        %3377 = vmatpush1.msra.mxu0 %v3350
        %3378 = vmatprep.subr.mxu0 0.0
        %3379 = vmatpush1.msra.mxu0 %v3351
        %3380 = vmatprep.subr.mxu0 0.0
        %3381 = vmatpush1.msra.mxu0 %v3352
        %3382 = vmatprep.subr.mxu0 0.0
        %3383 = vmatpush1.msra.mxu0 %v3353
        %3384 = vmatprep.subr.mxu0 0.0
        %3385 = vmatpush1.msra.mxu0 %v3354
        %3386 = vmatprep.subr.mxu0 0.0
        %3387 = vmatpush1.msra.mxu0 %v3355
        %3388 = vmatprep.subr.mxu0 0.0
        %3389 = vmatpush1.msra.mxu0 0.0
        %3390 = vmatprep.subr.mxu0 0.0
        %3391 = vmatpush1.msra.mxu0 0.0
        %3392 = vmatprep.subr.mxu0 0.0
        %3393 = vmatpush1.msra.mxu0 0.0
        %3394 = vmatprep.subr.mxu0 0.0
        %3395 = vmatpush1.msra.mxu0 0.0
        %3396 = vmatprep.subr.mxu0 0.0
        %3397 = vmatpush1.msra.mxu0 0.0
        %3398 = vmatprep.subr.mxu0 0.0
        %3399 = vmatpush1.msra.mxu0 0.0
        %3400 = vmatprep.subr.mxu0 0.0
        %3401 = vmatpush1.msra.mxu0 0.0
        %3402 = vmatprep.subr.mxu0 0.0
        %3403 = vmatpush1.msra.mxu0 0.0
        %3404 = vmatprep.subr.mxu0 0.0
        %3405 = vmatpush1.msra.mxu0 0.0
        %3406 = vmatprep.subr.mxu0 0.0
        %3407 = vmatpush1.msra.mxu0 0.0
        %3408 = vmatprep.subr.mxu0 0.0
        %3409 = vmatpush1.msra.mxu0 0.0
        %3410 = vmatprep.subr.mxu0 0.0
        %3411 = vmatpush1.msra.mxu0 0.0
        %3412 = vmatprep.subr.mxu0 0.0
        %3413 = vmatpush1.msra.mxu0 0.0
        %3414 = vmatprep.subr.mxu0 0.0
        %3415 = vmatpush1.msra.mxu0 0.0
        %3416 = vmatprep.subr.mxu0 0.0
        %3417 = vmatpush1.msra.mxu0 0.0
        %3418 = vmatprep.subr.mxu0 0.0
        %3419 = vmatpush1.msra.mxu0 0.0
        %3420 = vmatprep.mubr.f32.mxu0 0.0
        %3421 = vmatmul.mubr.f32.gmra.mrb[0].mxu0 %v3338
        %v3422 = vpop.f32.mrb[0].mxu0
        %v3423 = vadd.f32 0.0, %v3422
        %v3424 = vpop.f32.mrb[0].mxu0
        %3425 = vdwg.mxu0
        %v3426 = vadd.f32 %v3336, %v3423
        %s3427 = scalar_lea.vmem [#allocation2], 56
        %v3428 = vld [vmem:[%s3427] sm:$0xff]
        %s3429 = scalar_lea.vmem [#allocation19], 384
        %v3430 = vld [vmem:[%s3429] sm:$0xff]
        %v3431 = vld [vmem:[%s3429 + $0x8] sm:$0xff]
        %v3432 = vld [vmem:[%s3429 + $0x10] sm:$0xff]
        %v3433 = vld [vmem:[%s3429 + $0x18] sm:$0xff]
        %v3434 = vld [vmem:[%s3429 + $0x20] sm:$0xff]
        %v3435 = vld [vmem:[%s3429 + $0x28] sm:$0xff]
        %v3436 = vld [vmem:[%s3429 + $0x30] sm:$0xff]
        %v3437 = vld [vmem:[%s3429 + $0x38] sm:$0xff]
        %v3438 = vld [vmem:[%s3429 + $0x40] sm:$0xff]
        %v3439 = vld [vmem:[%s3429 + $0x48] sm:$0xff]
        %v3440 = vld [vmem:[%s3429 + $0x50] sm:$0xff]
        %v3441 = vld [vmem:[%s3429 + $0x58] sm:$0xff]
        %v3442 = vld [vmem:[%s3429 + $0x60] sm:$0xff]
        %v3443 = vld [vmem:[%s3429 + $0x68] sm:$0xff]
        %v3444 = vld [vmem:[%s3429 + $0x70] sm:$0xff]
        %v3445 = vld [vmem:[%s3429 + $0x78] sm:$0xff]
        %3446 = vmatprep.subr.mxu0 0.0
        %3447 = vmatpush1.msra.mxu0 %v3430
        %3448 = vmatprep.subr.mxu0 0.0
        %3449 = vmatpush1.msra.mxu0 %v3431
        %3450 = vmatprep.subr.mxu0 0.0
        %3451 = vmatpush1.msra.mxu0 %v3432
        %3452 = vmatprep.subr.mxu0 0.0
        %3453 = vmatpush1.msra.mxu0 %v3433
        %3454 = vmatprep.subr.mxu0 0.0
        %3455 = vmatpush1.msra.mxu0 %v3434
        %3456 = vmatprep.subr.mxu0 0.0
        %3457 = vmatpush1.msra.mxu0 %v3435
        %3458 = vmatprep.subr.mxu0 0.0
        %3459 = vmatpush1.msra.mxu0 %v3436
        %3460 = vmatprep.subr.mxu0 0.0
        %3461 = vmatpush1.msra.mxu0 %v3437
        %3462 = vmatprep.subr.mxu0 0.0
        %3463 = vmatpush1.msra.mxu0 %v3438
        %3464 = vmatprep.subr.mxu0 0.0
        %3465 = vmatpush1.msra.mxu0 %v3439
        %3466 = vmatprep.subr.mxu0 0.0
        %3467 = vmatpush1.msra.mxu0 %v3440
        %3468 = vmatprep.subr.mxu0 0.0
        %3469 = vmatpush1.msra.mxu0 %v3441
        %3470 = vmatprep.subr.mxu0 0.0
        %3471 = vmatpush1.msra.mxu0 %v3442
        %3472 = vmatprep.subr.mxu0 0.0
        %3473 = vmatpush1.msra.mxu0 %v3443
        %3474 = vmatprep.subr.mxu0 0.0
        %3475 = vmatpush1.msra.mxu0 %v3444
        %3476 = vmatprep.subr.mxu0 0.0
        %3477 = vmatpush1.msra.mxu0 %v3445
        %3478 = vmatprep.subr.mxu0 0.0
        %3479 = vmatpush1.msra.mxu0 0.0
        %3480 = vmatprep.subr.mxu0 0.0
        %3481 = vmatpush1.msra.mxu0 0.0
        %3482 = vmatprep.subr.mxu0 0.0
        %3483 = vmatpush1.msra.mxu0 0.0
        %3484 = vmatprep.subr.mxu0 0.0
        %3485 = vmatpush1.msra.mxu0 0.0
        %3486 = vmatprep.subr.mxu0 0.0
        %3487 = vmatpush1.msra.mxu0 0.0
        %3488 = vmatprep.subr.mxu0 0.0
        %3489 = vmatpush1.msra.mxu0 0.0
        %3490 = vmatprep.subr.mxu0 0.0
        %3491 = vmatpush1.msra.mxu0 0.0
        %3492 = vmatprep.subr.mxu0 0.0
        %3493 = vmatpush1.msra.mxu0 0.0
        %3494 = vmatprep.subr.mxu0 0.0
        %3495 = vmatpush1.msra.mxu0 0.0
        %3496 = vmatprep.subr.mxu0 0.0
        %3497 = vmatpush1.msra.mxu0 0.0
        %3498 = vmatprep.subr.mxu0 0.0
        %3499 = vmatpush1.msra.mxu0 0.0
        %3500 = vmatprep.subr.mxu0 0.0
        %3501 = vmatpush1.msra.mxu0 0.0
        %3502 = vmatprep.subr.mxu0 0.0
        %3503 = vmatpush1.msra.mxu0 0.0
        %3504 = vmatprep.subr.mxu0 0.0
        %3505 = vmatpush1.msra.mxu0 0.0
        %3506 = vmatprep.subr.mxu0 0.0
        %3507 = vmatpush1.msra.mxu0 0.0
        %3508 = vmatprep.subr.mxu0 0.0
        %3509 = vmatpush1.msra.mxu0 0.0
        %3510 = vmatprep.mubr.f32.mxu0 0.0
        %3511 = vmatmul.mubr.f32.gmra.mrb[0].mxu0 %v3428
        %v3512 = vpop.f32.mrb[0].mxu0
        %v3513 = vadd.f32 0.0, %v3512
        %v3514 = vpop.f32.mrb[0].mxu0
        %3515 = vdwg.mxu0
        %v3516 = vadd.f32 %v3426, %v3513
        %s3517 = scalar_lea.vmem [#allocation2], 64
        %v3518 = vld [vmem:[%s3517] sm:$0xff]
        %s3519 = scalar_lea.vmem [#allocation19], 512
        %v3520 = vld [vmem:[%s3519] sm:$0xff]
        %v3521 = vld [vmem:[%s3519 + $0x8] sm:$0xff]
        %v3522 = vld [vmem:[%s3519 + $0x10] sm:$0xff]
        %v3523 = vld [vmem:[%s3519 + $0x18] sm:$0xff]
        %v3524 = vld [vmem:[%s3519 + $0x20] sm:$0xff]
        %v3525 = vld [vmem:[%s3519 + $0x28] sm:$0xff]
        %v3526 = vld [vmem:[%s3519 + $0x30] sm:$0xff]
        %v3527 = vld [vmem:[%s3519 + $0x38] sm:$0xff]
        %v3528 = vld [vmem:[%s3519 + $0x40] sm:$0xff]
        %v3529 = vld [vmem:[%s3519 + $0x48] sm:$0xff]
        %v3530 = vld [vmem:[%s3519 + $0x50] sm:$0xff]
        %v3531 = vld [vmem:[%s3519 + $0x58] sm:$0xff]
        %v3532 = vld [vmem:[%s3519 + $0x60] sm:$0xff]
        %v3533 = vld [vmem:[%s3519 + $0x68] sm:$0xff]
        %v3534 = vld [vmem:[%s3519 + $0x70] sm:$0xff]
        %v3535 = vld [vmem:[%s3519 + $0x78] sm:$0xff]
        %3536 = vmatprep.subr.mxu0 0.0
        %3537 = vmatpush1.msra.mxu0 %v3520
        %3538 = vmatprep.subr.mxu0 0.0
        %3539 = vmatpush1.msra.mxu0 %v3521
        %3540 = vmatprep.subr.mxu0 0.0
        %3541 = vmatpush1.msra.mxu0 %v3522
        %3542 = vmatprep.subr.mxu0 0.0
        %3543 = vmatpush1.msra.mxu0 %v3523
        %3544 = vmatprep.subr.mxu0 0.0
        %3545 = vmatpush1.msra.mxu0 %v3524
        %3546 = vmatprep.subr.mxu0 0.0
        %3547 = vmatpush1.msra.mxu0 %v3525
        %3548 = vmatprep.subr.mxu0 0.0
        %3549 = vmatpush1.msra.mxu0 %v3526
        %3550 = vmatprep.subr.mxu0 0.0
        %3551 = vmatpush1.msra.mxu0 %v3527
        %3552 = vmatprep.subr.mxu0 0.0
        %3553 = vmatpush1.msra.mxu0 %v3528
        %3554 = vmatprep.subr.mxu0 0.0
        %3555 = vmatpush1.msra.mxu0 %v3529
        %3556 = vmatprep.subr.mxu0 0.0
        %3557 = vmatpush1.msra.mxu0 %v3530
        %3558 = vmatprep.subr.mxu0 0.0
        %3559 = vmatpush1.msra.mxu0 %v3531
        %3560 = vmatprep.subr.mxu0 0.0
        %3561 = vmatpush1.msra.mxu0 %v3532
        %3562 = vmatprep.subr.mxu0 0.0
        %3563 = vmatpush1.msra.mxu0 %v3533
        %3564 = vmatprep.subr.mxu0 0.0
        %3565 = vmatpush1.msra.mxu0 %v3534
        %3566 = vmatprep.subr.mxu0 0.0
        %3567 = vmatpush1.msra.mxu0 %v3535
        %3568 = vmatprep.subr.mxu0 0.0
        %3569 = vmatpush1.msra.mxu0 0.0
        %3570 = vmatprep.subr.mxu0 0.0
        %3571 = vmatpush1.msra.mxu0 0.0
        %3572 = vmatprep.subr.mxu0 0.0
        %3573 = vmatpush1.msra.mxu0 0.0
        %3574 = vmatprep.subr.mxu0 0.0
        %3575 = vmatpush1.msra.mxu0 0.0
        %3576 = vmatprep.subr.mxu0 0.0
        %3577 = vmatpush1.msra.mxu0 0.0
        %3578 = vmatprep.subr.mxu0 0.0
        %3579 = vmatpush1.msra.mxu0 0.0
        %3580 = vmatprep.subr.mxu0 0.0
        %3581 = vmatpush1.msra.mxu0 0.0
        %3582 = vmatprep.subr.mxu0 0.0
        %3583 = vmatpush1.msra.mxu0 0.0
        %3584 = vmatprep.subr.mxu0 0.0
        %3585 = vmatpush1.msra.mxu0 0.0
        %3586 = vmatprep.subr.mxu0 0.0
        %3587 = vmatpush1.msra.mxu0 0.0
        %3588 = vmatprep.subr.mxu0 0.0
        %3589 = vmatpush1.msra.mxu0 0.0
        %3590 = vmatprep.subr.mxu0 0.0
        %3591 = vmatpush1.msra.mxu0 0.0
        %3592 = vmatprep.subr.mxu0 0.0
        %3593 = vmatpush1.msra.mxu0 0.0
        %3594 = vmatprep.subr.mxu0 0.0
        %3595 = vmatpush1.msra.mxu0 0.0
        %3596 = vmatprep.subr.mxu0 0.0
        %3597 = vmatpush1.msra.mxu0 0.0
        %3598 = vmatprep.subr.mxu0 0.0
        %3599 = vmatpush1.msra.mxu0 0.0
        %3600 = vmatprep.mubr.f32.mxu0 0.0
        %3601 = vmatmul.mubr.f32.gmra.mrb[0].mxu0 %v3518
        %v3602 = vpop.f32.mrb[0].mxu0
        %v3603 = vadd.f32 0.0, %v3602
        %v3604 = vpop.f32.mrb[0].mxu0
        %3605 = vdwg.mxu0
        %v3606 = vadd.f32 %v3516, %v3603
        %s3607 = scalar_lea.vmem [#allocation2], 72
        %v3608 = vld [vmem:[%s3607] sm:$0xff]
        %s3609 = scalar_lea.vmem [#allocation19], 640
        %v3610 = vld [vmem:[%s3609] sm:$0xff]
        %v3611 = vld [vmem:[%s3609 + $0x8] sm:$0xff]
        %v3612 = vld [vmem:[%s3609 + $0x10] sm:$0xff]
        %v3613 = vld [vmem:[%s3609 + $0x18] sm:$0xff]
        %v3614 = vld [vmem:[%s3609 + $0x20] sm:$0xff]
        %v3615 = vld [vmem:[%s3609 + $0x28] sm:$0xff]
        %v3616 = vld [vmem:[%s3609 + $0x30] sm:$0xff]
        %v3617 = vld [vmem:[%s3609 + $0x38] sm:$0xff]
        %v3618 = vld [vmem:[%s3609 + $0x40] sm:$0xff]
        %v3619 = vld [vmem:[%s3609 + $0x48] sm:$0xff]
        %v3620 = vld [vmem:[%s3609 + $0x50] sm:$0xff]
        %v3621 = vld [vmem:[%s3609 + $0x58] sm:$0xff]
        %v3622 = vld [vmem:[%s3609 + $0x60] sm:$0xff]
        %v3623 = vld [vmem:[%s3609 + $0x68] sm:$0xff]
        %v3624 = vld [vmem:[%s3609 + $0x70] sm:$0xff]
        %v3625 = vld [vmem:[%s3609 + $0x78] sm:$0xff]
        %3626 = vmatprep.subr.mxu0 0.0
        %3627 = vmatpush1.msra.mxu0 %v3610
        %3628 = vmatprep.subr.mxu0 0.0
        %3629 = vmatpush1.msra.mxu0 %v3611
        %3630 = vmatprep.subr.mxu0 0.0
        %3631 = vmatpush1.msra.mxu0 %v3612
        %3632 = vmatprep.subr.mxu0 0.0
        %3633 = vmatpush1.msra.mxu0 %v3613
        %3634 = vmatprep.subr.mxu0 0.0
        %3635 = vmatpush1.msra.mxu0 %v3614
        %3636 = vmatprep.subr.mxu0 0.0
        %3637 = vmatpush1.msra.mxu0 %v3615
        %3638 = vmatprep.subr.mxu0 0.0
        %3639 = vmatpush1.msra.mxu0 %v3616
        %3640 = vmatprep.subr.mxu0 0.0
        %3641 = vmatpush1.msra.mxu0 %v3617
        %3642 = vmatprep.subr.mxu0 0.0
        %3643 = vmatpush1.msra.mxu0 %v3618
        %3644 = vmatprep.subr.mxu0 0.0
        %3645 = vmatpush1.msra.mxu0 %v3619
        %3646 = vmatprep.subr.mxu0 0.0
        %3647 = vmatpush1.msra.mxu0 %v3620
        %3648 = vmatprep.subr.mxu0 0.0
        %3649 = vmatpush1.msra.mxu0 %v3621
        %3650 = vmatprep.subr.mxu0 0.0
        %3651 = vmatpush1.msra.mxu0 %v3622
        %3652 = vmatprep.subr.mxu0 0.0
        %3653 = vmatpush1.msra.mxu0 %v3623
        %3654 = vmatprep.subr.mxu0 0.0
        %3655 = vmatpush1.msra.mxu0 %v3624
        %3656 = vmatprep.subr.mxu0 0.0
        %3657 = vmatpush1.msra.mxu0 %v3625
        %3658 = vmatprep.subr.mxu0 0.0
        %3659 = vmatpush1.msra.mxu0 0.0
        %3660 = vmatprep.subr.mxu0 0.0
        %3661 = vmatpush1.msra.mxu0 0.0
        %3662 = vmatprep.subr.mxu0 0.0
        %3663 = vmatpush1.msra.mxu0 0.0
        %3664 = vmatprep.subr.mxu0 0.0
        %3665 = vmatpush1.msra.mxu0 0.0
        %3666 = vmatprep.subr.mxu0 0.0
        %3667 = vmatpush1.msra.mxu0 0.0
        %3668 = vmatprep.subr.mxu0 0.0
        %3669 = vmatpush1.msra.mxu0 0.0
        %3670 = vmatprep.subr.mxu0 0.0
        %3671 = vmatpush1.msra.mxu0 0.0
        %3672 = vmatprep.subr.mxu0 0.0
        %3673 = vmatpush1.msra.mxu0 0.0
        %3674 = vmatprep.subr.mxu0 0.0
        %3675 = vmatpush1.msra.mxu0 0.0
        %3676 = vmatprep.subr.mxu0 0.0
        %3677 = vmatpush1.msra.mxu0 0.0
        %3678 = vmatprep.subr.mxu0 0.0
        %3679 = vmatpush1.msra.mxu0 0.0
        %3680 = vmatprep.subr.mxu0 0.0
        %3681 = vmatpush1.msra.mxu0 0.0
        %3682 = vmatprep.subr.mxu0 0.0
        %3683 = vmatpush1.msra.mxu0 0.0
        %3684 = vmatprep.subr.mxu0 0.0
        %3685 = vmatpush1.msra.mxu0 0.0
        %3686 = vmatprep.subr.mxu0 0.0
        %3687 = vmatpush1.msra.mxu0 0.0
        %3688 = vmatprep.subr.mxu0 0.0
        %3689 = vmatpush1.msra.mxu0 0.0
        %3690 = vmatprep.mubr.f32.mxu0 0.0
        %3691 = vmatmul.mubr.f32.gmra.mrb[0].mxu0 %v3608
        %v3692 = vpop.f32.mrb[0].mxu0
        %v3693 = vadd.f32 0.0, %v3692
        %v3694 = vpop.f32.mrb[0].mxu0
        %3695 = vdwg.mxu0
        %v3696 = vadd.f32 %v3606, %v3693
        %s3697 = scalar_lea.vmem [#allocation2], 80
        %v3698 = vld [vmem:[%s3697] sm:$0xff]
        %s3699 = scalar_lea.vmem [#allocation19], 768
        %v3700 = vld [vmem:[%s3699] sm:$0xff]
        %v3701 = vld [vmem:[%s3699 + $0x8] sm:$0xff]
        %v3702 = vld [vmem:[%s3699 + $0x10] sm:$0xff]
        %v3703 = vld [vmem:[%s3699 + $0x18] sm:$0xff]
        %v3704 = vld [vmem:[%s3699 + $0x20] sm:$0xff]
        %v3705 = vld [vmem:[%s3699 + $0x28] sm:$0xff]
        %v3706 = vld [vmem:[%s3699 + $0x30] sm:$0xff]
        %v3707 = vld [vmem:[%s3699 + $0x38] sm:$0xff]
        %v3708 = vld [vmem:[%s3699 + $0x40] sm:$0xff]
        %v3709 = vld [vmem:[%s3699 + $0x48] sm:$0xff]
        %v3710 = vld [vmem:[%s3699 + $0x50] sm:$0xff]
        %v3711 = vld [vmem:[%s3699 + $0x58] sm:$0xff]
        %v3712 = vld [vmem:[%s3699 + $0x60] sm:$0xff]
        %v3713 = vld [vmem:[%s3699 + $0x68] sm:$0xff]
        %v3714 = vld [vmem:[%s3699 + $0x70] sm:$0xff]
        %v3715 = vld [vmem:[%s3699 + $0x78] sm:$0xff]
        %3716 = vmatprep.subr.mxu0 0.0
        %3717 = vmatpush1.msra.mxu0 %v3700
        %3718 = vmatprep.subr.mxu0 0.0
        %3719 = vmatpush1.msra.mxu0 %v3701
        %3720 = vmatprep.subr.mxu0 0.0
        %3721 = vmatpush1.msra.mxu0 %v3702
        %3722 = vmatprep.subr.mxu0 0.0
        %3723 = vmatpush1.msra.mxu0 %v3703
        %3724 = vmatprep.subr.mxu0 0.0
        %3725 = vmatpush1.msra.mxu0 %v3704
        %3726 = vmatprep.subr.mxu0 0.0
        %3727 = vmatpush1.msra.mxu0 %v3705
        %3728 = vmatprep.subr.mxu0 0.0
        %3729 = vmatpush1.msra.mxu0 %v3706
        %3730 = vmatprep.subr.mxu0 0.0
        %3731 = vmatpush1.msra.mxu0 %v3707
        %3732 = vmatprep.subr.mxu0 0.0
        %3733 = vmatpush1.msra.mxu0 %v3708
        %3734 = vmatprep.subr.mxu0 0.0
        %3735 = vmatpush1.msra.mxu0 %v3709
        %3736 = vmatprep.subr.mxu0 0.0
        %3737 = vmatpush1.msra.mxu0 %v3710
        %3738 = vmatprep.subr.mxu0 0.0
        %3739 = vmatpush1.msra.mxu0 %v3711
        %3740 = vmatprep.subr.mxu0 0.0
        %3741 = vmatpush1.msra.mxu0 %v3712
        %3742 = vmatprep.subr.mxu0 0.0
        %3743 = vmatpush1.msra.mxu0 %v3713
        %3744 = vmatprep.subr.mxu0 0.0
        %3745 = vmatpush1.msra.mxu0 %v3714
        %3746 = vmatprep.subr.mxu0 0.0
        %3747 = vmatpush1.msra.mxu0 %v3715
        %3748 = vmatprep.subr.mxu0 0.0
        %3749 = vmatpush1.msra.mxu0 0.0
        %3750 = vmatprep.subr.mxu0 0.0
        %3751 = vmatpush1.msra.mxu0 0.0
        %3752 = vmatprep.subr.mxu0 0.0
        %3753 = vmatpush1.msra.mxu0 0.0
        %3754 = vmatprep.subr.mxu0 0.0
        %3755 = vmatpush1.msra.mxu0 0.0
        %3756 = vmatprep.subr.mxu0 0.0
        %3757 = vmatpush1.msra.mxu0 0.0
        %3758 = vmatprep.subr.mxu0 0.0
        %3759 = vmatpush1.msra.mxu0 0.0
        %3760 = vmatprep.subr.mxu0 0.0
        %3761 = vmatpush1.msra.mxu0 0.0
        %3762 = vmatprep.subr.mxu0 0.0
        %3763 = vmatpush1.msra.mxu0 0.0
        %3764 = vmatprep.subr.mxu0 0.0
        %3765 = vmatpush1.msra.mxu0 0.0
        %3766 = vmatprep.subr.mxu0 0.0
        %3767 = vmatpush1.msra.mxu0 0.0
        %3768 = vmatprep.subr.mxu0 0.0
        %3769 = vmatpush1.msra.mxu0 0.0
        %3770 = vmatprep.subr.mxu0 0.0
        %3771 = vmatpush1.msra.mxu0 0.0
        %3772 = vmatprep.subr.mxu0 0.0
        %3773 = vmatpush1.msra.mxu0 0.0
        %3774 = vmatprep.subr.mxu0 0.0
        %3775 = vmatpush1.msra.mxu0 0.0
        %3776 = vmatprep.subr.mxu0 0.0
        %3777 = vmatpush1.msra.mxu0 0.0
        %3778 = vmatprep.subr.mxu0 0.0
        %3779 = vmatpush1.msra.mxu0 0.0
        %3780 = vmatprep.mubr.f32.mxu0 0.0
        %3781 = vmatmul.mubr.f32.gmra.mrb[0].mxu0 %v3698
        %v3782 = vpop.f32.mrb[0].mxu0
        %v3783 = vadd.f32 0.0, %v3782
        %v3784 = vpop.f32.mrb[0].mxu0
        %3785 = vdwg.mxu0
        %v3786 = vadd.f32 %v3696, %v3783
        %s3787 = scalar_lea.vmem [#allocation2], 88
        %v3788 = vld [vmem:[%s3787] sm:$0xff]
        %s3789 = scalar_lea.vmem [#allocation19], 896
        %v3790 = vld [vmem:[%s3789] sm:$0xff]
        %v3791 = vld [vmem:[%s3789 + $0x8] sm:$0xff]
        %v3792 = vld [vmem:[%s3789 + $0x10] sm:$0xff]
        %v3793 = vld [vmem:[%s3789 + $0x18] sm:$0xff]
        %v3794 = vld [vmem:[%s3789 + $0x20] sm:$0xff]
        %v3795 = vld [vmem:[%s3789 + $0x28] sm:$0xff]
        %v3796 = vld [vmem:[%s3789 + $0x30] sm:$0xff]
        %v3797 = vld [vmem:[%s3789 + $0x38] sm:$0xff]
        %v3798 = vld [vmem:[%s3789 + $0x40] sm:$0xff]
        %v3799 = vld [vmem:[%s3789 + $0x48] sm:$0xff]
        %v3800 = vld [vmem:[%s3789 + $0x50] sm:$0xff]
        %v3801 = vld [vmem:[%s3789 + $0x58] sm:$0xff]
        %v3802 = vld [vmem:[%s3789 + $0x60] sm:$0xff]
        %v3803 = vld [vmem:[%s3789 + $0x68] sm:$0xff]
        %v3804 = vld [vmem:[%s3789 + $0x70] sm:$0xff]
        %v3805 = vld [vmem:[%s3789 + $0x78] sm:$0xff]
        %3806 = vmatprep.subr.mxu0 0.0
        %3807 = vmatpush1.msra.mxu0 %v3790
        %3808 = vmatprep.subr.mxu0 0.0
        %3809 = vmatpush1.msra.mxu0 %v3791
        %3810 = vmatprep.subr.mxu0 0.0
        %3811 = vmatpush1.msra.mxu0 %v3792
        %3812 = vmatprep.subr.mxu0 0.0
        %3813 = vmatpush1.msra.mxu0 %v3793
        %3814 = vmatprep.subr.mxu0 0.0
        %3815 = vmatpush1.msra.mxu0 %v3794
        %3816 = vmatprep.subr.mxu0 0.0
        %3817 = vmatpush1.msra.mxu0 %v3795
        %3818 = vmatprep.subr.mxu0 0.0
        %3819 = vmatpush1.msra.mxu0 %v3796
        %3820 = vmatprep.subr.mxu0 0.0
        %3821 = vmatpush1.msra.mxu0 %v3797
        %3822 = vmatprep.subr.mxu0 0.0
        %3823 = vmatpush1.msra.mxu0 %v3798
        %3824 = vmatprep.subr.mxu0 0.0
        %3825 = vmatpush1.msra.mxu0 %v3799
        %3826 = vmatprep.subr.mxu0 0.0
        %3827 = vmatpush1.msra.mxu0 %v3800
        %3828 = vmatprep.subr.mxu0 0.0
        %3829 = vmatpush1.msra.mxu0 %v3801
        %3830 = vmatprep.subr.mxu0 0.0
        %3831 = vmatpush1.msra.mxu0 %v3802
        %3832 = vmatprep.subr.mxu0 0.0
        %3833 = vmatpush1.msra.mxu0 %v3803
        %3834 = vmatprep.subr.mxu0 0.0
        %3835 = vmatpush1.msra.mxu0 %v3804
        %3836 = vmatprep.subr.mxu0 0.0
        %3837 = vmatpush1.msra.mxu0 %v3805
        %3838 = vmatprep.subr.mxu0 0.0
        %3839 = vmatpush1.msra.mxu0 0.0
        %3840 = vmatprep.subr.mxu0 0.0
        %3841 = vmatpush1.msra.mxu0 0.0
        %3842 = vmatprep.subr.mxu0 0.0
        %3843 = vmatpush1.msra.mxu0 0.0
        %3844 = vmatprep.subr.mxu0 0.0
        %3845 = vmatpush1.msra.mxu0 0.0
        %3846 = vmatprep.subr.mxu0 0.0
        %3847 = vmatpush1.msra.mxu0 0.0
        %3848 = vmatprep.subr.mxu0 0.0
        %3849 = vmatpush1.msra.mxu0 0.0
        %3850 = vmatprep.subr.mxu0 0.0
        %3851 = vmatpush1.msra.mxu0 0.0
        %3852 = vmatprep.subr.mxu0 0.0
        %3853 = vmatpush1.msra.mxu0 0.0
        %3854 = vmatprep.subr.mxu0 0.0
        %3855 = vmatpush1.msra.mxu0 0.0
        %3856 = vmatprep.subr.mxu0 0.0
        %3857 = vmatpush1.msra.mxu0 0.0
        %3858 = vmatprep.subr.mxu0 0.0
        %3859 = vmatpush1.msra.mxu0 0.0
        %3860 = vmatprep.subr.mxu0 0.0
        %3861 = vmatpush1.msra.mxu0 0.0
        %3862 = vmatprep.subr.mxu0 0.0
        %3863 = vmatpush1.msra.mxu0 0.0
        %3864 = vmatprep.subr.mxu0 0.0
        %3865 = vmatpush1.msra.mxu0 0.0
        %3866 = vmatprep.subr.mxu0 0.0
        %3867 = vmatpush1.msra.mxu0 0.0
        %3868 = vmatprep.subr.mxu0 0.0
        %3869 = vmatpush1.msra.mxu0 0.0
        %3870 = vmatprep.mubr.f32.mxu0 0.0
        %3871 = vmatmul.mubr.f32.gmra.mrb[0].mxu0 %v3788
        %v3872 = vpop.f32.mrb[0].mxu0
        %v3873 = vadd.f32 0.0, %v3872
        %v3874 = vpop.f32.mrb[0].mxu0
        %3875 = vdwg.mxu0
        %v3876 = vadd.f32 %v3786, %v3873
        %v3877 = vmax.f32 %v3876, 0.0
        %3878 = vst [vmem:[%s913] sm:$0xff] %v3877
        %s3879 = sand.u32 %s585, 1
        %s3880 = scalar_lea.sflag [#allocation6], %s3879
        %s3881 = sand.u32 %s585, 1
        %s3882 = smul.addr %s3881, 8
        %s3883 = scalar_lea.vmem [#allocation21], %s3882
        // Predicated region
        $region161: #{tpu_custom_call.1} parent=119 // pred_check
          %p3884 = pneg %p595
        $region162: #{tpu_custom_call.1} parent=119 // pred_check_branch
          %3886 = sbr.rel (%p3884) target = $region164
        $region163: #{tpu_custom_call.1} parent=119 // pred_region
          %s3888 = ssub.s32 128, 128
          %3889 = vsyncadd %s3880, %s3888
          %s3890 = smul.addr %s47, 128
          %s3891 = scalar_lea.hbm %s25, %s3890
          %s3893 = sshll.u32 %s3883, 4
          %s3894 = int_to_ptr.vmem [resolvable:$true] %s3893
          %3896 = dma.vmem_to_hbm [thread:$0]  %s3894, 128, %s3891, %s3880
        $region164: #{tpu_custom_call.1} parent=119 // pred_fallthru
          _
      $region120: #{tpu_custom_call.1} parent=5 // pred_fallthru
        _
      %p3897 = scmp.le.s32.totalorder 2, %s42
      // Predicated region
      $region165: #{tpu_custom_call.1} parent=5 // pred_check
        %p3898 = pneg %p3897
      $region166: #{tpu_custom_call.1} parent=5 // pred_check_branch
        %3900 = sbr.rel (%p3898) target = $region168
      $region167: #{tpu_custom_call.1} parent=5 // pred_region
        %s3901 = ssub.s32 %s42, 2
        // Predicated region
        $region169: #{tpu_custom_call.1} parent=167 // pred_check
          %p3902 = pneg %p601
        $region170: #{tpu_custom_call.1} parent=167 // pred_check_branch
          %3904 = sbr.rel (%p3902) target = $region172
        $region171: #{tpu_custom_call.1} parent=167 // pred_region
          %s3905 = sand.u32 %s586, 1
          %s3906 = scalar_lea.sflag [#allocation6], %s3905
          %s3907 = sand.u32 %s586, 1
          %s3908 = smul.addr %s3907, 8
          %s3909 = scalar_lea.vmem [#allocation21], %s3908
          %3910 = dma.done %s3906, 128
        $region172: #{tpu_custom_call.1} parent=167 // pred_fallthru
          _
      $region168: #{tpu_custom_call.1} parent=5 // pred_fallthru
        _
    $region6: #{tpu_custom_call.1} parent=1 // loop_footer
      %s46 = sadd.s32 1, %s42
    $region7: #{tpu_custom_call.1} parent=1 // loop_footer_branch
      %41 = sbr.rel target = $region3
    $region8: #{tpu_custom_call.1} parent=1 // loop_exit
      _
    %3911 = vsyncpa [#allocation5], 1
    %s3912 = scalar_lea.sflag [#allocation5], 1
    %3913 = vsyncpa %s3912, 1
    %3914 = vsyncpa [#allocation8], 1
    %3915 = vsyncpa [#allocation11], 1
    %3916 = vsyncpa [#allocation14], 1
    %3917 = vsyncpa [#allocation17], 1
    %3918 = vsyncpa [#allocation20], 1
    %3919 = vsyncpa [#allocation6], 1
    %s3920 = scalar_lea.sflag [#allocation6], 1
    %3921 = vsyncpa %s3920, 1

</llo_original>
